<compile_context>
chip_gen: v7x
topology: tpu7x:2x2x1
jax: 0.10.0
libtpu: 0.0.40
codegen_flags: <defaults>
</compile_context>

<pallas_src>
import functools

import jax
import jax.numpy as jnp
from jax import lax
from jax.experimental import pallas as pl
from jax.experimental.pallas import tpu as pltpu

EPS = 1e-5
GROUPS = 8


# ---------------------------------------------------------------------------
# Kernel 1: 1x1 conv (channel matmul) + BatchNorm(train) + ReLU
# One grid step per output-channel group (CG = Cout // 8 channels), so the
# output is written directly in the (G, H*W, CG) layout kernel 2 consumes.
# ---------------------------------------------------------------------------
def _conv1x1_bn_relu_kernel(x_ref, w_ref, g_ref, b_ref, o_ref):
    # x_ref: (M1, Cin) bf16   w_ref: (1, Cin, CG) bf16   g/b: (1, 1, CG) f32
    y = jnp.dot(x_ref[...], w_ref[0], preferred_element_type=jnp.float32)
    mean = jnp.mean(y, axis=0, keepdims=True)
    var = jnp.mean(y * y, axis=0, keepdims=True) - mean * mean   # one-pass, biased
    inv = lax.rsqrt(var + EPS)
    yn = (y - mean) * inv * g_ref[0] + b_ref[0]
    o_ref[0] = jnp.maximum(yn, 0.0).astype(o_ref.dtype)


def conv1x1_bn_relu(x2d, w1g, gamma, beta):
    M1, Cin = x2d.shape
    G, _, CG = w1g.shape
    return pl.pallas_call(
        _conv1x1_bn_relu_kernel,
        out_shape=jax.ShapeDtypeStruct((G, M1, CG), jnp.bfloat16),
        grid=(G,),
        in_specs=[
            pl.BlockSpec((M1, Cin), lambda g: (0, 0)),        # stays resident
            pl.BlockSpec((1, Cin, CG), lambda g: (g, 0, 0)),
            pl.BlockSpec((1, 1, CG), lambda g: (g, 0, 0)),
            pl.BlockSpec((1, 1, CG), lambda g: (g, 0, 0)),
        ],
        out_specs=pl.BlockSpec((1, M1, CG), lambda g: (g, 0, 0)),
        compiler_params=pltpu.CompilerParams(dimension_semantics=("parallel",)),
    )(x2d, w1g, gamma, beta)


# ---------------------------------------------------------------------------
# Kernel 2: grouped 3x3 conv, stride 2, pad 1 + BatchNorm(train) + ReLU
#
# The intermediate is viewed (free reshape) as (G, HO, 2, WO, 2*CG):
#   axis 2 separates the even/odd input row of each output row pair,
#   the trailing 2*CG packs the channels of each horizontal pixel pair.
# Per group we build three stride-2 operands of shape (HO*WO, 2*CG):
#   D  = input rows 2*ho, F = input rows 2*ho+1, Fh = input rows 2*ho-1.
# Six matmuls (centre pair / left pair weights) then cover all 9 taps; the
# left-pair contribution is shifted one output column with a masked shift.
# ---------------------------------------------------------------------------
def _gconv3x3_s2_bn_relu_kernel(x_ref, w_ref, g_ref, b_ref, o_ref, *, HO, WO, CG):
    C2 = 2 * CG
    M = HO * WO

    D = x_ref[0, :, 0, :, :].reshape(M, C2)          # rows 2*ho     (bf16)
    F = x_ref[0, :, 1, :, :].reshape(M, C2)          # rows 2*ho + 1 (bf16)
    # rows 2*ho - 1 = odd row of the pair above; zeros for ho == 0 (top padding)
    Fh = jnp.concatenate(
        [jnp.zeros((WO, C2), x_ref.dtype), F[: M - WO]], axis=0)

    dot = lambda a, j: jnp.dot(a, w_ref[0, j], preferred_element_type=jnp.float32)
    # kw in {1, 2}: both columns of the centre pixel pair
    center = dot(D, 0) + dot(F, 1) + dot(Fh, 2)
    # kw == 0: odd column of the pixel pair to the left
    left = dot(D, 3) + dot(F, 4) + dot(Fh, 5)
    # shift the left-pair contribution one output column to the right,
    # zeroing wo == 0 (left padding)
    left = jnp.concatenate(
        [jnp.zeros((1, CG), jnp.float32), left[: M - 1]], axis=0)
    row = lax.broadcasted_iota(jnp.int32, (M, CG), 0)
    left = jnp.where(row % WO == 0, 0.0, left)

    y = center + left                                 # (M, CG) f32 conv output

    mean = jnp.mean(y, axis=0, keepdims=True)
    var = jnp.mean(y * y, axis=0, keepdims=True) - mean * mean   # biased, train
    inv = lax.rsqrt(var + EPS)
    o_ref[0] = jnp.maximum((y - mean) * inv * g_ref[0] + b_ref[0], 0.0)


def gconv3x3_s2_bn_relu(ysplit, w2k, gamma, beta):
    G, HO, _, WO, C2 = ysplit.shape
    CG = C2 // 2
    M = HO * WO
    kernel = functools.partial(_gconv3x3_s2_bn_relu_kernel, HO=HO, WO=WO, CG=CG)
    return pl.pallas_call(
        kernel,
        out_shape=jax.ShapeDtypeStruct((G, M, CG), jnp.float32),
        grid=(G,),
        in_specs=[
            pl.BlockSpec((1, HO, 2, WO, C2), lambda g: (g, 0, 0, 0, 0)),
            pl.BlockSpec((1, 6, C2, CG), lambda g: (g, 0, 0, 0)),
            pl.BlockSpec((1, 1, CG), lambda g: (g, 0, 0)),
            pl.BlockSpec((1, 1, CG), lambda g: (g, 0, 0)),
        ],
        out_specs=pl.BlockSpec((1, M, CG), lambda g: (g, 0, 0)),
        compiler_params=pltpu.CompilerParams(dimension_semantics=("parallel",)),
    )(ysplit, w2k, gamma, beta)


# ---------------------------------------------------------------------------
# One-time parameter preparation (hoisted weight re-layouts, bf16 cast)
# ---------------------------------------------------------------------------
def prepare_params(w1, g1, b1, w2, g2, b2):
    Cout, Cin = w1.shape[0], w1.shape[1]
    G = GROUPS
    CG = Cout // G

    # conv1 weight (Cout, Cin, 1, 1) -> per-group (G, Cin, CG), bf16
    w1g = jnp.transpose(w1.reshape(G, CG, Cin), (0, 2, 1)).astype(jnp.bfloat16)
    g1r = g1.reshape(G, 1, CG).astype(jnp.float32)
    b1r = b1.reshape(G, 1, CG).astype(jnp.float32)

    # conv2 weight (Cout, CG, 3, 3) -> m[g, kh, kw, ci, co]
    m = jnp.transpose(w2.reshape(G, CG, CG, 3, 3), (0, 3, 4, 2, 1))
    zero = jnp.zeros((G, CG, CG), w2.dtype)
    cat = lambda a, b: jnp.concatenate([a, b], axis=1)   # stack along ci -> (G, 2CG, CG)
    w2k = jnp.stack(
        [cat(m[:, 1, 1], m[:, 1, 2]),   # D  (row 2*ho,   kh=1), centre pair (kw=1,2)
         cat(m[:, 2, 1], m[:, 2, 2]),   # F  (row 2*ho+1, kh=2), centre pair
         cat(m[:, 0, 1], m[:, 0, 2]),   # Fh (row 2*ho-1, kh=0), centre pair
         cat(zero,       m[:, 1, 0]),   # D,  left pair (only its odd column, kw=0)
         cat(zero,       m[:, 2, 0]),   # F,  left pair
         cat(zero,       m[:, 0, 0])],  # Fh, left pair
        axis=1,
    ).astype(jnp.bfloat16)              # (G, 6, 2*CG, CG)

    g2r = g2.reshape(G, 1, CG).astype(jnp.float32)
    b2r = b2.reshape(G, 1, CG).astype(jnp.float32)
    return w1g, g1r, b1r, w2k, g2r, b2r


# ---------------------------------------------------------------------------
# Full forward (hot paths in the two Pallas kernels; only cheap glue in XLA)
# ---------------------------------------------------------------------------
def forward(x_nchw, prep):
    w1g, g1, b1, w2k, g2, b2 = prep
    N, Cin, H, W = x_nchw.shape
    assert N == 1, "kernel assumes batch=1 (matches the reference input)"
    assert H % 2 == 0 and W % 2 == 0
    G, _, CG = w1g.shape
    Cout = G * CG
    HO, WO = H // 2, W // 2
    M1 = N * H * W

    # NCHW -> (spatial, Cin), bf16 MXU operand
    x2d = jnp.transpose(x_nchw, (0, 2, 3, 1)).reshape(M1, Cin).astype(jnp.bfloat16)

    # stage 1: 1x1 conv + BN + ReLU, result already grouped: (G, H*W, CG) bf16
    y = conv1x1_bn_relu(x2d, w1g, g1, b1)

    # free reshape: (G, H*W, CG) -> (G, HO, 2, WO, 2*CG)  (row pairs / column pairs)
    ysplit = y.reshape(G, HO, 2, WO, 2 * CG)

    # stage 2: grouped 3x3 stride-2 conv + BN + ReLU -> (G, HO*WO, CG) f32
    z = gconv3x3_s2_bn_relu(ysplit, w2k, g2, b2)

    # back to NCHW
    return jnp.transpose(z, (0, 2, 1)).reshape(1, Cout, HO, WO)


# ---------------------------------------------------------------------------
# Pure-JAX f32 reference (for correctness check)
# ---------------------------------------------------------------------------
def _bn_relu_ref(x_nchw, gamma, beta):
    mean = x_nchw.mean(axis=(0, 2, 3), keepdims=True)
    var = x_nchw.var(axis=(0, 2, 3), keepdims=True)   # biased, train-mode
    y = (x_nchw - mean) * lax.rsqrt(var + EPS)
    y = y * gamma.reshape(1, -1, 1, 1) + beta.reshape(1, -1, 1, 1)
    return jnp.maximum(y, 0.0)


def reference(x, w1, g1, b1, w2, g2, b2):
    dn = ("NCHW", "OIHW", "NCHW")
    y = lax.conv_general_dilated(
        x, w1, (1, 1), "VALID", dimension_numbers=dn,
        precision=lax.Precision.HIGHEST)
    y = _bn_relu_ref(y, g1, b1)
    z = lax.conv_general_dilated(
        y, w2, (2, 2), ((1, 1), (1, 1)), dimension_numbers=dn,
        feature_group_count=GROUPS, precision=lax.Precision.HIGHEST)
    return _bn_relu_ref(z, g2, b2)


if __name__ == "__main__":
    key = jax.random.PRNGKey(0)
    k = jax.random.split(key, 7)

    # Channel sizes are fixed by the module; spatial kept small (module uses 28x28).
    N, Cin, H, W = 1, 672, 16, 16
    Cout = 1344
    CG = Cout // GROUPS

    x = jax.random.normal(k[0], (N, Cin, H, W), jnp.float32)
    w1 = jax.random.normal(k[1], (Cout, Cin, 1, 1), jnp.float32) * 0.02
    g1 = 1.0 + 0.1 * jax.random.normal(k[2], (Cout,), jnp.float32)
    b1 = 0.1 * jax.random.normal(k[3], (Cout,), jnp.float32)
    w2 = jax.random.normal(k[4], (Cout, CG, 3, 3), jnp.float32) * 0.05
    g2 = 1.0 + 0.1 * jax.random.normal(k[5], (Cout,), jnp.float32)
    b2 = 0.1 * jax.random.normal(k[6], (Cout,), jnp.float32)

    prep = prepare_params(w1, g1, b1, w2, g2, b2)
    out = jax.jit(forward)(x, prep)
    out = jax.block_until_ready(out)

    ref = reference(x, w1, g1, b1, w2, g2, b2)
    assert out.shape == ref.shape == (N, Cout, H // 2, W // 2), (out.shape, ref.shape)
    # bf16 MXU operands (f32 accumulation) vs f32 HIGHEST reference -> loose tolerance.
    if not bool(jnp.allclose(out, ref, atol=5e-2, rtol=5e-2)):
        max_err = float(jnp.max(jnp.abs(out - ref)))
        raise AssertionError(f"Pallas output mismatch, max abs err = {max_err}")

    print("KERNEL_OK")
</pallas_src>

<mosaic_0001>
module attributes {stable_mosaic.version = 11 : i64} {
  func.func @_conv1x1_bn_relu_kernel(%arg0: i32, %arg1: memref<256x672xbf16, #tpu.memory_space<vmem>>, %arg2: memref<1x672x168xbf16, #tpu.memory_space<vmem>>, %arg3: memref<1x1x168xf32, #tpu.memory_space<vmem>>, %arg4: memref<1x1x168xf32, #tpu.memory_space<vmem>>, %arg5: memref<1x256x168xbf16, #tpu.memory_space<vmem>>) attributes {dimension_semantics = [#tpu.dimension_semantics<parallel>], iteration_bounds = array<i64: 8>, scalar_prefetch = 0 : i64, scratch_operands = 0 : i64, tpu.core_type = #tpu.core_type<tc>, window_params = [{pipeline_mode = #tpu.pipeline_mode<synchronous>, transform_indices = @transform_0, window_bounds = array<i64: 256, 672>}, {transform_indices = @transform_1, window_bounds = array<i64: 1, 672, 168>}, {transform_indices = @transform_2, window_bounds = array<i64: 1, 1, 168>}, {transform_indices = @transform_3, window_bounds = array<i64: 1, 1, 168>}, {transform_indices = @transform_4, window_bounds = array<i64: 1, 256, 168>}]} {
    %c0 = arith.constant 0 : index
    %c0_0 = arith.constant 0 : index
    %0 = vector.load %arg1[%c0, %c0_0] : memref<256x672xbf16, #tpu.memory_space<vmem>>, vector<256x672xbf16>
    %c0_1 = arith.constant 0 : index
    %c0_2 = arith.constant 0 : index
    %c0_3 = arith.constant 0 : index
    %1 = vector.load %arg2[%c0_1, %c0_2, %c0_3] : memref<1x672x168xbf16, #tpu.memory_space<vmem>>, vector<1x672x168xbf16>
    %2 = vector.shape_cast %1 : vector<1x672x168xbf16> to vector<672x168xbf16>
    %cst = arith.constant dense<0.000000e+00> : vector<256x168xf32>
    %3 = tpu.matmul %0, %2, %cst {dimension_numbers = #tpu.dot_dimension_numbers<[1], [0], [0], [1], [0, 0, 1, 1], [], []>} : vector<256x672xbf16>, vector<672x168xbf16>, vector<256x168xf32> -> vector<256x168xf32>
    %cst_4 = arith.constant dense<0.000000e+00> : vector<168xf32>
    %4 = vector.multi_reduction <add>, %3, %cst_4 [0] : vector<256x168xf32> to vector<168xf32>
    %5 = vector.shape_cast %4 : vector<168xf32> to vector<1x168xf32>
    %cst_5 = arith.constant 2.560000e+02 : f32
    %6 = vector.broadcast %cst_5 : f32 to vector<1x168xf32>
    %7 = arith.divf %5, %6 : vector<1x168xf32>
    %8 = arith.mulf %3, %3 : vector<256x168xf32>
    %cst_6 = arith.constant dense<0.000000e+00> : vector<168xf32>
    %9 = vector.multi_reduction <add>, %8, %cst_6 [0] : vector<256x168xf32> to vector<168xf32>
    %10 = vector.shape_cast %9 : vector<168xf32> to vector<1x168xf32>
    %cst_7 = arith.constant 2.560000e+02 : f32
    %11 = vector.broadcast %cst_7 : f32 to vector<1x168xf32>
    %12 = arith.divf %10, %11 : vector<1x168xf32>
    %13 = arith.mulf %7, %7 : vector<1x168xf32>
    %14 = arith.subf %12, %13 : vector<1x168xf32>
    %cst_8 = arith.constant 9.99999974E-6 : f32
    %15 = vector.broadcast %cst_8 : f32 to vector<1x168xf32>
    %16 = arith.addf %14, %15 : vector<1x168xf32>
    %17 = math.rsqrt %16 : vector<1x168xf32>
    %18 = vector.broadcast %7 : vector<1x168xf32> to vector<256x168xf32>
    %19 = arith.subf %3, %18 : vector<256x168xf32>
    %20 = vector.broadcast %17 : vector<1x168xf32> to vector<256x168xf32>
    %21 = arith.mulf %19, %20 : vector<256x168xf32>
    %c0_9 = arith.constant 0 : index
    %c0_10 = arith.constant 0 : index
    %c0_11 = arith.constant 0 : index
    %22 = vector.load %arg3[%c0_9, %c0_10, %c0_11] : memref<1x1x168xf32, #tpu.memory_space<vmem>>, vector<1x1x168xf32>
    %23 = vector.shape_cast %22 : vector<1x1x168xf32> to vector<1x168xf32>
    %24 = vector.broadcast %23 : vector<1x168xf32> to vector<256x168xf32>
    %25 = arith.mulf %21, %24 : vector<256x168xf32>
    %c0_12 = arith.constant 0 : index
    %c0_13 = arith.constant 0 : index
    %c0_14 = arith.constant 0 : index
    %26 = vector.load %arg4[%c0_12, %c0_13, %c0_14] : memref<1x1x168xf32, #tpu.memory_space<vmem>>, vector<1x1x168xf32>
    %27 = vector.shape_cast %26 : vector<1x1x168xf32> to vector<1x168xf32>
    %28 = vector.broadcast %27 : vector<1x168xf32> to vector<256x168xf32>
    %29 = arith.addf %25, %28 : vector<256x168xf32>
    %cst_15 = arith.constant 0.000000e+00 : f32
    %30 = vector.broadcast %cst_15 : f32 to vector<256x168xf32>
    %31 = arith.maximumf %29, %30 : vector<256x168xf32>
    %32 = arith.truncf %31 : vector<256x168xf32> to vector<256x168xbf16>
    %c0_16 = arith.constant 0 : index
    %c0_17 = arith.constant 0 : index
    %c0_18 = arith.constant 0 : index
    %33 = vector.load %arg5[%c0_16, %c0_17, %c0_18] : memref<1x256x168xbf16, #tpu.memory_space<vmem>>, vector<1x256x168xbf16>
    %34 = vector.shape_cast %33 : vector<1x256x168xbf16> to vector<256x168xbf16>
    %35 = vector.shape_cast %32 : vector<256x168xbf16> to vector<1x256x168xbf16>
    tpu.vector_store %arg5[%c0_16, %c0_17, %c0_18], %35 {strides = array<i32>} : memref<1x256x168xbf16, #tpu.memory_space<vmem>>, vector<1x256x168xbf16>,
    return
  }
  func.func @transform_0(%arg0: i32) -> (i32, i32) {
    %c0_i32 = arith.constant 0 : i32
    %c0_i32_0 = arith.constant 0 : i32
    %c0_i32_1 = arith.constant 0 : i32
    return %c0_i32, %c0_i32_0 : i32, i32
  }
  func.func @transform_1(%arg0: i32) -> (i32, i32, i32) {
    %c0_i32 = arith.constant 0 : i32
    %c0_i32_0 = arith.constant 0 : i32
    %c0_i32_1 = arith.constant 0 : i32
    return %arg0, %c0_i32, %c0_i32_0 : i32, i32, i32
  }
  func.func @transform_2(%arg0: i32) -> (i32, i32, i32) {
    %c0_i32 = arith.constant 0 : i32
    %c0_i32_0 = arith.constant 0 : i32
    %c0_i32_1 = arith.constant 0 : i32
    return %arg0, %c0_i32, %c0_i32_0 : i32, i32, i32
  }
  func.func @transform_3(%arg0: i32) -> (i32, i32, i32) {
    %c0_i32 = arith.constant 0 : i32
    %c0_i32_0 = arith.constant 0 : i32
    %c0_i32_1 = arith.constant 0 : i32
    return %arg0, %c0_i32, %c0_i32_0 : i32, i32, i32
  }
  func.func @transform_4(%arg0: i32) -> (i32, i32, i32) {
    %c0_i32 = arith.constant 0 : i32
    %c0_i32_0 = arith.constant 0 : i32
    %c0_i32_1 = arith.constant 0 : i32
    return %arg0, %c0_i32, %c0_i32_0 : i32, i32, i32
  }
}

module attributes {stable_mosaic.version = 11 : i64} {
  func.func @_gconv3x3_s2_bn_relu_kernel(%arg0: i32, %arg1: memref<1x8x2x8x336xbf16, #tpu.memory_space<vmem>>, %arg2: memref<1x6x336x168xbf16, #tpu.memory_space<vmem>>, %arg3: memref<1x1x168xf32, #tpu.memory_space<vmem>>, %arg4: memref<1x1x168xf32, #tpu.memory_space<vmem>>, %arg5: memref<1x64x168xf32, #tpu.memory_space<vmem>>) attributes {dimension_semantics = [#tpu.dimension_semantics<parallel>], iteration_bounds = array<i64: 8>, scalar_prefetch = 0 : i64, scratch_operands = 0 : i64, tpu.core_type = #tpu.core_type<tc>, window_params = [{transform_indices = @transform_0, window_bounds = array<i64: 1, 8, 2, 8, 336>}, {transform_indices = @transform_1, window_bounds = array<i64: 1, 6, 336, 168>}, {transform_indices = @transform_2, window_bounds = array<i64: 1, 1, 168>}, {transform_indices = @transform_3, window_bounds = array<i64: 1, 1, 168>}, {transform_indices = @transform_4, window_bounds = array<i64: 1, 64, 168>}]} {
    %c0 = arith.constant 0 : index
    %c0_0 = arith.constant 0 : index
    %c0_1 = arith.constant 0 : index
    %c0_2 = arith.constant 0 : index
    %c0_3 = arith.constant 0 : index
    %0 = vector.load %arg1[%c0, %c0_0, %c0_1, %c0_2, %c0_3] : memref<1x8x2x8x336xbf16, #tpu.memory_space<vmem>>, vector<1x8x1x8x336xbf16>
    %1 = vector.shape_cast %0 : vector<1x8x1x8x336xbf16> to vector<8x8x336xbf16>
    %2 = vector.shape_cast %1 : vector<8x8x336xbf16> to vector<64x336xbf16>
    %c0_4 = arith.constant 0 : index
    %c0_5 = arith.constant 0 : index
    %c1 = arith.constant 1 : index
    %c0_6 = arith.constant 0 : index
    %c0_7 = arith.constant 0 : index
    %3 = vector.load %arg1[%c0_4, %c0_5, %c1, %c0_6, %c0_7] : memref<1x8x2x8x336xbf16, #tpu.memory_space<vmem>>, vector<1x8x1x8x336xbf16>
    %4 = vector.shape_cast %3 : vector<1x8x1x8x336xbf16> to vector<8x8x336xbf16>
    %5 = vector.shape_cast %4 : vector<8x8x336xbf16> to vector<64x336xbf16>
    %cst = arith.constant 0.000000e+00 : bf16
    %6 = vector.broadcast %cst : bf16 to vector<8x336xbf16>
    %7 = vector.extract_strided_slice %5 {offsets = [0, 0], sizes = [56, 336], strides = [1, 1]} : vector<64x336xbf16> to vector<56x336xbf16>
    %8 = tpu.concatenate %6, %7 in 0 : vector<8x336xbf16>, vector<56x336xbf16> -> vector<64x336xbf16>
    %c0_8 = arith.constant 0 : index
    %c0_9 = arith.constant 0 : index
    %c0_10 = arith.constant 0 : index
    %c0_11 = arith.constant 0 : index
    %9 = vector.load %arg2[%c0_8, %c0_9, %c0_10, %c0_11] : memref<1x6x336x168xbf16, #tpu.memory_space<vmem>>, vector<1x1x336x168xbf16>
    %10 = vector.shape_cast %9 : vector<1x1x336x168xbf16> to vector<336x168xbf16>
    %cst_12 = arith.constant dense<0.000000e+00> : vector<64x168xf32>
    %11 = tpu.matmul %2, %10, %cst_12 {dimension_numbers = #tpu.dot_dimension_numbers<[1], [0], [0], [1], [0, 0, 1, 1], [], []>} : vector<64x336xbf16>, vector<336x168xbf16>, vector<64x168xf32> -> vector<64x168xf32>
    %c0_13 = arith.constant 0 : index
    %c1_14 = arith.constant 1 : index
    %c0_15 = arith.constant 0 : index
    %c0_16 = arith.constant 0 : index
    %12 = vector.load %arg2[%c0_13, %c1_14, %c0_15, %c0_16] : memref<1x6x336x168xbf16, #tpu.memory_space<vmem>>, vector<1x1x336x168xbf16>
    %13 = vector.shape_cast %12 : vector<1x1x336x168xbf16> to vector<336x168xbf16>
    %cst_17 = arith.constant dense<0.000000e+00> : vector<64x168xf32>
    %14 = tpu.matmul %5, %13, %cst_17 {dimension_numbers = #tpu.dot_dimension_numbers<[1], [0], [0], [1], [0, 0, 1, 1], [], []>} : vector<64x336xbf16>, vector<336x168xbf16>, vector<64x168xf32> -> vector<64x168xf32>
    %15 = arith.addf %11, %14 : vector<64x168xf32>
    %c0_18 = arith.constant 0 : index
    %c2 = arith.constant 2 : index
    %c0_19 = arith.constant 0 : index
    %c0_20 = arith.constant 0 : index
    %16 = vector.load %arg2[%c0_18, %c2, %c0_19, %c0_20] : memref<1x6x336x168xbf16, #tpu.memory_space<vmem>>, vector<1x1x336x168xbf16>
    %17 = vector.shape_cast %16 : vector<1x1x336x168xbf16> to vector<336x168xbf16>
    %cst_21 = arith.constant dense<0.000000e+00> : vector<64x168xf32>
    %18 = tpu.matmul %8, %17, %cst_21 {dimension_numbers = #tpu.dot_dimension_numbers<[1], [0], [0], [1], [0, 0, 1, 1], [], []>} : vector<64x336xbf16>, vector<336x168xbf16>, vector<64x168xf32> -> vector<64x168xf32>
    %19 = arith.addf %15, %18 : vector<64x168xf32>
    %c0_22 = arith.constant 0 : index
    %c3 = arith.constant 3 : index
    %c0_23 = arith.constant 0 : index
    %c0_24 = arith.constant 0 : index
    %20 = vector.load %arg2[%c0_22, %c3, %c0_23, %c0_24] : memref<1x6x336x168xbf16, #tpu.memory_space<vmem>>, vector<1x1x336x168xbf16>
    %21 = vector.shape_cast %20 : vector<1x1x336x168xbf16> to vector<336x168xbf16>
    %cst_25 = arith.constant dense<0.000000e+00> : vector<64x168xf32>
    %22 = tpu.matmul %2, %21, %cst_25 {dimension_numbers = #tpu.dot_dimension_numbers<[1], [0], [0], [1], [0, 0, 1, 1], [], []>} : vector<64x336xbf16>, vector<336x168xbf16>, vector<64x168xf32> -> vector<64x168xf32>
    %c0_26 = arith.constant 0 : index
    %c4 = arith.constant 4 : index
    %c0_27 = arith.constant 0 : index
    %c0_28 = arith.constant 0 : index
    %23 = vector.load %arg2[%c0_26, %c4, %c0_27, %c0_28] : memref<1x6x336x168xbf16, #tpu.memory_space<vmem>>, vector<1x1x336x168xbf16>
    %24 = vector.shape_cast %23 : vector<1x1x336x168xbf16> to vector<336x168xbf16>
    %cst_29 = arith.constant dense<0.000000e+00> : vector<64x168xf32>
    %25 = tpu.matmul %5, %24, %cst_29 {dimension_numbers = #tpu.dot_dimension_numbers<[1], [0], [0], [1], [0, 0, 1, 1], [], []>} : vector<64x336xbf16>, vector<336x168xbf16>, vector<64x168xf32> -> vector<64x168xf32>
    %26 = arith.addf %22, %25 : vector<64x168xf32>
    %c0_30 = arith.constant 0 : index
    %c5 = arith.constant 5 : index
    %c0_31 = arith.constant 0 : index
    %c0_32 = arith.constant 0 : index
    %27 = vector.load %arg2[%c0_30, %c5, %c0_31, %c0_32] : memref<1x6x336x168xbf16, #tpu.memory_space<vmem>>, vector<1x1x336x168xbf16>
    %28 = vector.shape_cast %27 : vector<1x1x336x168xbf16> to vector<336x168xbf16>
    %cst_33 = arith.constant dense<0.000000e+00> : vector<64x168xf32>
    %29 = tpu.matmul %8, %28, %cst_33 {dimension_numbers = #tpu.dot_dimension_numbers<[1], [0], [0], [1], [0, 0, 1, 1], [], []>} : vector<64x336xbf16>, vector<336x168xbf16>, vector<64x168xf32> -> vector<64x168xf32>
    %30 = arith.addf %26, %29 : vector<64x168xf32>
    %cst_34 = arith.constant 0.000000e+00 : f32
    %31 = vector.broadcast %cst_34 : f32 to vector<1x168xf32>
    %32 = vector.extract_strided_slice %30 {offsets = [0, 0], sizes = [63, 168], strides = [1, 1]} : vector<64x168xf32> to vector<63x168xf32>
    %33 = tpu.concatenate %31, %32 in 0 : vector<1x168xf32>, vector<63x168xf32> -> vector<64x168xf32>
    %34 = tpu.iota {dimensions = array<i32: 0>} : vector<64x168xi32>
    %c8_i32 = arith.constant 8 : i32
    %c0_i32 = arith.constant 0 : i32
    %35 = arith.cmpi eq, %c8_i32, %c0_i32 : i32
    %c1_i32 = arith.constant 1 : i32
    %36 = arith.select %35, %c1_i32, %c8_i32 : i32
    %37 = vector.broadcast %36 : i32 to vector<64x168xi32>
    %38 = arith.remsi %34, %37 : vector<64x168xi32>
    %c0_i32_35 = arith.constant 0 : i32
    %39 = vector.broadcast %c0_i32_35 : i32 to vector<64x168xi32>
    %40 = arith.cmpi ne, %38, %39 : vector<64x168xi32>
    %c0_i32_36 = arith.constant 0 : i32
    %41 = vector.broadcast %c0_i32_36 : i32 to vector<64x168xi32>
    %42 = arith.cmpi slt, %38, %41 : vector<64x168xi32>
    %c0_i32_37 = arith.constant 0 : i32
    %43 = arith.cmpi slt, %36, %c0_i32_37 : i32
    %44 = vector.broadcast %43 : i1 to vector<64x168xi1>
    %45 = vector.broadcast %44 : vector<64x168xi1> to vector<64x168xi1>
    %46 = arith.xori %42, %45 : vector<64x168xi1>
    %47 = arith.andi %46, %40 : vector<64x168xi1>
    %48 = vector.broadcast %36 : i32 to vector<64x168xi32>
    %49 = arith.addi %38, %48 : vector<64x168xi32>
    %50 = arith.select %47, %49, %38 : vector<64x168xi1>, vector<64x168xi32>
    %c0_i32_38 = arith.constant 0 : i32
    %51 = vector.broadcast %c0_i32_38 : i32 to vector<64x168xi32>
    %52 = arith.cmpi eq, %50, %51 : vector<64x168xi32>
    %cst_39 = arith.constant 0.000000e+00 : f32
    %53 = vector.broadcast %cst_39 : f32 to vector<64x168xf32>
    %54 = arith.select %52, %53, %33 : vector<64x168xi1>, vector<64x168xf32>
    %55 = arith.addf %19, %54 : vector<64x168xf32>
    %cst_40 = arith.constant dense<0.000000e+00> : vector<168xf32>
    %56 = vector.multi_reduction <add>, %55, %cst_40 [0] : vector<64x168xf32> to vector<168xf32>
    %57 = vector.shape_cast %56 : vector<168xf32> to vector<1x168xf32>
    %cst_41 = arith.constant 6.400000e+01 : f32
    %58 = vector.broadcast %cst_41 : f32 to vector<1x168xf32>
    %59 = arith.divf %57, %58 : vector<1x168xf32>
    %60 = arith.mulf %55, %55 : vector<64x168xf32>
    %cst_42 = arith.constant dense<0.000000e+00> : vector<168xf32>
    %61 = vector.multi_reduction <add>, %60, %cst_42 [0] : vector<64x168xf32> to vector<168xf32>
    %62 = vector.shape_cast %61 : vector<168xf32> to vector<1x168xf32>
    %cst_43 = arith.constant 6.400000e+01 : f32
    %63 = vector.broadcast %cst_43 : f32 to vector<1x168xf32>
    %64 = arith.divf %62, %63 : vector<1x168xf32>
    %65 = arith.mulf %59, %59 : vector<1x168xf32>
    %66 = arith.subf %64, %65 : vector<1x168xf32>
    %cst_44 = arith.constant 9.99999974E-6 : f32
    %67 = vector.broadcast %cst_44 : f32 to vector<1x168xf32>
    %68 = arith.addf %66, %67 : vector<1x168xf32>
    %69 = math.rsqrt %68 : vector<1x168xf32>
    %70 = vector.broadcast %59 : vector<1x168xf32> to vector<64x168xf32>
    %71 = arith.subf %55, %70 : vector<64x168xf32>
    %72 = vector.broadcast %69 : vector<1x168xf32> to vector<64x168xf32>
    %73 = arith.mulf %71, %72 : vector<64x168xf32>
    %c0_45 = arith.constant 0 : index
    %c0_46 = arith.constant 0 : index
    %c0_47 = arith.constant 0 : index
    %74 = vector.load %arg3[%c0_45, %c0_46, %c0_47] : memref<1x1x168xf32, #tpu.memory_space<vmem>>, vector<1x1x168xf32>
    %75 = vector.shape_cast %74 : vector<1x1x168xf32> to vector<1x168xf32>
    %76 = vector.broadcast %75 : vector<1x168xf32> to vector<64x168xf32>
    %77 = arith.mulf %73, %76 : vector<64x168xf32>
    %c0_48 = arith.constant 0 : index
    %c0_49 = arith.constant 0 : index
    %c0_50 = arith.constant 0 : index
    %78 = vector.load %arg4[%c0_48, %c0_49, %c0_50] : memref<1x1x168xf32, #tpu.memory_space<vmem>>, vector<1x1x168xf32>
    %79 = vector.shape_cast %78 : vector<1x1x168xf32> to vector<1x168xf32>
    %80 = vector.broadcast %79 : vector<1x168xf32> to vector<64x168xf32>
    %81 = arith.addf %77, %80 : vector<64x168xf32>
    %cst_51 = arith.constant 0.000000e+00 : f32
    %82 = vector.broadcast %cst_51 : f32 to vector<64x168xf32>
    %83 = arith.maximumf %81, %82 : vector<64x168xf32>
    %c0_52 = arith.constant 0 : index
    %c0_53 = arith.constant 0 : index
    %c0_54 = arith.constant 0 : index
    %84 = vector.load %arg5[%c0_52, %c0_53, %c0_54] : memref<1x64x168xf32, #tpu.memory_space<vmem>>, vector<1x64x168xf32>
    %85 = vector.shape_cast %84 : vector<1x64x168xf32> to vector<64x168xf32>
    %86 = vector.shape_cast %83 : vector<64x168xf32> to vector<1x64x168xf32>
    tpu.vector_store %arg5[%c0_52, %c0_53, %c0_54], %86 {strides = array<i32>} : memref<1x64x168xf32, #tpu.memory_space<vmem>>, vector<1x64x168xf32>,
    return
  }
  func.func @transform_0(%arg0: i32) -> (i32, i32, i32, i32, i32) {
    %c0_i32 = arith.constant 0 : i32
    %c0_i32_0 = arith.constant 0 : i32
    %c0_i32_1 = arith.constant 0 : i32
    %c0_i32_2 = arith.constant 0 : i32
    %c0_i32_3 = arith.constant 0 : i32
    return %arg0, %c0_i32, %c0_i32_0, %c0_i32_1, %c0_i32_2 : i32, i32, i32, i32, i32
  }
  func.func @transform_1(%arg0: i32) -> (i32, i32, i32, i32) {
    %c0_i32 = arith.constant 0 : i32
    %c0_i32_0 = arith.constant 0 : i32
    %c0_i32_1 = arith.constant 0 : i32
    %c0_i32_2 = arith.constant 0 : i32
    return %arg0, %c0_i32, %c0_i32_0, %c0_i32_1 : i32, i32, i32, i32
  }
  func.func @transform_2(%arg0: i32) -> (i32, i32, i32) {
    %c0_i32 = arith.constant 0 : i32
    %c0_i32_0 = arith.constant 0 : i32
    %c0_i32_1 = arith.constant 0 : i32
    return %arg0, %c0_i32, %c0_i32_0 : i32, i32, i32
  }
  func.func @transform_3(%arg0: i32) -> (i32, i32, i32) {
    %c0_i32 = arith.constant 0 : i32
    %c0_i32_0 = arith.constant 0 : i32
    %c0_i32_1 = arith.constant 0 : i32
    return %arg0, %c0_i32, %c0_i32_0 : i32, i32, i32
  }
  func.func @transform_4(%arg0: i32) -> (i32, i32, i32) {
    %c0_i32 = arith.constant 0 : i32
    %c0_i32_0 = arith.constant 0 : i32
    %c0_i32_1 = arith.constant 0 : i32
    return %arg0, %c0_i32, %c0_i32_0 : i32, i32, i32
  }
}

</mosaic_0001>

<llo_original>
// kernel: forward.2
$region0: #{forward.2}
  #allocation0 [shape = 'u32[]', space=smem, size = 0x4, offset = 0x4, fixed_abs, tag = 'smem constant byte address 0x4 - core index']
  #allocation1 [shape = 'u32[144,128]{1,0:T(1,128)}', space=vmem, size = 0x12000, scoped, tag = 'internal scratch']
  %s0 = inlined_call_operand.vmem [shape: bf16[256,672], index: 0, kind: input, shape index: {}]
  %s1 = inlined_call_operand.vmem [shape: bf16[8,672,168], index: 1, kind: input, shape index: {}]
  %s2 = inlined_call_operand.hbm [shape: f32[8,1,168], index: 2, kind: input, shape index: {}]
  %s3 = inlined_call_operand.hbm [shape: f32[8,1,168], index: 3, kind: input, shape index: {}]
  %s4 = inlined_call_operand.vmem [shape: bf16[8,256,168], index: 4, kind: output, shape index: {}]
  %s5 = sld [smem:[#allocation0]]
  $region57: #{forward.2} parent=0
    _
  %s7 = ssub.s32 1, %s5
  %s8 = scalar_select 0, %s7, %s5
  $region1: #{forward.2} parent=0
    #allocation2 [shape = 'u8[2048]{0}', space=vmem, size = 0x800, scoped, tag = 'input window, operand 2']
    #allocation3 [shape = 's32[2]{0}', space=sflag, size = 0x8, scoped, tag = 'scoped memory for forward.2']
    #allocation4 [shape = 'u8[2048]{0}', space=vmem, size = 0x800, scoped, tag = 'input window, operand 3']
    #allocation5 [shape = 's32[2]{0}', space=sflag, size = 0x8, scoped, tag = 'scoped memory for forward.2']
    %9 = vsyncpa [#allocation3], 0
    %s10 = scalar_lea.sflag [#allocation3], 1
    %11 = vsyncpa %s10, 0
    %12 = vsyncpa [#allocation5], 0
    %s13 = scalar_lea.sflag [#allocation5], 1
    %14 = vsyncpa %s13, 0
    loop: start=0, step=1, limit=10
    $region2: #{forward.2} parent=1 // loop_pre_header
      _
    $region3: #{forward.2} parent=1 // loop_header
      %s16 = sphi 0, %s20
      %p17 = scmp.ge.s32.totalorder %s16, 10
      %s24 = sphi 0, %s24
      %s26 = sphi 0, %s24
      %s27 = sphi 0, %s26
      %s41 = sphi 0, %s27
      %s47 = sphi 0, %s49
      %s50 = sphi 0, %s47
      %s51 = sphi 0, %s50
      %s67 = sphi 0, %s51
      %s73 = sphi 0, %s75
      %s76 = sphi 0, %s73
      %s77 = sphi 0, %s76
      %s93 = sphi 0, %s77
      %s99 = sphi 0, %s101
      %s102 = sphi 0, %s99
      %s103 = sphi 0, %s102
      %s119 = sphi 0, %s103
      %s125 = sphi 0, %s127
      %s128 = sphi 0, %s125
      %s129 = sphi 0, %s128
      %s145 = sphi 0, %s129
    $region4: #{forward.2} parent=1 // loop_header_branch
      %19 = sbr.rel (%p17) target = $region8
    $region5: #{forward.2} parent=1 // loop_body
      %s21 = ssub.s32 %s16, 1
      %s22 = ssub.s32 %s16, 2
      %s23 = sadd.s32 %s16, 1
      %s25 = sadd.s32 %s24, 1
      %p28 = scmp.eq.s32.totalorder %s16, 7
      %p29 = scmp.ne.s32.totalorder %s24, %s26
      %p30 = scmp.eq.s32.totalorder %s16, 0
      %p31 = por %p29, %p30
      %p32 = scmp.ne.s32.totalorder %s24, %s26
      %p33 = scmp.eq.s32.totalorder %s21, 7
      %p34 = por %p32, %p33
      %p35 = scmp.ne.s32.totalorder %s26, %s27
      %p36 = scmp.eq.s32.totalorder %s21, 0
      %p37 = por %p35, %p36
      %p38 = scmp.ne.s32.totalorder %s26, %s27
      %p39 = scmp.eq.s32.totalorder %s22, 7
      %p40 = por %p38, %p39
      %p42 = scmp.ne.s32.totalorder %s27, %s41
      %p43 = scmp.eq.s32.totalorder %s22, 0
      %p44 = por %p42, %p43
      %s45 = ssub.s32 %s16, %s23
      %p46 = scmp.eq.s32.totalorder %s45, 0
      %s48 = sadd.s32 %s47, 1
      %s49 = scalar_select %p46, %s47, %s48
      %p52 = pneg %p46
      %p53 = scmp.eq.s32.totalorder %s16, 7
      %p54 = por %p52, %p53
      %p55 = scmp.ne.s32.totalorder %s47, %s50
      %p56 = scmp.eq.s32.totalorder %s16, 0
      %p57 = por %p55, %p56
      %p58 = scmp.ne.s32.totalorder %s47, %s50
      %p59 = scmp.eq.s32.totalorder %s21, 7
      %p60 = por %p58, %p59
      %p61 = scmp.ne.s32.totalorder %s50, %s51
      %p62 = scmp.eq.s32.totalorder %s21, 0
      %p63 = por %p61, %p62
      %p64 = scmp.ne.s32.totalorder %s50, %s51
      %p65 = scmp.eq.s32.totalorder %s22, 7
      %p66 = por %p64, %p65
      %p68 = scmp.ne.s32.totalorder %s51, %s67
      %p69 = scmp.eq.s32.totalorder %s22, 0
      %p70 = por %p68, %p69
      %s71 = ssub.s32 %s16, %s23
      %p72 = scmp.eq.s32.totalorder %s71, 0
      %s74 = sadd.s32 %s73, 1
      %s75 = scalar_select %p72, %s73, %s74
      %p78 = pneg %p72
      %p79 = scmp.eq.s32.totalorder %s16, 7
      %p80 = por %p78, %p79
      %p81 = scmp.ne.s32.totalorder %s73, %s76
      %p82 = scmp.eq.s32.totalorder %s16, 0
      %p83 = por %p81, %p82
      %p84 = scmp.ne.s32.totalorder %s73, %s76
      %p85 = scmp.eq.s32.totalorder %s21, 7
      %p86 = por %p84, %p85
      %p87 = scmp.ne.s32.totalorder %s76, %s77
      %p88 = scmp.eq.s32.totalorder %s21, 0
      %p89 = por %p87, %p88
      %p90 = scmp.ne.s32.totalorder %s76, %s77
      %p91 = scmp.eq.s32.totalorder %s22, 7
      %p92 = por %p90, %p91
      %p94 = scmp.ne.s32.totalorder %s77, %s93
      %p95 = scmp.eq.s32.totalorder %s22, 0
      %p96 = por %p94, %p95
      %s97 = ssub.s32 %s16, %s23
      %p98 = scmp.eq.s32.totalorder %s97, 0
      %s100 = sadd.s32 %s99, 1
      %s101 = scalar_select %p98, %s99, %s100
      %p104 = pneg %p98
      %p105 = scmp.eq.s32.totalorder %s16, 7
      %p106 = por %p104, %p105
      %p107 = scmp.ne.s32.totalorder %s99, %s102
      %p108 = scmp.eq.s32.totalorder %s16, 0
      %p109 = por %p107, %p108
      %p110 = scmp.ne.s32.totalorder %s99, %s102
      %p111 = scmp.eq.s32.totalorder %s21, 7
      %p112 = por %p110, %p111
      %p113 = scmp.ne.s32.totalorder %s102, %s103
      %p114 = scmp.eq.s32.totalorder %s21, 0
      %p115 = por %p113, %p114
      %p116 = scmp.ne.s32.totalorder %s102, %s103
      %p117 = scmp.eq.s32.totalorder %s22, 7
      %p118 = por %p116, %p117
      %p120 = scmp.ne.s32.totalorder %s103, %s119
      %p121 = scmp.eq.s32.totalorder %s22, 0
      %p122 = por %p120, %p121
      %s123 = ssub.s32 %s16, %s23
      %p124 = scmp.eq.s32.totalorder %s123, 0
      %s126 = sadd.s32 %s125, 1
      %s127 = scalar_select %p124, %s125, %s126
      %p130 = pneg %p124
      %p131 = scmp.eq.s32.totalorder %s16, 7
      %p132 = por %p130, %p131
      %p133 = scmp.ne.s32.totalorder %s125, %s128
      %p134 = scmp.eq.s32.totalorder %s16, 0
      %p135 = por %p133, %p134
      %p136 = scmp.ne.s32.totalorder %s125, %s128
      %p137 = scmp.eq.s32.totalorder %s21, 7
      %p138 = por %p136, %p137
      %p139 = scmp.ne.s32.totalorder %s128, %s129
      %p140 = scmp.eq.s32.totalorder %s21, 0
      %p141 = por %p139, %p140
      %p142 = scmp.ne.s32.totalorder %s128, %s129
      %p143 = scmp.eq.s32.totalorder %s22, 7
      %p144 = por %p142, %p143
      %p146 = scmp.ne.s32.totalorder %s129, %s145
      %p147 = scmp.eq.s32.totalorder %s22, 0
      %p148 = por %p146, %p147
      %p149 = scmp.le.s32.totalorder 1, %s16
      %p150 = scmp.lt.s32.totalorder %s16, 9
      %p151 = pnand %p149, %p150
      %p152 = pneg %p151
      // Predicated region
      $region9: #{forward.2} parent=5 // pred_check
        _
      $region10: #{forward.2} parent=5 // pred_check_branch
        %154 = sbr.rel (%p151) target = $region12
      $region11: #{forward.2} parent=5 // pred_region
        %s155 = ssub.s32 %s16, 1
        // Predicated region
        $region13: #{forward.2} parent=11 // pred_check
          %p156 = pneg %p37
        $region14: #{forward.2} parent=11 // pred_check_branch
          %158 = sbr.rel (%p156) target = $region16
        $region15: #{forward.2} parent=11 // pred_region
          _
        $region16: #{forward.2} parent=11 // pred_fallthru
          _
      $region12: #{forward.2} parent=5 // pred_fallthru
        _
      %p159 = scmp.lt.s32.totalorder %s16, 8
      // Predicated region
      $region17: #{forward.2} parent=5 // pred_check
        %p160 = pneg %p159
      $region18: #{forward.2} parent=5 // pred_check_branch
        %162 = sbr.rel (%p160) target = $region20
      $region19: #{forward.2} parent=5 // pred_region
        // Predicated region
        $region21: #{forward.2} parent=19 // pred_check
          %p163 = pneg %p57
        $region22: #{forward.2} parent=19 // pred_check_branch
          %165 = sbr.rel (%p163) target = $region24
        $region23: #{forward.2} parent=19 // pred_region
          %p166 = scmp.lt.s32.totalorder %s16, 7
          %s167 = scalar_select %p166, %s16, 7
          %s168 = smul.addr %s167, 168
          %s169 = smul.addr %s168, 4
          %s170 = scalar_lea.vmem %s1, %s169
        $region24: #{forward.2} parent=19 // pred_fallthru
          _
        // Predicated region
        $region25: #{forward.2} parent=19 // pred_check
          %p171 = pneg %p83
        $region26: #{forward.2} parent=19 // pred_check_branch
          %173 = sbr.rel (%p171) target = $region28
        $region27: #{forward.2} parent=19 // pred_region
          %s174 = sand.u32 %s73, 1
          %s175 = scalar_lea.sflag [#allocation3], %s174
          %s176 = sand.u32 %s73, 1
          %s177 = smul.addr %s176, 2
          %s178 = scalar_lea.vmem [#allocation2], %s177
          %s180 = ssub.s32 32, 32
          %181 = vsyncadd %s175, %s180
          %s182 = smul.addr %s16, 2
          %s183 = smul.addr %s182, 16
          %s184 = scalar_lea.hbm %s2, %s183
          %s186 = sshll.u32 %s178, 4
          %s187 = int_to_ptr.vmem [resolvable:$true] %s186
          %189 = dma.hbm_to_vmem [thread:$0]  %s184, 32, %s187, %s175
        $region28: #{forward.2} parent=19 // pred_fallthru
          _
        // Predicated region
        $region29: #{forward.2} parent=19 // pred_check
          %p190 = pneg %p109
        $region30: #{forward.2} parent=19 // pred_check_branch
          %192 = sbr.rel (%p190) target = $region32
        $region31: #{forward.2} parent=19 // pred_region
          %s193 = sand.u32 %s99, 1
          %s194 = scalar_lea.sflag [#allocation5], %s193
          %s195 = sand.u32 %s99, 1
          %s196 = smul.addr %s195, 2
          %s197 = scalar_lea.vmem [#allocation4], %s196
          %s199 = ssub.s32 32, 32
          %200 = vsyncadd %s194, %s199
          %s201 = smul.addr %s16, 2
          %s202 = smul.addr %s201, 16
          %s203 = scalar_lea.hbm %s3, %s202
          %s205 = sshll.u32 %s197, 4
          %s206 = int_to_ptr.vmem [resolvable:$true] %s205
          %208 = dma.hbm_to_vmem [thread:$0]  %s203, 32, %s206, %s194
        $region32: #{forward.2} parent=19 // pred_fallthru
          _
      $region20: #{forward.2} parent=5 // pred_fallthru
        _
      %p209 = scmp.le.s32.totalorder 1, %s16
      %p210 = scmp.lt.s32.totalorder %s16, 9
      %p211 = pnand %p209, %p210
      %p212 = pneg %p211
      // Predicated region
      $region33: #{forward.2} parent=5 // pred_check
        _
      $region34: #{forward.2} parent=5 // pred_check_branch
        %214 = sbr.rel (%p211) target = $region36
      $region35: #{forward.2} parent=5 // pred_region
        %s215 = ssub.s32 %s16, 1
        %s216 = sand.u32 %s76, 1
        %s217 = scalar_lea.sflag [#allocation3], %s216
        %s218 = sand.u32 %s76, 1
        %s219 = smul.addr %s218, 2
        %s220 = scalar_lea.vmem [#allocation2], %s219
        // Predicated region
        $region37: #{forward.2} parent=35 // pred_check
          %p221 = pneg %p89
        $region38: #{forward.2} parent=35 // pred_check_branch
          %223 = sbr.rel (%p221) target = $region40
        $region39: #{forward.2} parent=35 // pred_region
          %224 = dma.done %s217, 32
        $region40: #{forward.2} parent=35 // pred_fallthru
          _
        %s225 = sand.u32 %s102, 1
        %s226 = scalar_lea.sflag [#allocation5], %s225
        %s227 = sand.u32 %s102, 1
        %s228 = smul.addr %s227, 2
        %s229 = scalar_lea.vmem [#allocation4], %s228
        // Predicated region
        $region41: #{forward.2} parent=35 // pred_check
          %p230 = pneg %p115
        $region42: #{forward.2} parent=35 // pred_check_branch
          %232 = sbr.rel (%p230) target = $region44
        $region43: #{forward.2} parent=35 // pred_region
          %233 = dma.done %s226, 32
        $region44: #{forward.2} parent=35 // pred_fallthru
          _
        %p234 = pneg %p37
        %p235 = pneg %p34
        %p236 = scmp.lt.s32.totalorder %s21, 7
        %s237 = scalar_select %p236, %s21, 7
        %s238 = smul.addr %s237, 168
        %s239 = smul.addr %s238, 4
        %s240 = scalar_lea.vmem %s1, %s239
        %p241 = pneg %p63
        %p242 = pneg %p60
        %s243 = sand.u32 %s76, 1
        %s244 = scalar_lea.sflag [#allocation3], %s243
        %s245 = sand.u32 %s76, 1
        %s246 = smul.addr %s245, 2
        %s247 = scalar_lea.vmem [#allocation2], %s246
        %p248 = pneg %p89
        %p249 = pneg %p86
        %s250 = sand.u32 %s102, 1
        %s251 = scalar_lea.sflag [#allocation5], %s250
        %s252 = sand.u32 %s102, 1
        %s253 = smul.addr %s252, 2
        %s254 = scalar_lea.vmem [#allocation4], %s253
        %p255 = pneg %p115
        %p256 = pneg %p112
        %p257 = pneg %p141
        %p258 = pneg %p138
        %p259 = scmp.lt.s32.totalorder %s21, 7
        %s260 = scalar_select %p259, %s21, 7
        %s261 = smul.addr %s260, 64
        %s262 = smul.addr %s261, 4
        %s263 = scalar_lea.vmem %s4, %s262
        %p264 = scmp.lt.s32.totalorder %s21, 7
        %s265 = scalar_select %p264, %s21, 7
        %s266 = smul.addr %s265, 168
        %s267 = smul.addr %s266, 4
        %s268 = scalar_lea.vmem %s1, %s267
        %p269 = scmp.lt.s32.totalorder %s21, 7
        %s270 = scalar_select %p269, %s21, 7
        %s271 = smul.addr %s270, 64
        %s272 = smul.addr %s271, 4
        %s273 = scalar_lea.vmem %s4, %s272
        %v275 = vld [vmem:[%s0] sm:$0xff]
        %v276 = vld [vmem:[%s0 + $0x8] sm:$0xff]
        %v277 = vld [vmem:[%s0 + $0x10] sm:$0xff]
        %v278 = vld [vmem:[%s0 + $0x18] sm:$0xff]
        %v279 = vld [vmem:[%s0 + $0x20] sm:$0xff]
        %v280 = vld [vmem:[%s0 + $0x28] sm:$0xff]
        %v281 = vld [vmem:[%s0 + $0x30] sm:$0xff]
        %v282 = vld [vmem:[%s0 + $0x38] sm:$0xff]
        %v283 = vld [vmem:[%s0 + $0x40] sm:$0xff]
        %v284 = vld [vmem:[%s0 + $0x48] sm:$0xff]
        %v285 = vld [vmem:[%s0 + $0x50] sm:$0xff]
        %v286 = vld [vmem:[%s0 + $0x58] sm:$0xff]
        %v287 = vld [vmem:[%s0 + $0x60] sm:$0xff]
        %v288 = vld [vmem:[%s0 + $0x68] sm:$0xff]
        %v289 = vld [vmem:[%s0 + $0x70] sm:$0xff]
        %v290 = vld [vmem:[%s0 + $0x78] sm:$0xff]
        %v291 = vld [vmem:[%s0 + $0x80] sm:$0xff]
        %v292 = vld [vmem:[%s0 + $0x88] sm:$0xff]
        %v293 = vld [vmem:[%s0 + $0x90] sm:$0xff]
        %v294 = vld [vmem:[%s0 + $0x98] sm:$0xff]
        %v295 = vld [vmem:[%s0 + $0xa0] sm:$0xff]
        %v296 = vld [vmem:[%s0 + $0xa8] sm:$0xff]
        %v297 = vld [vmem:[%s0 + $0xb0] sm:$0xff]
        %v298 = vld [vmem:[%s0 + $0xb8] sm:$0xff]
        %v299 = vld [vmem:[%s0 + $0xc0] sm:$0xff]
        %v300 = vld [vmem:[%s0 + $0xc8] sm:$0xff]
        %v301 = vld [vmem:[%s0 + $0xd0] sm:$0xff]
        %v302 = vld [vmem:[%s0 + $0xd8] sm:$0xff]
        %v303 = vld [vmem:[%s0 + $0xe0] sm:$0xff]
        %v304 = vld [vmem:[%s0 + $0xe8] sm:$0xff]
        %v305 = vld [vmem:[%s0 + $0xf0] sm:$0xff]
        %v306 = vld [vmem:[%s0 + $0xf8] sm:$0xff]
        %v307 = vld [vmem:[%s0 + $0x100] sm:$0xff]
        %v308 = vld [vmem:[%s0 + $0x108] sm:$0xff]
        %v309 = vld [vmem:[%s0 + $0x110] sm:$0xff]
        %v310 = vld [vmem:[%s0 + $0x118] sm:$0xff]
        %v311 = vld [vmem:[%s0 + $0x120] sm:$0xff]
        %v312 = vld [vmem:[%s0 + $0x128] sm:$0xff]
        %v313 = vld [vmem:[%s0 + $0x130] sm:$0xff]
        %v314 = vld [vmem:[%s0 + $0x138] sm:$0xff]
        %v315 = vld [vmem:[%s0 + $0x140] sm:$0xff]
        %v316 = vld [vmem:[%s0 + $0x148] sm:$0xff]
        %v317 = vld [vmem:[%s0 + $0x150] sm:$0xff]
        %v318 = vld [vmem:[%s0 + $0x158] sm:$0xff]
        %v319 = vld [vmem:[%s0 + $0x160] sm:$0xff]
        %v320 = vld [vmem:[%s0 + $0x168] sm:$0xff]
        %v321 = vld [vmem:[%s0 + $0x170] sm:$0xff]
        %v322 = vld [vmem:[%s0 + $0x178] sm:$0xff]
        %v323 = vld [vmem:[%s0 + $0x180] sm:$0xff]
        %v324 = vld [vmem:[%s0 + $0x188] sm:$0xff]
        %v325 = vld [vmem:[%s0 + $0x190] sm:$0xff]
        %v326 = vld [vmem:[%s0 + $0x198] sm:$0xff]
        %v327 = vld [vmem:[%s0 + $0x1a0] sm:$0xff]
        %v328 = vld [vmem:[%s0 + $0x1a8] sm:$0xff]
        %v329 = vld [vmem:[%s0 + $0x1b0] sm:$0xff]
        %v330 = vld [vmem:[%s0 + $0x1b8] sm:$0xff]
        %v331 = vld [vmem:[%s0 + $0x1c0] sm:$0xff]
        %v332 = vld [vmem:[%s0 + $0x1c8] sm:$0xff]
        %v333 = vld [vmem:[%s0 + $0x1d0] sm:$0xff]
        %v334 = vld [vmem:[%s0 + $0x1d8] sm:$0xff]
        %v335 = vld [vmem:[%s0 + $0x1e0] sm:$0xff]
        %v336 = vld [vmem:[%s0 + $0x1e8] sm:$0xff]
        %v337 = vld [vmem:[%s0 + $0x1f0] sm:$0xff]
        %v338 = vld [vmem:[%s0 + $0x1f8] sm:$0xff]
        %v339 = vld [vmem:[%s0 + $0x200] sm:$0xff]
        %v340 = vld [vmem:[%s0 + $0x208] sm:$0xff]
        %v341 = vld [vmem:[%s0 + $0x210] sm:$0xff]
        %v342 = vld [vmem:[%s0 + $0x218] sm:$0xff]
        %v343 = vld [vmem:[%s0 + $0x220] sm:$0xff]
        %v344 = vld [vmem:[%s0 + $0x228] sm:$0xff]
        %v345 = vld [vmem:[%s0 + $0x230] sm:$0xff]
        %v346 = vld [vmem:[%s0 + $0x238] sm:$0xff]
        %v347 = vld [vmem:[%s0 + $0x240] sm:$0xff]
        %v348 = vld [vmem:[%s0 + $0x248] sm:$0xff]
        %v349 = vld [vmem:[%s0 + $0x250] sm:$0xff]
        %v350 = vld [vmem:[%s0 + $0x258] sm:$0xff]
        %v351 = vld [vmem:[%s0 + $0x260] sm:$0xff]
        %v352 = vld [vmem:[%s0 + $0x268] sm:$0xff]
        %v353 = vld [vmem:[%s0 + $0x270] sm:$0xff]
        %v354 = vld [vmem:[%s0 + $0x278] sm:$0xff]
        %v355 = vld [vmem:[%s0 + $0x280] sm:$0xff]
        %v356 = vld [vmem:[%s0 + $0x288] sm:$0xff]
        %v357 = vld [vmem:[%s0 + $0x290] sm:$0xff]
        %v358 = vld [vmem:[%s0 + $0x298] sm:$0xff]
        %v359 = vld [vmem:[%s0 + $0x2a0] sm:$0xff]
        %v360 = vld [vmem:[%s0 + $0x2a8] sm:$0xff]
        %v361 = vld [vmem:[%s0 + $0x2b0] sm:$0xff]
        %v362 = vld [vmem:[%s0 + $0x2b8] sm:$0xff]
        %v363 = vld [vmem:[%s0 + $0x2c0] sm:$0xff]
        %v364 = vld [vmem:[%s0 + $0x2c8] sm:$0xff]
        %v365 = vld [vmem:[%s0 + $0x2d0] sm:$0xff]
        %v366 = vld [vmem:[%s0 + $0x2d8] sm:$0xff]
        %v367 = vld [vmem:[%s0 + $0x2e0] sm:$0xff]
        %v368 = vld [vmem:[%s0 + $0x2e8] sm:$0xff]
        %v369 = vld [vmem:[%s0 + $0x2f0] sm:$0xff]
        %v370 = vld [vmem:[%s0 + $0x2f8] sm:$0xff]
        %v371 = vld [vmem:[%s268] sm:$0xff]
        %v372 = vld [vmem:[%s268 + $0x8] sm:$0xff]
        %v373 = vld [vmem:[%s268 + $0x10] sm:$0xff]
        %v374 = vld [vmem:[%s268 + $0x18] sm:$0xff]
        %v375 = vld [vmem:[%s268 + $0x20] sm:$0xff]
        %v376 = vld [vmem:[%s268 + $0x28] sm:$0xff]
        %v377 = vld [vmem:[%s268 + $0x30] sm:$0xff]
        %v378 = vld [vmem:[%s268 + $0x38] sm:$0xff]
        %v379 = vld [vmem:[%s268 + $0x40] sm:$0xff]
        %v380 = vld [vmem:[%s268 + $0x48] sm:$0xff]
        %v381 = vld [vmem:[%s268 + $0x50] sm:$0xff]
        %v382 = vld [vmem:[%s268 + $0x58] sm:$0xff]
        %v383 = vld [vmem:[%s268 + $0x60] sm:$0xff]
        %v384 = vld [vmem:[%s268 + $0x68] sm:$0xff]
        %v385 = vld [vmem:[%s268 + $0x70] sm:$0xff]
        %v386 = vld [vmem:[%s268 + $0x78] sm:$0xff]
        %v387 = vld [vmem:[%s268 + $0x80] sm:$0xff]
        %v388 = vld [vmem:[%s268 + $0x88] sm:$0xff]
        %v389 = vld [vmem:[%s268 + $0x90] sm:$0xff]
        %v390 = vld [vmem:[%s268 + $0x98] sm:$0xff]
        %v391 = vld [vmem:[%s268 + $0xa0] sm:$0xff]
        %v392 = vld [vmem:[%s268 + $0xa8] sm:$0xff]
        %v393 = vld [vmem:[%s268 + $0xb0] sm:$0xff]
        %v394 = vld [vmem:[%s268 + $0xb8] sm:$0xff]
        %v395 = vld [vmem:[%s268 + $0xc0] sm:$0xff]
        %v396 = vld [vmem:[%s268 + $0xc8] sm:$0xff]
        %v397 = vld [vmem:[%s268 + $0xd0] sm:$0xff]
        %v398 = vld [vmem:[%s268 + $0xd8] sm:$0xff]
        %v399 = vld [vmem:[%s268 + $0xe0] sm:$0xff]
        %v400 = vld [vmem:[%s268 + $0xe8] sm:$0xff]
        %v401 = vld [vmem:[%s268 + $0xf0] sm:$0xff]
        %v402 = vld [vmem:[%s268 + $0xf8] sm:$0xff]
        %v403 = vld [vmem:[%s268 + $0x100] sm:$0xff]
        %v404 = vld [vmem:[%s268 + $0x108] sm:$0xff]
        %v405 = vld [vmem:[%s268 + $0x110] sm:$0xff]
        %v406 = vld [vmem:[%s268 + $0x118] sm:$0xff]
        %v407 = vld [vmem:[%s268 + $0x120] sm:$0xff]
        %v408 = vld [vmem:[%s268 + $0x128] sm:$0xff]
        %v409 = vld [vmem:[%s268 + $0x130] sm:$0xff]
        %v410 = vld [vmem:[%s268 + $0x138] sm:$0xff]
        %v411 = vld [vmem:[%s268 + $0x140] sm:$0xff]
        %v412 = vld [vmem:[%s268 + $0x148] sm:$0xff]
        %v413 = vld [vmem:[%s268 + $0x150] sm:$0xff]
        %v414 = vld [vmem:[%s268 + $0x158] sm:$0xff]
        %v415 = vld [vmem:[%s268 + $0x160] sm:$0xff]
        %v416 = vld [vmem:[%s268 + $0x168] sm:$0xff]
        %v417 = vld [vmem:[%s268 + $0x170] sm:$0xff]
        %v418 = vld [vmem:[%s268 + $0x178] sm:$0xff]
        %v419 = vld [vmem:[%s268 + $0x180] sm:$0xff]
        %v420 = vld [vmem:[%s268 + $0x188] sm:$0xff]
        %v421 = vld [vmem:[%s268 + $0x190] sm:$0xff]
        %v422 = vld [vmem:[%s268 + $0x198] sm:$0xff]
        %v423 = vld [vmem:[%s268 + $0x1a0] sm:$0xff]
        %v424 = vld [vmem:[%s268 + $0x1a8] sm:$0xff]
        %v425 = vld [vmem:[%s268 + $0x1b0] sm:$0xff]
        %v426 = vld [vmem:[%s268 + $0x1b8] sm:$0xff]
        %v427 = vld [vmem:[%s268 + $0x1c0] sm:$0xff]
        %v428 = vld [vmem:[%s268 + $0x1c8] sm:$0xff]
        %v429 = vld [vmem:[%s268 + $0x1d0] sm:$0xff]
        %v430 = vld [vmem:[%s268 + $0x1d8] sm:$0xff]
        %v431 = vld [vmem:[%s268 + $0x1e0] sm:$0xff]
        %v432 = vld [vmem:[%s268 + $0x1e8] sm:$0xff]
        %v433 = vld [vmem:[%s268 + $0x1f0] sm:$0xff]
        %v434 = vld [vmem:[%s268 + $0x1f8] sm:$0xff]
        %v435 = vld [vmem:[%s268 + $0x200] sm:$0xff]
        %v436 = vld [vmem:[%s268 + $0x208] sm:$0xff]
        %v437 = vld [vmem:[%s268 + $0x210] sm:$0xff]
        %v438 = vld [vmem:[%s268 + $0x218] sm:$0xff]
        %v439 = vld [vmem:[%s268 + $0x220] sm:$0xff]
        %v440 = vld [vmem:[%s268 + $0x228] sm:$0xff]
        %v441 = vld [vmem:[%s268 + $0x230] sm:$0xff]
        %v442 = vld [vmem:[%s268 + $0x238] sm:$0xff]
        %v443 = vld [vmem:[%s268 + $0x240] sm:$0xff]
        %v444 = vld [vmem:[%s268 + $0x248] sm:$0xff]
        %v445 = vld [vmem:[%s268 + $0x250] sm:$0xff]
        %v446 = vld [vmem:[%s268 + $0x258] sm:$0xff]
        %v447 = vld [vmem:[%s268 + $0x260] sm:$0xff]
        %v448 = vld [vmem:[%s268 + $0x268] sm:$0xff]
        %v449 = vld [vmem:[%s268 + $0x270] sm:$0xff]
        %v450 = vld [vmem:[%s268 + $0x278] sm:$0xff]
        %v451 = vld [vmem:[%s268 + $0x280] sm:$0xff]
        %v452 = vld [vmem:[%s268 + $0x288] sm:$0xff]
        %v453 = vld [vmem:[%s268 + $0x290] sm:$0xff]
        %v454 = vld [vmem:[%s268 + $0x298] sm:$0xff]
        %v551 = vunpack.c.l.b16 %v275
        %v552 = vunpack.c.h.b16 %v275
        %v553 = vunpack.c.l.b16 %v276
        %v554 = vunpack.c.h.b16 %v276
        %v555 = vunpack.c.l.b16 %v277
        %v556 = vunpack.c.h.b16 %v277
        %v557 = vunpack.c.l.b16 %v278
        %v558 = vunpack.c.h.b16 %v278
        %v559 = vunpack.c.l.b16 %v279
        %v560 = vunpack.c.h.b16 %v279
        %v561 = vunpack.c.l.b16 %v280
        %v562 = vunpack.c.h.b16 %v280
        %v563 = vunpack.c.l.b16 %v281
        %v564 = vunpack.c.h.b16 %v281
        %v565 = vunpack.c.l.b16 %v282
        %v566 = vunpack.c.h.b16 %v282
        %v567 = vunpack.c.l.b16 %v283
        %v568 = vunpack.c.h.b16 %v283
        %v569 = vunpack.c.l.b16 %v284
        %v570 = vunpack.c.h.b16 %v284
        %v571 = vunpack.c.l.b16 %v285
        %v572 = vunpack.c.h.b16 %v285
        %v573 = vunpack.c.l.b16 %v286
        %v574 = vunpack.c.h.b16 %v286
        %v575 = vunpack.c.l.b16 %v287
        %v576 = vunpack.c.h.b16 %v287
        %v577 = vunpack.c.l.b16 %v288
        %v578 = vunpack.c.h.b16 %v288
        %v579 = vunpack.c.l.b16 %v289
        %v580 = vunpack.c.h.b16 %v289
        %v581 = vunpack.c.l.b16 %v290
        %v582 = vunpack.c.h.b16 %v290
        %v583 = vunpack.c.l.b16 %v291
        %v584 = vunpack.c.h.b16 %v291
        %v585 = vunpack.c.l.b16 %v292
        %v586 = vunpack.c.h.b16 %v292
        %v587 = vunpack.c.l.b16 %v293
        %v588 = vunpack.c.h.b16 %v293
        %v589 = vunpack.c.l.b16 %v294
        %v590 = vunpack.c.h.b16 %v294
        %v591 = vunpack.c.l.b16 %v295
        %v592 = vunpack.c.h.b16 %v295
        %v593 = vunpack.c.l.b16 %v296
        %v594 = vunpack.c.h.b16 %v296
        %v595 = vunpack.c.l.b16 %v297
        %v596 = vunpack.c.h.b16 %v297
        %v597 = vunpack.c.l.b16 %v298
        %v598 = vunpack.c.h.b16 %v298
        %v599 = vunpack.c.l.b16 %v299
        %v600 = vunpack.c.h.b16 %v299
        %v601 = vunpack.c.l.b16 %v300
        %v602 = vunpack.c.h.b16 %v300
        %v603 = vunpack.c.l.b16 %v301
        %v604 = vunpack.c.h.b16 %v301
        %v605 = vunpack.c.l.b16 %v302
        %v606 = vunpack.c.h.b16 %v302
        %v607 = vunpack.c.l.b16 %v303
        %v608 = vunpack.c.h.b16 %v303
        %v609 = vunpack.c.l.b16 %v304
        %v610 = vunpack.c.h.b16 %v304
        %v611 = vunpack.c.l.b16 %v305
        %v612 = vunpack.c.h.b16 %v305
        %v613 = vunpack.c.l.b16 %v306
        %v614 = vunpack.c.h.b16 %v306
        %v615 = vunpack.c.l.b16 %v307
        %v616 = vunpack.c.h.b16 %v307
        %v617 = vunpack.c.l.b16 %v308
        %v618 = vunpack.c.h.b16 %v308
        %v619 = vunpack.c.l.b16 %v309
        %v620 = vunpack.c.h.b16 %v309
        %v621 = vunpack.c.l.b16 %v310
        %v622 = vunpack.c.h.b16 %v310
        %v623 = vunpack.c.l.b16 %v311
        %v624 = vunpack.c.h.b16 %v311
        %v625 = vunpack.c.l.b16 %v312
        %v626 = vunpack.c.h.b16 %v312
        %v627 = vunpack.c.l.b16 %v313
        %v628 = vunpack.c.h.b16 %v313
        %v629 = vunpack.c.l.b16 %v314
        %v630 = vunpack.c.h.b16 %v314
        %v631 = vunpack.c.l.b16 %v315
        %v632 = vunpack.c.h.b16 %v315
        %v633 = vunpack.c.l.b16 %v316
        %v634 = vunpack.c.h.b16 %v316
        %v635 = vunpack.c.l.b16 %v317
        %v636 = vunpack.c.h.b16 %v317
        %v637 = vunpack.c.l.b16 %v318
        %v638 = vunpack.c.h.b16 %v318
        %v639 = vunpack.c.l.b16 %v319
        %v640 = vunpack.c.h.b16 %v319
        %v641 = vunpack.c.l.b16 %v320
        %v642 = vunpack.c.h.b16 %v320
        %v643 = vunpack.c.l.b16 %v321
        %v644 = vunpack.c.h.b16 %v321
        %v645 = vunpack.c.l.b16 %v322
        %v646 = vunpack.c.h.b16 %v322
        %v647 = vunpack.c.l.b16 %v323
        %v648 = vunpack.c.h.b16 %v323
        %v649 = vunpack.c.l.b16 %v324
        %v650 = vunpack.c.h.b16 %v324
        %v651 = vunpack.c.l.b16 %v325
        %v652 = vunpack.c.h.b16 %v325
        %v653 = vunpack.c.l.b16 %v326
        %v654 = vunpack.c.h.b16 %v326
        %v655 = vunpack.c.l.b16 %v327
        %v656 = vunpack.c.h.b16 %v327
        %v657 = vunpack.c.l.b16 %v328
        %v658 = vunpack.c.h.b16 %v328
        %v659 = vunpack.c.l.b16 %v329
        %v660 = vunpack.c.h.b16 %v329
        %v661 = vunpack.c.l.b16 %v330
        %v662 = vunpack.c.h.b16 %v330
        %v663 = vunpack.c.l.b16 %v331
        %v664 = vunpack.c.h.b16 %v331
        %v665 = vunpack.c.l.b16 %v332
        %v666 = vunpack.c.h.b16 %v332
        %v667 = vunpack.c.l.b16 %v333
        %v668 = vunpack.c.h.b16 %v333
        %v669 = vunpack.c.l.b16 %v334
        %v670 = vunpack.c.h.b16 %v334
        %v671 = vunpack.c.l.b16 %v335
        %v672 = vunpack.c.h.b16 %v335
        %v673 = vunpack.c.l.b16 %v336
        %v674 = vunpack.c.h.b16 %v336
        %v675 = vunpack.c.l.b16 %v337
        %v676 = vunpack.c.h.b16 %v337
        %v677 = vunpack.c.l.b16 %v338
        %v678 = vunpack.c.h.b16 %v338
        %v679 = vunpack.c.l.b16 %v339
        %v680 = vunpack.c.h.b16 %v339
        %v681 = vunpack.c.l.b16 %v340
        %v682 = vunpack.c.h.b16 %v340
        %v683 = vunpack.c.l.b16 %v341
        %v684 = vunpack.c.h.b16 %v341
        %v685 = vunpack.c.l.b16 %v342
        %v686 = vunpack.c.h.b16 %v342
        %v687 = vunpack.c.l.b16 %v343
        %v688 = vunpack.c.h.b16 %v343
        %v689 = vunpack.c.l.b16 %v344
        %v690 = vunpack.c.h.b16 %v344
        %v691 = vunpack.c.l.b16 %v345
        %v692 = vunpack.c.h.b16 %v345
        %v693 = vunpack.c.l.b16 %v346
        %v694 = vunpack.c.h.b16 %v346
        %v695 = vunpack.c.l.b16 %v347
        %v696 = vunpack.c.h.b16 %v347
        %v697 = vunpack.c.l.b16 %v348
        %v698 = vunpack.c.h.b16 %v348
        %v699 = vunpack.c.l.b16 %v349
        %v700 = vunpack.c.h.b16 %v349
        %v701 = vunpack.c.l.b16 %v350
        %v702 = vunpack.c.h.b16 %v350
        %v703 = vunpack.c.l.b16 %v351
        %v704 = vunpack.c.h.b16 %v351
        %v705 = vunpack.c.l.b16 %v352
        %v706 = vunpack.c.h.b16 %v352
        %v707 = vunpack.c.l.b16 %v353
        %v708 = vunpack.c.h.b16 %v353
        %v709 = vunpack.c.l.b16 %v354
        %v710 = vunpack.c.h.b16 %v354
        %v711 = vunpack.c.l.b16 %v355
        %v712 = vunpack.c.h.b16 %v355
        %v713 = vunpack.c.l.b16 %v356
        %v714 = vunpack.c.h.b16 %v356
        %v715 = vunpack.c.l.b16 %v357
        %v716 = vunpack.c.h.b16 %v357
        %v717 = vunpack.c.l.b16 %v358
        %v718 = vunpack.c.h.b16 %v358
        %v719 = vunpack.c.l.b16 %v359
        %v720 = vunpack.c.h.b16 %v359
        %v721 = vunpack.c.l.b16 %v360
        %v722 = vunpack.c.h.b16 %v360
        %v723 = vunpack.c.l.b16 %v361
        %v724 = vunpack.c.h.b16 %v361
        %v725 = vunpack.c.l.b16 %v362
        %v726 = vunpack.c.h.b16 %v362
        %v727 = vunpack.c.l.b16 %v363
        %v728 = vunpack.c.h.b16 %v363
        %v729 = vunpack.c.l.b16 %v364
        %v730 = vunpack.c.h.b16 %v364
        %v731 = vunpack.c.l.b16 %v365
        %v732 = vunpack.c.h.b16 %v365
        %v733 = vunpack.c.l.b16 %v366
        %v734 = vunpack.c.h.b16 %v366
        %v735 = vunpack.c.l.b16 %v367
        %v736 = vunpack.c.h.b16 %v367
        %v737 = vunpack.c.l.b16 %v368
        %v738 = vunpack.c.h.b16 %v368
        %v739 = vunpack.c.l.b16 %v369
        %v740 = vunpack.c.h.b16 %v369
        %v741 = vunpack.c.l.b16 %v370
        %v742 = vunpack.c.h.b16 %v370
        %v743 = vpack.c.b16 %v557, %v551
        %v744 = vpack.c.b16 %v558, %v552
        %v745 = vpack.c.b16 %v559, %v553
        %v746 = vpack.c.b16 %v560, %v554
        %v747 = vpack.c.b16 %v561, %v555
        %v748 = vpack.c.b16 %v562, %v556
        %v749 = vpack.c.b16 %v569, %v563
        %v750 = vpack.c.b16 %v570, %v564
        %v751 = vpack.c.b16 %v571, %v565
        %v752 = vpack.c.b16 %v572, %v566
        %v753 = vpack.c.b16 %v573, %v567
        %v754 = vpack.c.b16 %v574, %v568
        %v755 = vpack.c.b16 %v581, %v575
        %v756 = vpack.c.b16 %v582, %v576
        %v757 = vpack.c.b16 %v583, %v577
        %v758 = vpack.c.b16 %v584, %v578
        %v759 = vpack.c.b16 %v585, %v579
        %v760 = vpack.c.b16 %v586, %v580
        %v761 = vpack.c.b16 %v593, %v587
        %v762 = vpack.c.b16 %v594, %v588
        %v763 = vpack.c.b16 %v595, %v589
        %v764 = vpack.c.b16 %v596, %v590
        %v765 = vpack.c.b16 %v597, %v591
        %v766 = vpack.c.b16 %v598, %v592
        %v767 = vpack.c.b16 %v605, %v599
        %v768 = vpack.c.b16 %v606, %v600
        %v769 = vpack.c.b16 %v607, %v601
        %v770 = vpack.c.b16 %v608, %v602
        %v771 = vpack.c.b16 %v609, %v603
        %v772 = vpack.c.b16 %v610, %v604
        %v773 = vpack.c.b16 %v617, %v611
        %v774 = vpack.c.b16 %v618, %v612
        %v775 = vpack.c.b16 %v619, %v613
        %v776 = vpack.c.b16 %v620, %v614
        %v777 = vpack.c.b16 %v621, %v615
        %v778 = vpack.c.b16 %v622, %v616
        %v779 = vpack.c.b16 %v629, %v623
        %v780 = vpack.c.b16 %v630, %v624
        %v781 = vpack.c.b16 %v631, %v625
        %v782 = vpack.c.b16 %v632, %v626
        %v783 = vpack.c.b16 %v633, %v627
        %v784 = vpack.c.b16 %v634, %v628
        %v785 = vpack.c.b16 %v641, %v635
        %v786 = vpack.c.b16 %v642, %v636
        %v787 = vpack.c.b16 %v643, %v637
        %v788 = vpack.c.b16 %v644, %v638
        %v789 = vpack.c.b16 %v645, %v639
        %v790 = vpack.c.b16 %v646, %v640
        %v791 = vpack.c.b16 %v653, %v647
        %v792 = vpack.c.b16 %v654, %v648
        %v793 = vpack.c.b16 %v655, %v649
        %v794 = vpack.c.b16 %v656, %v650
        %v795 = vpack.c.b16 %v657, %v651
        %v796 = vpack.c.b16 %v658, %v652
        %v797 = vpack.c.b16 %v665, %v659
        %v798 = vpack.c.b16 %v666, %v660
        %v799 = vpack.c.b16 %v667, %v661
        %v800 = vpack.c.b16 %v668, %v662
        %v801 = vpack.c.b16 %v669, %v663
        %v802 = vpack.c.b16 %v670, %v664
        %v803 = vpack.c.b16 %v677, %v671
        %v804 = vpack.c.b16 %v678, %v672
        %v805 = vpack.c.b16 %v679, %v673
        %v806 = vpack.c.b16 %v680, %v674
        %v807 = vpack.c.b16 %v681, %v675
        %v808 = vpack.c.b16 %v682, %v676
        %v809 = vpack.c.b16 %v689, %v683
        %v810 = vpack.c.b16 %v690, %v684
        %v811 = vpack.c.b16 %v691, %v685
        %v812 = vpack.c.b16 %v692, %v686
        %v813 = vpack.c.b16 %v693, %v687
        %v814 = vpack.c.b16 %v694, %v688
        %v815 = vpack.c.b16 %v701, %v695
        %v816 = vpack.c.b16 %v702, %v696
        %v817 = vpack.c.b16 %v703, %v697
        %v818 = vpack.c.b16 %v704, %v698
        %v819 = vpack.c.b16 %v705, %v699
        %v820 = vpack.c.b16 %v706, %v700
        %v821 = vpack.c.b16 %v713, %v707
        %v822 = vpack.c.b16 %v714, %v708
        %v823 = vpack.c.b16 %v715, %v709
        %v824 = vpack.c.b16 %v716, %v710
        %v825 = vpack.c.b16 %v717, %v711
        %v826 = vpack.c.b16 %v718, %v712
        %v827 = vpack.c.b16 %v725, %v719
        %v828 = vpack.c.b16 %v726, %v720
        %v829 = vpack.c.b16 %v727, %v721
        %v830 = vpack.c.b16 %v728, %v722
        %v831 = vpack.c.b16 %v729, %v723
        %v832 = vpack.c.b16 %v730, %v724
        %v833 = vpack.c.b16 %v737, %v731
        %v834 = vpack.c.b16 %v738, %v732
        %v835 = vpack.c.b16 %v739, %v733
        %v836 = vpack.c.b16 %v740, %v734
        %v837 = vpack.c.b16 %v741, %v735
        %v838 = vpack.c.b16 %v742, %v736
        %v1003 = vunpack.c.l.b16 %v371
        %v1004 = vunpack.c.h.b16 %v371
        %v1005 = vunpack.c.l.b16 %v372
        %v1006 = vunpack.c.h.b16 %v372
        %v1007 = vunpack.c.l.b16 %v373
        %v1008 = vunpack.c.h.b16 %v373
        %v1009 = vunpack.c.l.b16 %v374
        %v1010 = vunpack.c.h.b16 %v374
        %v1011 = vunpack.c.l.b16 %v375
        %v1012 = vunpack.c.h.b16 %v375
        %v1013 = vunpack.c.l.b16 %v376
        %v1014 = vunpack.c.h.b16 %v376
        %v1015 = vunpack.c.l.b16 %v377
        %v1016 = vunpack.c.h.b16 %v377
        %v1017 = vunpack.c.l.b16 %v378
        %v1018 = vunpack.c.h.b16 %v378
        %v1019 = vunpack.c.l.b16 %v379
        %v1020 = vunpack.c.h.b16 %v379
        %v1021 = vunpack.c.l.b16 %v380
        %v1022 = vunpack.c.h.b16 %v380
        %v1023 = vunpack.c.l.b16 %v381
        %v1024 = vunpack.c.h.b16 %v381
        %v1025 = vunpack.c.l.b16 %v382
        %v1026 = vunpack.c.h.b16 %v382
        %v1027 = vunpack.c.l.b16 %v383
        %v1028 = vunpack.c.h.b16 %v383
        %v1029 = vunpack.c.l.b16 %v384
        %v1030 = vunpack.c.h.b16 %v384
        %v1031 = vunpack.c.l.b16 %v385
        %v1032 = vunpack.c.h.b16 %v385
        %v1033 = vunpack.c.l.b16 %v386
        %v1034 = vunpack.c.h.b16 %v386
        %v1035 = vunpack.c.l.b16 %v387
        %v1036 = vunpack.c.h.b16 %v387
        %v1037 = vunpack.c.l.b16 %v388
        %v1038 = vunpack.c.h.b16 %v388
        %v1039 = vunpack.c.l.b16 %v389
        %v1040 = vunpack.c.h.b16 %v389
        %v1041 = vunpack.c.l.b16 %v390
        %v1042 = vunpack.c.h.b16 %v390
        %v1043 = vunpack.c.l.b16 %v391
        %v1044 = vunpack.c.h.b16 %v391
        %v1045 = vunpack.c.l.b16 %v392
        %v1046 = vunpack.c.h.b16 %v392
        %v1047 = vunpack.c.l.b16 %v393
        %v1048 = vunpack.c.h.b16 %v393
        %v1049 = vunpack.c.l.b16 %v394
        %v1050 = vunpack.c.h.b16 %v394
        %v1051 = vunpack.c.l.b16 %v395
        %v1052 = vunpack.c.h.b16 %v395
        %v1053 = vunpack.c.l.b16 %v396
        %v1054 = vunpack.c.h.b16 %v396
        %v1055 = vunpack.c.l.b16 %v397
        %v1056 = vunpack.c.h.b16 %v397
        %v1057 = vunpack.c.l.b16 %v398
        %v1058 = vunpack.c.h.b16 %v398
        %v1059 = vunpack.c.l.b16 %v399
        %v1060 = vunpack.c.h.b16 %v399
        %v1061 = vunpack.c.l.b16 %v400
        %v1062 = vunpack.c.h.b16 %v400
        %v1063 = vunpack.c.l.b16 %v401
        %v1064 = vunpack.c.h.b16 %v401
        %v1065 = vunpack.c.l.b16 %v402
        %v1066 = vunpack.c.h.b16 %v402
        %v1067 = vunpack.c.l.b16 %v403
        %v1068 = vunpack.c.h.b16 %v403
        %v1069 = vunpack.c.l.b16 %v404
        %v1070 = vunpack.c.h.b16 %v404
        %v1071 = vunpack.c.l.b16 %v405
        %v1072 = vunpack.c.h.b16 %v405
        %v1073 = vunpack.c.l.b16 %v406
        %v1074 = vunpack.c.h.b16 %v406
        %v1075 = vunpack.c.l.b16 %v407
        %v1076 = vunpack.c.h.b16 %v407
        %v1077 = vunpack.c.l.b16 %v408
        %v1078 = vunpack.c.h.b16 %v408
        %v1079 = vunpack.c.l.b16 %v409
        %v1080 = vunpack.c.h.b16 %v409
        %v1081 = vunpack.c.l.b16 %v410
        %v1082 = vunpack.c.h.b16 %v410
        %v1083 = vunpack.c.l.b16 %v411
        %v1084 = vunpack.c.h.b16 %v411
        %v1085 = vunpack.c.l.b16 %v412
        %v1086 = vunpack.c.h.b16 %v412
        %v1087 = vunpack.c.l.b16 %v413
        %v1088 = vunpack.c.h.b16 %v413
        %v1089 = vunpack.c.l.b16 %v414
        %v1090 = vunpack.c.h.b16 %v414
        %v1091 = vunpack.c.l.b16 %v415
        %v1092 = vunpack.c.h.b16 %v415
        %v1093 = vunpack.c.l.b16 %v416
        %v1094 = vunpack.c.h.b16 %v416
        %v1095 = vunpack.c.l.b16 %v417
        %v1096 = vunpack.c.h.b16 %v417
        %v1097 = vunpack.c.l.b16 %v418
        %v1098 = vunpack.c.h.b16 %v418
        %v1099 = vunpack.c.l.b16 %v419
        %v1100 = vunpack.c.h.b16 %v419
        %v1101 = vunpack.c.l.b16 %v420
        %v1102 = vunpack.c.h.b16 %v420
        %v1103 = vunpack.c.l.b16 %v421
        %v1104 = vunpack.c.h.b16 %v421
        %v1105 = vunpack.c.l.b16 %v422
        %v1106 = vunpack.c.h.b16 %v422
        %v1107 = vunpack.c.l.b16 %v423
        %v1108 = vunpack.c.h.b16 %v423
        %v1109 = vunpack.c.l.b16 %v424
        %v1110 = vunpack.c.h.b16 %v424
        %v1111 = vunpack.c.l.b16 %v425
        %v1112 = vunpack.c.h.b16 %v425
        %v1113 = vunpack.c.l.b16 %v426
        %v1114 = vunpack.c.h.b16 %v426
        %v1115 = vunpack.c.l.b16 %v427
        %v1116 = vunpack.c.h.b16 %v427
        %v1117 = vunpack.c.l.b16 %v428
        %v1118 = vunpack.c.h.b16 %v428
        %v1119 = vunpack.c.l.b16 %v429
        %v1120 = vunpack.c.h.b16 %v429
        %v1121 = vunpack.c.l.b16 %v430
        %v1122 = vunpack.c.h.b16 %v430
        %v1123 = vunpack.c.l.b16 %v431
        %v1124 = vunpack.c.h.b16 %v431
        %v1125 = vunpack.c.l.b16 %v432
        %v1126 = vunpack.c.h.b16 %v432
        %v1127 = vunpack.c.l.b16 %v433
        %v1128 = vunpack.c.h.b16 %v433
        %v1129 = vunpack.c.l.b16 %v434
        %v1130 = vunpack.c.h.b16 %v434
        %v1131 = vunpack.c.l.b16 %v435
        %v1132 = vunpack.c.h.b16 %v435
        %v1133 = vunpack.c.l.b16 %v436
        %v1134 = vunpack.c.h.b16 %v436
        %v1135 = vunpack.c.l.b16 %v437
        %v1136 = vunpack.c.h.b16 %v437
        %v1137 = vunpack.c.l.b16 %v438
        %v1138 = vunpack.c.h.b16 %v438
        %v1139 = vunpack.c.l.b16 %v439
        %v1140 = vunpack.c.h.b16 %v439
        %v1141 = vunpack.c.l.b16 %v440
        %v1142 = vunpack.c.h.b16 %v440
        %v1143 = vunpack.c.l.b16 %v441
        %v1144 = vunpack.c.h.b16 %v441
        %v1145 = vunpack.c.l.b16 %v442
        %v1146 = vunpack.c.h.b16 %v442
        %v1147 = vunpack.c.l.b16 %v443
        %v1148 = vunpack.c.h.b16 %v443
        %v1149 = vunpack.c.l.b16 %v444
        %v1150 = vunpack.c.h.b16 %v444
        %v1151 = vunpack.c.l.b16 %v445
        %v1152 = vunpack.c.h.b16 %v445
        %v1153 = vunpack.c.l.b16 %v446
        %v1154 = vunpack.c.h.b16 %v446
        %v1155 = vunpack.c.l.b16 %v447
        %v1156 = vunpack.c.h.b16 %v447
        %v1157 = vunpack.c.l.b16 %v448
        %v1158 = vunpack.c.h.b16 %v448
        %v1159 = vunpack.c.l.b16 %v449
        %v1160 = vunpack.c.h.b16 %v449
        %v1161 = vunpack.c.l.b16 %v450
        %v1162 = vunpack.c.h.b16 %v450
        %v1163 = vunpack.c.l.b16 %v451
        %v1164 = vunpack.c.h.b16 %v451
        %v1165 = vunpack.c.l.b16 %v452
        %v1166 = vunpack.c.h.b16 %v452
        %v1167 = vunpack.c.l.b16 %v453
        %v1168 = vunpack.c.h.b16 %v453
        %v1169 = vunpack.c.l.b16 %v454
        %v1170 = vunpack.c.h.b16 %v454
        %v1171 = vpack.c.b16 %v1005, %v1003
        %v1172 = vpack.c.b16 %v1006, %v1004
        %v1173 = vpack.c.b16 %v1009, %v1007
        %v1174 = vpack.c.b16 %v1010, %v1008
        %v1175 = vpack.c.b16 %v1013, %v1011
        %v1176 = vpack.c.b16 %v1014, %v1012
        %v1177 = vpack.c.b16 %v1017, %v1015
        %v1178 = vpack.c.b16 %v1018, %v1016
        %v1179 = vpack.c.b16 %v1021, %v1019
        %v1180 = vpack.c.b16 %v1022, %v1020
        %v1181 = vpack.c.b16 %v1025, %v1023
        %v1182 = vpack.c.b16 %v1026, %v1024
        %v1183 = vpack.c.b16 %v1029, %v1027
        %v1184 = vpack.c.b16 %v1030, %v1028
        %v1185 = vpack.c.b16 %v1033, %v1031
        %v1186 = vpack.c.b16 %v1034, %v1032
        %v1187 = vpack.c.b16 %v1037, %v1035
        %v1188 = vpack.c.b16 %v1038, %v1036
        %v1189 = vpack.c.b16 %v1041, %v1039
        %v1190 = vpack.c.b16 %v1042, %v1040
        %v1191 = vpack.c.b16 %v1045, %v1043
        %v1192 = vpack.c.b16 %v1046, %v1044
        %v1193 = vpack.c.b16 %v1049, %v1047
        %v1194 = vpack.c.b16 %v1050, %v1048
        %v1195 = vpack.c.b16 %v1053, %v1051
        %v1196 = vpack.c.b16 %v1054, %v1052
        %v1197 = vpack.c.b16 %v1057, %v1055
        %v1198 = vpack.c.b16 %v1058, %v1056
        %v1199 = vpack.c.b16 %v1061, %v1059
        %v1200 = vpack.c.b16 %v1062, %v1060
        %v1201 = vpack.c.b16 %v1065, %v1063
        %v1202 = vpack.c.b16 %v1066, %v1064
        %v1203 = vpack.c.b16 %v1069, %v1067
        %v1204 = vpack.c.b16 %v1070, %v1068
        %v1205 = vpack.c.b16 %v1073, %v1071
        %v1206 = vpack.c.b16 %v1074, %v1072
        %v1207 = vpack.c.b16 %v1077, %v1075
        %v1208 = vpack.c.b16 %v1078, %v1076
        %v1209 = vpack.c.b16 %v1081, %v1079
        %v1210 = vpack.c.b16 %v1082, %v1080
        %v1211 = vpack.c.b16 %v1085, %v1083
        %v1212 = vpack.c.b16 %v1086, %v1084
        %v1213 = vpack.c.b16 %v1089, %v1087
        %v1214 = vpack.c.b16 %v1090, %v1088
        %v1215 = vpack.c.b16 %v1093, %v1091
        %v1216 = vpack.c.b16 %v1094, %v1092
        %v1217 = vpack.c.b16 %v1097, %v1095
        %v1218 = vpack.c.b16 %v1098, %v1096
        %v1219 = vpack.c.b16 %v1101, %v1099
        %v1220 = vpack.c.b16 %v1102, %v1100
        %v1221 = vpack.c.b16 %v1105, %v1103
        %v1222 = vpack.c.b16 %v1106, %v1104
        %v1223 = vpack.c.b16 %v1109, %v1107
        %v1224 = vpack.c.b16 %v1110, %v1108
        %v1225 = vpack.c.b16 %v1113, %v1111
        %v1226 = vpack.c.b16 %v1114, %v1112
        %v1227 = vpack.c.b16 %v1117, %v1115
        %v1228 = vpack.c.b16 %v1118, %v1116
        %v1229 = vpack.c.b16 %v1121, %v1119
        %v1230 = vpack.c.b16 %v1122, %v1120
        %v1231 = vpack.c.b16 %v1125, %v1123
        %v1232 = vpack.c.b16 %v1126, %v1124
        %v1233 = vpack.c.b16 %v1129, %v1127
        %v1234 = vpack.c.b16 %v1130, %v1128
        %v1235 = vpack.c.b16 %v1133, %v1131
        %v1236 = vpack.c.b16 %v1134, %v1132
        %v1237 = vpack.c.b16 %v1137, %v1135
        %v1238 = vpack.c.b16 %v1138, %v1136
        %v1239 = vpack.c.b16 %v1141, %v1139
        %v1240 = vpack.c.b16 %v1142, %v1140
        %v1241 = vpack.c.b16 %v1145, %v1143
        %v1242 = vpack.c.b16 %v1146, %v1144
        %v1243 = vpack.c.b16 %v1149, %v1147
        %v1244 = vpack.c.b16 %v1150, %v1148
        %v1245 = vpack.c.b16 %v1153, %v1151
        %v1246 = vpack.c.b16 %v1154, %v1152
        %v1247 = vpack.c.b16 %v1157, %v1155
        %v1248 = vpack.c.b16 %v1158, %v1156
        %v1249 = vpack.c.b16 %v1161, %v1159
        %v1250 = vpack.c.b16 %v1162, %v1160
        %v1251 = vpack.c.b16 %v1165, %v1163
        %v1252 = vpack.c.b16 %v1166, %v1164
        %v1253 = vpack.c.b16 %v1169, %v1167
        %v1254 = vpack.c.b16 %v1170, %v1168
        %vm1339 = vcmask 261120
        %v1341 = vsel %vm1339, %v748, 0
        %v1344 = vsel %vm1339, %v754, 0
        %v1347 = vsel %vm1339, %v760, 0
        %v1350 = vsel %vm1339, %v766, 0
        %v1353 = vsel %vm1339, %v772, 0
        %v1356 = vsel %vm1339, %v778, 0
        %v1359 = vsel %vm1339, %v784, 0
        %v1362 = vsel %vm1339, %v790, 0
        %v1365 = vsel %vm1339, %v796, 0
        %v1368 = vsel %vm1339, %v802, 0
        %v1371 = vsel %vm1339, %v808, 0
        %v1374 = vsel %vm1339, %v814, 0
        %v1377 = vsel %vm1339, %v820, 0
        %v1380 = vsel %vm1339, %v826, 0
        %v1383 = vsel %vm1339, %v832, 0
        %v1386 = vsel %vm1339, %v838, 0
        %1388 = vmatprep.subr.bf16.mxu0 %v1172
        %1389 = vmatpush1.bf16.msra.mxu0 %v1171
        %1390 = vmatprep.subr.bf16.mxu0 %v1174
        %1391 = vmatpush1.bf16.msra.mxu0 %v1173
        %1392 = vmatprep.subr.bf16.mxu0 %v1176
        %1393 = vmatpush1.bf16.msra.mxu0 %v1175
        %1394 = vmatprep.subr.bf16.mxu0 %v1178
        %1395 = vmatpush1.bf16.msra.mxu0 %v1177
        %1396 = vmatprep.subr.bf16.mxu0 %v1180
        %1397 = vmatpush1.bf16.msra.mxu0 %v1179
        %1398 = vmatprep.subr.bf16.mxu0 %v1182
        %1399 = vmatpush1.bf16.msra.mxu0 %v1181
        %1400 = vmatprep.subr.bf16.mxu0 %v1184
        %1401 = vmatpush1.bf16.msra.mxu0 %v1183
        %1402 = vmatprep.subr.bf16.mxu0 %v1186
        %1403 = vmatpush1.bf16.msra.mxu0 %v1185
        %1404 = vmatprep.subr.bf16.mxu0 %v1188
        %1405 = vmatpush1.bf16.msra.mxu0 %v1187
        %1406 = vmatprep.subr.bf16.mxu0 %v1190
        %1407 = vmatpush1.bf16.msra.mxu0 %v1189
        %1408 = vmatprep.subr.bf16.mxu0 %v1192
        %1409 = vmatpush1.bf16.msra.mxu0 %v1191
        %1410 = vmatprep.subr.bf16.mxu0 %v1194
        %1411 = vmatpush1.bf16.msra.mxu0 %v1193
        %1412 = vmatprep.subr.bf16.mxu0 %v1196
        %1413 = vmatpush1.bf16.msra.mxu0 %v1195
        %1414 = vmatprep.subr.bf16.mxu0 %v1198
        %1415 = vmatpush1.bf16.msra.mxu0 %v1197
        %1416 = vmatprep.subr.bf16.mxu0 %v1200
        %1417 = vmatpush1.bf16.msra.mxu0 %v1199
        %1418 = vmatprep.subr.bf16.mxu0 %v1202
        %1419 = vmatpush1.bf16.msra.mxu0 %v1201
        %1420 = vmatprep.mubr.bf16.mxu0 %v744
        %1421 = vmatmul.mubr.bf16.gmra.mrb[0].mxu0 %v743
        %v1422 = vpop.f32.mrb[0].mxu0
        %v1423 = vadd.f32 0.0, %v1422
        %v1424 = vpop.f32.mrb[0].mxu0
        %v1425 = vadd.f32 0.0, %v1424
        %v1426 = vpop.f32.mrb[0].mxu0
        %v1427 = vadd.f32 0.0, %v1426
        %v1428 = vpop.f32.mrb[0].mxu0
        %v1429 = vadd.f32 0.0, %v1428
        %1430 = vmatprep.mubr.bf16.mxu0 %v750
        %1431 = vmatmul.mubr.bf16.gmra.mrb[0].mxu0 %v749
        %v1432 = vpop.f32.mrb[0].mxu0
        %v1433 = vadd.f32 0.0, %v1432
        %v1434 = vpop.f32.mrb[0].mxu0
        %v1435 = vadd.f32 0.0, %v1434
        %v1436 = vpop.f32.mrb[0].mxu0
        %v1437 = vadd.f32 0.0, %v1436
        %v1438 = vpop.f32.mrb[0].mxu0
        %v1439 = vadd.f32 0.0, %v1438
        %1440 = vmatprep.mubr.bf16.mxu0 %v756
        %1441 = vmatmul.mubr.bf16.gmra.mrb[0].mxu0 %v755
        %v1442 = vpop.f32.mrb[0].mxu0
        %v1443 = vadd.f32 0.0, %v1442
        %v1444 = vpop.f32.mrb[0].mxu0
        %v1445 = vadd.f32 0.0, %v1444
        %v1446 = vpop.f32.mrb[0].mxu0
        %v1447 = vadd.f32 0.0, %v1446
        %v1448 = vpop.f32.mrb[0].mxu0
        %v1449 = vadd.f32 0.0, %v1448
        %1450 = vmatprep.mubr.bf16.mxu0 %v762
        %1451 = vmatmul.mubr.bf16.gmra.mrb[0].mxu0 %v761
        %v1452 = vpop.f32.mrb[0].mxu0
        %v1453 = vadd.f32 0.0, %v1452
        %v1454 = vpop.f32.mrb[0].mxu0
        %v1455 = vadd.f32 0.0, %v1454
        %v1456 = vpop.f32.mrb[0].mxu0
        %v1457 = vadd.f32 0.0, %v1456
        %v1458 = vpop.f32.mrb[0].mxu0
        %v1459 = vadd.f32 0.0, %v1458
        %1460 = vmatprep.mubr.bf16.mxu0 %v768
        %1461 = vmatmul.mubr.bf16.gmra.mrb[0].mxu0 %v767
        %v1462 = vpop.f32.mrb[0].mxu0
        %v1463 = vadd.f32 0.0, %v1462
        %v1464 = vpop.f32.mrb[0].mxu0
        %v1465 = vadd.f32 0.0, %v1464
        %v1466 = vpop.f32.mrb[0].mxu0
        %v1467 = vadd.f32 0.0, %v1466
        %v1468 = vpop.f32.mrb[0].mxu0
        %v1469 = vadd.f32 0.0, %v1468
        %1470 = vmatprep.mubr.bf16.mxu0 %v774
        %1471 = vmatmul.mubr.bf16.gmra.mrb[0].mxu0 %v773
        %v1472 = vpop.f32.mrb[0].mxu0
        %v1473 = vadd.f32 0.0, %v1472
        %v1474 = vpop.f32.mrb[0].mxu0
        %v1475 = vadd.f32 0.0, %v1474
        %v1476 = vpop.f32.mrb[0].mxu0
        %v1477 = vadd.f32 0.0, %v1476
        %v1478 = vpop.f32.mrb[0].mxu0
        %v1479 = vadd.f32 0.0, %v1478
        %1480 = vmatprep.mubr.bf16.mxu0 %v780
        %1481 = vmatmul.mubr.bf16.gmra.mrb[0].mxu0 %v779
        %v1482 = vpop.f32.mrb[0].mxu0
        %v1483 = vadd.f32 0.0, %v1482
        %v1484 = vpop.f32.mrb[0].mxu0
        %v1485 = vadd.f32 0.0, %v1484
        %v1486 = vpop.f32.mrb[0].mxu0
        %v1487 = vadd.f32 0.0, %v1486
        %v1488 = vpop.f32.mrb[0].mxu0
        %v1489 = vadd.f32 0.0, %v1488
        %1490 = vmatprep.mubr.bf16.mxu0 %v786
        %1491 = vmatmul.mubr.bf16.gmra.mrb[0].mxu0 %v785
        %v1492 = vpop.f32.mrb[0].mxu0
        %v1493 = vadd.f32 0.0, %v1492
        %v1494 = vpop.f32.mrb[0].mxu0
        %v1495 = vadd.f32 0.0, %v1494
        %v1496 = vpop.f32.mrb[0].mxu0
        %v1497 = vadd.f32 0.0, %v1496
        %v1498 = vpop.f32.mrb[0].mxu0
        %v1499 = vadd.f32 0.0, %v1498
        %1500 = vmatprep.mubr.bf16.mxu0 %v792
        %1501 = vmatmul.mubr.bf16.gmra.mrb[0].mxu0 %v791
        %v1502 = vpop.f32.mrb[0].mxu0
        %v1503 = vadd.f32 0.0, %v1502
        %v1504 = vpop.f32.mrb[0].mxu0
        %v1505 = vadd.f32 0.0, %v1504
        %v1506 = vpop.f32.mrb[0].mxu0
        %v1507 = vadd.f32 0.0, %v1506
        %v1508 = vpop.f32.mrb[0].mxu0
        %v1509 = vadd.f32 0.0, %v1508
        %1510 = vmatprep.mubr.bf16.mxu0 %v798
        %1511 = vmatmul.mubr.bf16.gmra.mrb[0].mxu0 %v797
        %v1512 = vpop.f32.mrb[0].mxu0
        %v1513 = vadd.f32 0.0, %v1512
        %v1514 = vpop.f32.mrb[0].mxu0
        %v1515 = vadd.f32 0.0, %v1514
        %v1516 = vpop.f32.mrb[0].mxu0
        %v1517 = vadd.f32 0.0, %v1516
        %v1518 = vpop.f32.mrb[0].mxu0
        %v1519 = vadd.f32 0.0, %v1518
        %1520 = vmatprep.mubr.bf16.mxu0 %v804
        %1521 = vmatmul.mubr.bf16.gmra.mrb[0].mxu0 %v803
        %v1522 = vpop.f32.mrb[0].mxu0
        %v1523 = vadd.f32 0.0, %v1522
        %v1524 = vpop.f32.mrb[0].mxu0
        %v1525 = vadd.f32 0.0, %v1524
        %v1526 = vpop.f32.mrb[0].mxu0
        %v1527 = vadd.f32 0.0, %v1526
        %v1528 = vpop.f32.mrb[0].mxu0
        %v1529 = vadd.f32 0.0, %v1528
        %1530 = vmatprep.mubr.bf16.mxu0 %v810
        %1531 = vmatmul.mubr.bf16.gmra.mrb[0].mxu0 %v809
        %v1532 = vpop.f32.mrb[0].mxu0
        %v1533 = vadd.f32 0.0, %v1532
        %v1534 = vpop.f32.mrb[0].mxu0
        %v1535 = vadd.f32 0.0, %v1534
        %v1536 = vpop.f32.mrb[0].mxu0
        %v1537 = vadd.f32 0.0, %v1536
        %v1538 = vpop.f32.mrb[0].mxu0
        %v1539 = vadd.f32 0.0, %v1538
        %1540 = vmatprep.mubr.bf16.mxu0 %v816
        %1541 = vmatmul.mubr.bf16.gmra.mrb[0].mxu0 %v815
        %v1542 = vpop.f32.mrb[0].mxu0
        %v1543 = vadd.f32 0.0, %v1542
        %v1544 = vpop.f32.mrb[0].mxu0
        %v1545 = vadd.f32 0.0, %v1544
        %v1546 = vpop.f32.mrb[0].mxu0
        %v1547 = vadd.f32 0.0, %v1546
        %v1548 = vpop.f32.mrb[0].mxu0
        %v1549 = vadd.f32 0.0, %v1548
        %1550 = vmatprep.mubr.bf16.mxu0 %v822
        %1551 = vmatmul.mubr.bf16.gmra.mrb[0].mxu0 %v821
        %v1552 = vpop.f32.mrb[0].mxu0
        %v1553 = vadd.f32 0.0, %v1552
        %v1554 = vpop.f32.mrb[0].mxu0
        %v1555 = vadd.f32 0.0, %v1554
        %v1556 = vpop.f32.mrb[0].mxu0
        %v1557 = vadd.f32 0.0, %v1556
        %v1558 = vpop.f32.mrb[0].mxu0
        %v1559 = vadd.f32 0.0, %v1558
        %1560 = vmatprep.mubr.bf16.mxu0 %v828
        %1561 = vmatmul.mubr.bf16.gmra.mrb[0].mxu0 %v827
        %v1562 = vpop.f32.mrb[0].mxu0
        %v1563 = vadd.f32 0.0, %v1562
        %v1564 = vpop.f32.mrb[0].mxu0
        %v1565 = vadd.f32 0.0, %v1564
        %v1566 = vpop.f32.mrb[0].mxu0
        %v1567 = vadd.f32 0.0, %v1566
        %v1568 = vpop.f32.mrb[0].mxu0
        %v1569 = vadd.f32 0.0, %v1568
        %1570 = vmatprep.mubr.bf16.mxu0 %v834
        %1571 = vmatmul.mubr.bf16.gmra.mrb[0].mxu0 %v833
        %v1572 = vpop.f32.mrb[0].mxu0
        %v1573 = vadd.f32 0.0, %v1572
        %v1574 = vpop.f32.mrb[0].mxu0
        %v1575 = vadd.f32 0.0, %v1574
        %v1576 = vpop.f32.mrb[0].mxu0
        %v1577 = vadd.f32 0.0, %v1576
        %v1578 = vpop.f32.mrb[0].mxu0
        %v1579 = vadd.f32 0.0, %v1578
        %1580 = vdwg.mxu0
        %1581 = vmatprep.subr.bf16.mxu0 %v1204
        %1582 = vmatpush1.bf16.msra.mxu0 %v1203
        %1583 = vmatprep.subr.bf16.mxu0 %v1206
        %1584 = vmatpush1.bf16.msra.mxu0 %v1205
        %1585 = vmatprep.subr.bf16.mxu0 %v1208
        %1586 = vmatpush1.bf16.msra.mxu0 %v1207
        %1587 = vmatprep.subr.bf16.mxu0 %v1210
        %1588 = vmatpush1.bf16.msra.mxu0 %v1209
        %1589 = vmatprep.subr.bf16.mxu0 %v1212
        %1590 = vmatpush1.bf16.msra.mxu0 %v1211
        %1591 = vmatprep.subr.bf16.mxu0 %v1214
        %1592 = vmatpush1.bf16.msra.mxu0 %v1213
        %1593 = vmatprep.subr.bf16.mxu0 %v1216
        %1594 = vmatpush1.bf16.msra.mxu0 %v1215
        %1595 = vmatprep.subr.bf16.mxu0 %v1218
        %1596 = vmatpush1.bf16.msra.mxu0 %v1217
        %1597 = vmatprep.subr.bf16.mxu0 %v1220
        %1598 = vmatpush1.bf16.msra.mxu0 %v1219
        %1599 = vmatprep.subr.bf16.mxu0 %v1222
        %1600 = vmatpush1.bf16.msra.mxu0 %v1221
        %1601 = vmatprep.subr.bf16.mxu0 %v1224
        %1602 = vmatpush1.bf16.msra.mxu0 %v1223
        %1603 = vmatprep.subr.bf16.mxu0 %v1226
        %1604 = vmatpush1.bf16.msra.mxu0 %v1225
        %1605 = vmatprep.subr.bf16.mxu0 %v1228
        %1606 = vmatpush1.bf16.msra.mxu0 %v1227
        %1607 = vmatprep.subr.bf16.mxu0 %v1230
        %1608 = vmatpush1.bf16.msra.mxu0 %v1229
        %1609 = vmatprep.subr.bf16.mxu0 %v1232
        %1610 = vmatpush1.bf16.msra.mxu0 %v1231
        %1611 = vmatprep.subr.bf16.mxu0 %v1234
        %1612 = vmatpush1.bf16.msra.mxu0 %v1233
        %1613 = vmatprep.mubr.bf16.mxu0 %v746
        %1614 = vmatmul.mubr.bf16.gmra.mrb[0].mxu0 %v745
        %v1615 = vpop.f32.mrb[0].mxu0
        %v1616 = vadd.f32 %v1423, %v1615
        %v1617 = vpop.f32.mrb[0].mxu0
        %v1618 = vadd.f32 %v1425, %v1617
        %v1619 = vpop.f32.mrb[0].mxu0
        %v1620 = vadd.f32 %v1427, %v1619
        %v1621 = vpop.f32.mrb[0].mxu0
        %v1622 = vadd.f32 %v1429, %v1621
        %1623 = vmatprep.mubr.bf16.mxu0 %v752
        %1624 = vmatmul.mubr.bf16.gmra.mrb[0].mxu0 %v751
        %v1625 = vpop.f32.mrb[0].mxu0
        %v1626 = vadd.f32 %v1433, %v1625
        %v1627 = vpop.f32.mrb[0].mxu0
        %v1628 = vadd.f32 %v1435, %v1627
        %v1629 = vpop.f32.mrb[0].mxu0
        %v1630 = vadd.f32 %v1437, %v1629
        %v1631 = vpop.f32.mrb[0].mxu0
        %v1632 = vadd.f32 %v1439, %v1631
        %1633 = vmatprep.mubr.bf16.mxu0 %v758
        %1634 = vmatmul.mubr.bf16.gmra.mrb[0].mxu0 %v757
        %v1635 = vpop.f32.mrb[0].mxu0
        %v1636 = vadd.f32 %v1443, %v1635
        %v1637 = vpop.f32.mrb[0].mxu0
        %v1638 = vadd.f32 %v1445, %v1637
        %v1639 = vpop.f32.mrb[0].mxu0
        %v1640 = vadd.f32 %v1447, %v1639
        %v1641 = vpop.f32.mrb[0].mxu0
        %v1642 = vadd.f32 %v1449, %v1641
        %1643 = vmatprep.mubr.bf16.mxu0 %v764
        %1644 = vmatmul.mubr.bf16.gmra.mrb[0].mxu0 %v763
        %v1645 = vpop.f32.mrb[0].mxu0
        %v1646 = vadd.f32 %v1453, %v1645
        %v1647 = vpop.f32.mrb[0].mxu0
        %v1648 = vadd.f32 %v1455, %v1647
        %v1649 = vpop.f32.mrb[0].mxu0
        %v1650 = vadd.f32 %v1457, %v1649
        %v1651 = vpop.f32.mrb[0].mxu0
        %v1652 = vadd.f32 %v1459, %v1651
        %1653 = vmatprep.mubr.bf16.mxu0 %v770
        %1654 = vmatmul.mubr.bf16.gmra.mrb[0].mxu0 %v769
        %v1655 = vpop.f32.mrb[0].mxu0
        %v1656 = vadd.f32 %v1463, %v1655
        %v1657 = vpop.f32.mrb[0].mxu0
        %v1658 = vadd.f32 %v1465, %v1657
        %v1659 = vpop.f32.mrb[0].mxu0
        %v1660 = vadd.f32 %v1467, %v1659
        %v1661 = vpop.f32.mrb[0].mxu0
        %v1662 = vadd.f32 %v1469, %v1661
        %1663 = vmatprep.mubr.bf16.mxu0 %v776
        %1664 = vmatmul.mubr.bf16.gmra.mrb[0].mxu0 %v775
        %v1665 = vpop.f32.mrb[0].mxu0
        %v1666 = vadd.f32 %v1473, %v1665
        %v1667 = vpop.f32.mrb[0].mxu0
        %v1668 = vadd.f32 %v1475, %v1667
        %v1669 = vpop.f32.mrb[0].mxu0
        %v1670 = vadd.f32 %v1477, %v1669
        %v1671 = vpop.f32.mrb[0].mxu0
        %v1672 = vadd.f32 %v1479, %v1671
        %1673 = vmatprep.mubr.bf16.mxu0 %v782
        %1674 = vmatmul.mubr.bf16.gmra.mrb[0].mxu0 %v781
        %v1675 = vpop.f32.mrb[0].mxu0
        %v1676 = vadd.f32 %v1483, %v1675
        %v1677 = vpop.f32.mrb[0].mxu0
        %v1678 = vadd.f32 %v1485, %v1677
        %v1679 = vpop.f32.mrb[0].mxu0
        %v1680 = vadd.f32 %v1487, %v1679
        %v1681 = vpop.f32.mrb[0].mxu0
        %v1682 = vadd.f32 %v1489, %v1681
        %1683 = vmatprep.mubr.bf16.mxu0 %v788
        %1684 = vmatmul.mubr.bf16.gmra.mrb[0].mxu0 %v787
        %v1685 = vpop.f32.mrb[0].mxu0
        %v1686 = vadd.f32 %v1493, %v1685
        %v1687 = vpop.f32.mrb[0].mxu0
        %v1688 = vadd.f32 %v1495, %v1687
        %v1689 = vpop.f32.mrb[0].mxu0
        %v1690 = vadd.f32 %v1497, %v1689
        %v1691 = vpop.f32.mrb[0].mxu0
        %v1692 = vadd.f32 %v1499, %v1691
        %1693 = vmatprep.mubr.bf16.mxu0 %v794
        %1694 = vmatmul.mubr.bf16.gmra.mrb[0].mxu0 %v793
        %v1695 = vpop.f32.mrb[0].mxu0
        %v1696 = vadd.f32 %v1503, %v1695
        %v1697 = vpop.f32.mrb[0].mxu0
        %v1698 = vadd.f32 %v1505, %v1697
        %v1699 = vpop.f32.mrb[0].mxu0
        %v1700 = vadd.f32 %v1507, %v1699
        %v1701 = vpop.f32.mrb[0].mxu0
        %v1702 = vadd.f32 %v1509, %v1701
        %1703 = vmatprep.mubr.bf16.mxu0 %v800
        %1704 = vmatmul.mubr.bf16.gmra.mrb[0].mxu0 %v799
        %v1705 = vpop.f32.mrb[0].mxu0
        %v1706 = vadd.f32 %v1513, %v1705
        %v1707 = vpop.f32.mrb[0].mxu0
        %v1708 = vadd.f32 %v1515, %v1707
        %v1709 = vpop.f32.mrb[0].mxu0
        %v1710 = vadd.f32 %v1517, %v1709
        %v1711 = vpop.f32.mrb[0].mxu0
        %v1712 = vadd.f32 %v1519, %v1711
        %1713 = vmatprep.mubr.bf16.mxu0 %v806
        %1714 = vmatmul.mubr.bf16.gmra.mrb[0].mxu0 %v805
        %v1715 = vpop.f32.mrb[0].mxu0
        %v1716 = vadd.f32 %v1523, %v1715
        %v1717 = vpop.f32.mrb[0].mxu0
        %v1718 = vadd.f32 %v1525, %v1717
        %v1719 = vpop.f32.mrb[0].mxu0
        %v1720 = vadd.f32 %v1527, %v1719
        %v1721 = vpop.f32.mrb[0].mxu0
        %v1722 = vadd.f32 %v1529, %v1721
        %1723 = vmatprep.mubr.bf16.mxu0 %v812
        %1724 = vmatmul.mubr.bf16.gmra.mrb[0].mxu0 %v811
        %v1725 = vpop.f32.mrb[0].mxu0
        %v1726 = vadd.f32 %v1533, %v1725
        %v1727 = vpop.f32.mrb[0].mxu0
        %v1728 = vadd.f32 %v1535, %v1727
        %v1729 = vpop.f32.mrb[0].mxu0
        %v1730 = vadd.f32 %v1537, %v1729
        %v1731 = vpop.f32.mrb[0].mxu0
        %v1732 = vadd.f32 %v1539, %v1731
        %1733 = vmatprep.mubr.bf16.mxu0 %v818
        %1734 = vmatmul.mubr.bf16.gmra.mrb[0].mxu0 %v817
        %v1735 = vpop.f32.mrb[0].mxu0
        %v1736 = vadd.f32 %v1543, %v1735
        %v1737 = vpop.f32.mrb[0].mxu0
        %v1738 = vadd.f32 %v1545, %v1737
        %v1739 = vpop.f32.mrb[0].mxu0
        %v1740 = vadd.f32 %v1547, %v1739
        %v1741 = vpop.f32.mrb[0].mxu0
        %v1742 = vadd.f32 %v1549, %v1741
        %1743 = vmatprep.mubr.bf16.mxu0 %v824
        %1744 = vmatmul.mubr.bf16.gmra.mrb[0].mxu0 %v823
        %v1745 = vpop.f32.mrb[0].mxu0
        %v1746 = vadd.f32 %v1553, %v1745
        %v1747 = vpop.f32.mrb[0].mxu0
        %v1748 = vadd.f32 %v1555, %v1747
        %v1749 = vpop.f32.mrb[0].mxu0
        %v1750 = vadd.f32 %v1557, %v1749
        %v1751 = vpop.f32.mrb[0].mxu0
        %v1752 = vadd.f32 %v1559, %v1751
        %1753 = vmatprep.mubr.bf16.mxu0 %v830
        %1754 = vmatmul.mubr.bf16.gmra.mrb[0].mxu0 %v829
        %v1755 = vpop.f32.mrb[0].mxu0
        %v1756 = vadd.f32 %v1563, %v1755
        %v1757 = vpop.f32.mrb[0].mxu0
        %v1758 = vadd.f32 %v1565, %v1757
        %v1759 = vpop.f32.mrb[0].mxu0
        %v1760 = vadd.f32 %v1567, %v1759
        %v1761 = vpop.f32.mrb[0].mxu0
        %v1762 = vadd.f32 %v1569, %v1761
        %1763 = vmatprep.mubr.bf16.mxu0 %v836
        %1764 = vmatmul.mubr.bf16.gmra.mrb[0].mxu0 %v835
        %v1765 = vpop.f32.mrb[0].mxu0
        %v1766 = vadd.f32 %v1573, %v1765
        %v1767 = vpop.f32.mrb[0].mxu0
        %v1768 = vadd.f32 %v1575, %v1767
        %v1769 = vpop.f32.mrb[0].mxu0
        %v1770 = vadd.f32 %v1577, %v1769
        %v1771 = vpop.f32.mrb[0].mxu0
        %v1772 = vadd.f32 %v1579, %v1771
        %1773 = vdwg.mxu0
        %1774 = vmatprep.subr.bf16.mxu0 %v1236
        %1775 = vmatpush1.bf16.msra.mxu0 %v1235
        %1776 = vmatprep.subr.bf16.mxu0 %v1238
        %1777 = vmatpush1.bf16.msra.mxu0 %v1237
        %1778 = vmatprep.subr.bf16.mxu0 %v1240
        %1779 = vmatpush1.bf16.msra.mxu0 %v1239
        %1780 = vmatprep.subr.bf16.mxu0 %v1242
        %1781 = vmatpush1.bf16.msra.mxu0 %v1241
        %1782 = vmatprep.subr.bf16.mxu0 %v1244
        %1783 = vmatpush1.bf16.msra.mxu0 %v1243
        %1784 = vmatprep.subr.bf16.mxu0 %v1246
        %1785 = vmatpush1.bf16.msra.mxu0 %v1245
        %1786 = vmatprep.subr.bf16.mxu0 %v1248
        %1787 = vmatpush1.bf16.msra.mxu0 %v1247
        %1788 = vmatprep.subr.bf16.mxu0 %v1250
        %1789 = vmatpush1.bf16.msra.mxu0 %v1249
        %1790 = vmatprep.subr.bf16.mxu0 %v1252
        %1791 = vmatpush1.bf16.msra.mxu0 %v1251
        %1792 = vmatprep.subr.bf16.mxu0 %v1254
        %1793 = vmatpush1.bf16.msra.mxu0 %v1253
        %1794 = vmatprep.subr.bf16.mxu0 0
        %1795 = vmatpush1.bf16.msra.mxu0 0
        %1796 = vmatprep.subr.bf16.mxu0 0
        %1797 = vmatpush1.bf16.msra.mxu0 0
        %1798 = vmatprep.subr.bf16.mxu0 0
        %1799 = vmatpush1.bf16.msra.mxu0 0
        %1800 = vmatprep.subr.bf16.mxu0 0
        %1801 = vmatpush1.bf16.msra.mxu0 0
        %1802 = vmatprep.subr.bf16.mxu0 0
        %1803 = vmatpush1.bf16.msra.mxu0 0
        %1804 = vmatprep.subr.bf16.mxu0 0
        %1805 = vmatpush1.bf16.msra.mxu0 0
        %1806 = vmatprep.mubr.bf16.mxu0 %v1341
        %1807 = vmatmul.mubr.bf16.gmra.mrb[0].mxu0 %v747
        %v1808 = vpop.f32.mrb[0].mxu0
        %v1809 = vadd.f32 %v1616, %v1808
        %v1810 = vpop.f32.mrb[0].mxu0
        %v1811 = vadd.f32 %v1618, %v1810
        %v1812 = vpop.f32.mrb[0].mxu0
        %v1813 = vadd.f32 %v1620, %v1812
        %v1814 = vpop.f32.mrb[0].mxu0
        %v1815 = vadd.f32 %v1622, %v1814
        %1816 = vmatprep.mubr.bf16.mxu0 %v1344
        %1817 = vmatmul.mubr.bf16.gmra.mrb[0].mxu0 %v753
        %v1818 = vpop.f32.mrb[0].mxu0
        %v1819 = vadd.f32 %v1626, %v1818
        %v1820 = vpop.f32.mrb[0].mxu0
        %v1821 = vadd.f32 %v1628, %v1820
        %v1822 = vpop.f32.mrb[0].mxu0
        %v1823 = vadd.f32 %v1630, %v1822
        %v1824 = vpop.f32.mrb[0].mxu0
        %v1825 = vadd.f32 %v1632, %v1824
        %1826 = vmatprep.mubr.bf16.mxu0 %v1347
        %1827 = vmatmul.mubr.bf16.gmra.mrb[0].mxu0 %v759
        %v1828 = vpop.f32.mrb[0].mxu0
        %v1829 = vadd.f32 %v1636, %v1828
        %v1830 = vpop.f32.mrb[0].mxu0
        %v1831 = vadd.f32 %v1638, %v1830
        %v1832 = vpop.f32.mrb[0].mxu0
        %v1833 = vadd.f32 %v1640, %v1832
        %v1834 = vpop.f32.mrb[0].mxu0
        %v1835 = vadd.f32 %v1642, %v1834
        %1836 = vmatprep.mubr.bf16.mxu0 %v1350
        %1837 = vmatmul.mubr.bf16.gmra.mrb[0].mxu0 %v765
        %v1838 = vpop.f32.mrb[0].mxu0
        %v1839 = vadd.f32 %v1646, %v1838
        %v1840 = vpop.f32.mrb[0].mxu0
        %v1841 = vadd.f32 %v1648, %v1840
        %v1842 = vpop.f32.mrb[0].mxu0
        %v1843 = vadd.f32 %v1650, %v1842
        %v1844 = vpop.f32.mrb[0].mxu0
        %v1845 = vadd.f32 %v1652, %v1844
        %1846 = vmatprep.mubr.bf16.mxu0 %v1353
        %1847 = vmatmul.mubr.bf16.gmra.mrb[0].mxu0 %v771
        %v1848 = vpop.f32.mrb[0].mxu0
        %v1849 = vadd.f32 %v1656, %v1848
        %v1850 = vpop.f32.mrb[0].mxu0
        %v1851 = vadd.f32 %v1658, %v1850
        %v1852 = vpop.f32.mrb[0].mxu0
        %v1853 = vadd.f32 %v1660, %v1852
        %v1854 = vpop.f32.mrb[0].mxu0
        %v1855 = vadd.f32 %v1662, %v1854
        %1856 = vmatprep.mubr.bf16.mxu0 %v1356
        %1857 = vmatmul.mubr.bf16.gmra.mrb[0].mxu0 %v777
        %v1858 = vpop.f32.mrb[0].mxu0
        %v1859 = vadd.f32 %v1666, %v1858
        %v1860 = vpop.f32.mrb[0].mxu0
        %v1861 = vadd.f32 %v1668, %v1860
        %v1862 = vpop.f32.mrb[0].mxu0
        %v1863 = vadd.f32 %v1670, %v1862
        %v1864 = vpop.f32.mrb[0].mxu0
        %v1865 = vadd.f32 %v1672, %v1864
        %1866 = vmatprep.mubr.bf16.mxu0 %v1359
        %1867 = vmatmul.mubr.bf16.gmra.mrb[0].mxu0 %v783
        %v1868 = vpop.f32.mrb[0].mxu0
        %v1869 = vadd.f32 %v1676, %v1868
        %v1870 = vpop.f32.mrb[0].mxu0
        %v1871 = vadd.f32 %v1678, %v1870
        %v1872 = vpop.f32.mrb[0].mxu0
        %v1873 = vadd.f32 %v1680, %v1872
        %v1874 = vpop.f32.mrb[0].mxu0
        %v1875 = vadd.f32 %v1682, %v1874
        %1876 = vmatprep.mubr.bf16.mxu0 %v1362
        %1877 = vmatmul.mubr.bf16.gmra.mrb[0].mxu0 %v789
        %v1878 = vpop.f32.mrb[0].mxu0
        %v1879 = vadd.f32 %v1686, %v1878
        %v1880 = vpop.f32.mrb[0].mxu0
        %v1881 = vadd.f32 %v1688, %v1880
        %v1882 = vpop.f32.mrb[0].mxu0
        %v1883 = vadd.f32 %v1690, %v1882
        %v1884 = vpop.f32.mrb[0].mxu0
        %v1885 = vadd.f32 %v1692, %v1884
        %1886 = vmatprep.mubr.bf16.mxu0 %v1365
        %1887 = vmatmul.mubr.bf16.gmra.mrb[0].mxu0 %v795
        %v1888 = vpop.f32.mrb[0].mxu0
        %v1889 = vadd.f32 %v1696, %v1888
        %v1890 = vpop.f32.mrb[0].mxu0
        %v1891 = vadd.f32 %v1698, %v1890
        %v1892 = vpop.f32.mrb[0].mxu0
        %v1893 = vadd.f32 %v1700, %v1892
        %v1894 = vpop.f32.mrb[0].mxu0
        %v1895 = vadd.f32 %v1702, %v1894
        %1896 = vmatprep.mubr.bf16.mxu0 %v1368
        %1897 = vmatmul.mubr.bf16.gmra.mrb[0].mxu0 %v801
        %v1898 = vpop.f32.mrb[0].mxu0
        %v1899 = vadd.f32 %v1706, %v1898
        %v1900 = vpop.f32.mrb[0].mxu0
        %v1901 = vadd.f32 %v1708, %v1900
        %v1902 = vpop.f32.mrb[0].mxu0
        %v1903 = vadd.f32 %v1710, %v1902
        %v1904 = vpop.f32.mrb[0].mxu0
        %v1905 = vadd.f32 %v1712, %v1904
        %1906 = vmatprep.mubr.bf16.mxu0 %v1371
        %1907 = vmatmul.mubr.bf16.gmra.mrb[0].mxu0 %v807
        %v1908 = vpop.f32.mrb[0].mxu0
        %v1909 = vadd.f32 %v1716, %v1908
        %v1910 = vpop.f32.mrb[0].mxu0
        %v1911 = vadd.f32 %v1718, %v1910
        %v1912 = vpop.f32.mrb[0].mxu0
        %v1913 = vadd.f32 %v1720, %v1912
        %v1914 = vpop.f32.mrb[0].mxu0
        %v1915 = vadd.f32 %v1722, %v1914
        %1916 = vmatprep.mubr.bf16.mxu0 %v1374
        %1917 = vmatmul.mubr.bf16.gmra.mrb[0].mxu0 %v813
        %v1918 = vpop.f32.mrb[0].mxu0
        %v1919 = vadd.f32 %v1726, %v1918
        %v1920 = vpop.f32.mrb[0].mxu0
        %v1921 = vadd.f32 %v1728, %v1920
        %v1922 = vpop.f32.mrb[0].mxu0
        %v1923 = vadd.f32 %v1730, %v1922
        %v1924 = vpop.f32.mrb[0].mxu0
        %v1925 = vadd.f32 %v1732, %v1924
        %1926 = vmatprep.mubr.bf16.mxu0 %v1377
        %1927 = vmatmul.mubr.bf16.gmra.mrb[0].mxu0 %v819
        %v1928 = vpop.f32.mrb[0].mxu0
        %v1929 = vadd.f32 %v1736, %v1928
        %v1930 = vpop.f32.mrb[0].mxu0
        %v1931 = vadd.f32 %v1738, %v1930
        %v1932 = vpop.f32.mrb[0].mxu0
        %v1933 = vadd.f32 %v1740, %v1932
        %v1934 = vpop.f32.mrb[0].mxu0
        %v1935 = vadd.f32 %v1742, %v1934
        %1936 = vmatprep.mubr.bf16.mxu0 %v1380
        %1937 = vmatmul.mubr.bf16.gmra.mrb[0].mxu0 %v825
        %v1938 = vpop.f32.mrb[0].mxu0
        %v1939 = vadd.f32 %v1746, %v1938
        %v1940 = vpop.f32.mrb[0].mxu0
        %v1941 = vadd.f32 %v1748, %v1940
        %v1942 = vpop.f32.mrb[0].mxu0
        %v1943 = vadd.f32 %v1750, %v1942
        %v1944 = vpop.f32.mrb[0].mxu0
        %v1945 = vadd.f32 %v1752, %v1944
        %1946 = vmatprep.mubr.bf16.mxu0 %v1383
        %1947 = vmatmul.mubr.bf16.gmra.mrb[0].mxu0 %v831
        %v1948 = vpop.f32.mrb[0].mxu0
        %v1949 = vadd.f32 %v1756, %v1948
        %v1950 = vpop.f32.mrb[0].mxu0
        %v1951 = vadd.f32 %v1758, %v1950
        %v1952 = vpop.f32.mrb[0].mxu0
        %v1953 = vadd.f32 %v1760, %v1952
        %v1954 = vpop.f32.mrb[0].mxu0
        %v1955 = vadd.f32 %v1762, %v1954
        %1956 = vmatprep.mubr.bf16.mxu0 %v1386
        %1957 = vmatmul.mubr.bf16.gmra.mrb[0].mxu0 %v837
        %v1958 = vpop.f32.mrb[0].mxu0
        %v1959 = vadd.f32 %v1766, %v1958
        %v1960 = vpop.f32.mrb[0].mxu0
        %v1961 = vadd.f32 %v1768, %v1960
        %v1962 = vpop.f32.mrb[0].mxu0
        %v1963 = vadd.f32 %v1770, %v1962
        %v1964 = vpop.f32.mrb[0].mxu0
        %v1965 = vadd.f32 %v1772, %v1964
        %1966 = vdwg.mxu0
        %v1967 = vadd.f32 %v1809, %v1813
        %v1968 = vadd.f32 %v1967, %v1819
        %v1969 = vadd.f32 %v1968, %v1823
        %v1970 = vadd.f32 %v1969, %v1829
        %v1971 = vadd.f32 %v1970, %v1833
        %v1972 = vadd.f32 %v1971, %v1839
        %v1973 = vadd.f32 %v1972, %v1843
        %v1974 = vadd.f32 %v1973, %v1849
        %v1975 = vadd.f32 %v1974, %v1853
        %v1976 = vadd.f32 %v1975, %v1859
        %v1977 = vadd.f32 %v1976, %v1863
        %v1978 = vadd.f32 %v1977, %v1869
        %v1979 = vadd.f32 %v1978, %v1873
        %v1980 = vadd.f32 %v1979, %v1879
        %v1981 = vadd.f32 %v1980, %v1883
        %v1982 = vadd.f32 %v1981, %v1889
        %v1983 = vadd.f32 %v1982, %v1893
        %v1984 = vadd.f32 %v1983, %v1899
        %v1985 = vadd.f32 %v1984, %v1903
        %v1986 = vadd.f32 %v1985, %v1909
        %v1987 = vadd.f32 %v1986, %v1913
        %v1988 = vadd.f32 %v1987, %v1919
        %v1989 = vadd.f32 %v1988, %v1923
        %v1990 = vadd.f32 %v1989, %v1929
        %v1991 = vadd.f32 %v1990, %v1933
        %v1992 = vadd.f32 %v1991, %v1939
        %v1993 = vadd.f32 %v1992, %v1943
        %v1994 = vadd.f32 %v1993, %v1949
        %v1995 = vadd.f32 %v1994, %v1953
        %v1996 = vadd.f32 %v1995, %v1959
        %v1997 = vadd.f32 %v1996, %v1963
        %v1998 = vrot.slane %v1997, 4
        %v1999 = vadd.f32 %v1997, %v1998
        %v2000 = vrot.slane %v1999, 2
        %v2001 = vadd.f32 %v1999, %v2000
        %v2002 = vrot.slane %v2001, 1
        %v2003 = vadd.f32 %v2001, %v2002
        %vm2004 = vcmask 326656
        %v2005 = vsel %vm2004, %v1811, 0.0
        %v2006 = vsel %vm2004, %v1815, 0.0
        %v2007 = vadd.f32 %v2005, %v2006
        %v2008 = vsel %vm2004, %v1821, 0.0
        %v2009 = vadd.f32 %v2007, %v2008
        %v2010 = vsel %vm2004, %v1825, 0.0
        %v2011 = vadd.f32 %v2009, %v2010
        %v2012 = vsel %vm2004, %v1831, 0.0
        %v2013 = vadd.f32 %v2011, %v2012
        %v2014 = vsel %vm2004, %v1835, 0.0
        %v2015 = vadd.f32 %v2013, %v2014
        %v2016 = vsel %vm2004, %v1841, 0.0
        %v2017 = vadd.f32 %v2015, %v2016
        %v2018 = vsel %vm2004, %v1845, 0.0
        %v2019 = vadd.f32 %v2017, %v2018
        %v2020 = vsel %vm2004, %v1851, 0.0
        %v2021 = vadd.f32 %v2019, %v2020
        %v2022 = vsel %vm2004, %v1855, 0.0
        %v2023 = vadd.f32 %v2021, %v2022
        %v2024 = vsel %vm2004, %v1861, 0.0
        %v2025 = vadd.f32 %v2023, %v2024
        %v2026 = vsel %vm2004, %v1865, 0.0
        %v2027 = vadd.f32 %v2025, %v2026
        %v2028 = vsel %vm2004, %v1871, 0.0
        %v2029 = vadd.f32 %v2027, %v2028
        %v2030 = vsel %vm2004, %v1875, 0.0
        %v2031 = vadd.f32 %v2029, %v2030
        %v2032 = vsel %vm2004, %v1881, 0.0
        %v2033 = vadd.f32 %v2031, %v2032
        %v2034 = vsel %vm2004, %v1885, 0.0
        %v2035 = vadd.f32 %v2033, %v2034
        %v2036 = vsel %vm2004, %v1891, 0.0
        %v2037 = vadd.f32 %v2035, %v2036
        %v2038 = vsel %vm2004, %v1895, 0.0
        %v2039 = vadd.f32 %v2037, %v2038
        %v2040 = vsel %vm2004, %v1901, 0.0
        %v2041 = vadd.f32 %v2039, %v2040
        %v2042 = vsel %vm2004, %v1905, 0.0
        %v2043 = vadd.f32 %v2041, %v2042
        %v2044 = vsel %vm2004, %v1911, 0.0
        %v2045 = vadd.f32 %v2043, %v2044
        %v2046 = vsel %vm2004, %v1915, 0.0
        %v2047 = vadd.f32 %v2045, %v2046
        %v2048 = vsel %vm2004, %v1921, 0.0
        %v2049 = vadd.f32 %v2047, %v2048
        %v2050 = vsel %vm2004, %v1925, 0.0
        %v2051 = vadd.f32 %v2049, %v2050
        %v2052 = vsel %vm2004, %v1931, 0.0
        %v2053 = vadd.f32 %v2051, %v2052
        %v2054 = vsel %vm2004, %v1935, 0.0
        %v2055 = vadd.f32 %v2053, %v2054
        %v2056 = vsel %vm2004, %v1941, 0.0
        %v2057 = vadd.f32 %v2055, %v2056
        %v2058 = vsel %vm2004, %v1945, 0.0
        %v2059 = vadd.f32 %v2057, %v2058
        %v2060 = vsel %vm2004, %v1951, 0.0
        %v2061 = vadd.f32 %v2059, %v2060
        %v2062 = vsel %vm2004, %v1955, 0.0
        %v2063 = vadd.f32 %v2061, %v2062
        %v2064 = vsel %vm2004, %v1961, 0.0
        %v2065 = vadd.f32 %v2063, %v2064
        %v2066 = vsel %vm2004, %v1965, 0.0
        %v2067 = vadd.f32 %v2065, %v2066
        %v2068 = vrot.slane %v2067, 4
        %v2069 = vadd.f32 %v2067, %v2068
        %v2070 = vrot.slane %v2069, 2
        %v2071 = vadd.f32 %v2069, %v2070
        %v2072 = vrot.slane %v2071, 1
        %v2073 = vadd.f32 %v2071, %v2072
        %v2074 = vrcp.pop 256.0
        %v2075 = vmul.f32 %v2003, %v2074
        %v2076 = vmul.f32 %v2073, %v2074
        %v2077 = vmul.f32 %v1809, %v1809
        %v2078 = vmul.f32 %v1811, %v1811
        %v2079 = vmul.f32 %v1813, %v1813
        %v2080 = vmul.f32 %v1815, %v1815
        %v2081 = vmul.f32 %v1819, %v1819
        %v2082 = vmul.f32 %v1821, %v1821
        %v2083 = vmul.f32 %v1823, %v1823
        %v2084 = vmul.f32 %v1825, %v1825
        %v2085 = vmul.f32 %v1829, %v1829
        %v2086 = vmul.f32 %v1831, %v1831
        %v2087 = vmul.f32 %v1833, %v1833
        %v2088 = vmul.f32 %v1835, %v1835
        %v2089 = vmul.f32 %v1839, %v1839
        %v2090 = vmul.f32 %v1841, %v1841
        %v2091 = vmul.f32 %v1843, %v1843
        %v2092 = vmul.f32 %v1845, %v1845
        %v2093 = vmul.f32 %v1849, %v1849
        %v2094 = vmul.f32 %v1851, %v1851
        %v2095 = vmul.f32 %v1853, %v1853
        %v2096 = vmul.f32 %v1855, %v1855
        %v2097 = vmul.f32 %v1859, %v1859
        %v2098 = vmul.f32 %v1861, %v1861
        %v2099 = vmul.f32 %v1863, %v1863
        %v2100 = vmul.f32 %v1865, %v1865
        %v2101 = vmul.f32 %v1869, %v1869
        %v2102 = vmul.f32 %v1871, %v1871
        %v2103 = vmul.f32 %v1873, %v1873
        %v2104 = vmul.f32 %v1875, %v1875
        %v2105 = vmul.f32 %v1879, %v1879
        %v2106 = vmul.f32 %v1881, %v1881
        %v2107 = vmul.f32 %v1883, %v1883
        %v2108 = vmul.f32 %v1885, %v1885
        %v2109 = vmul.f32 %v1889, %v1889
        %v2110 = vmul.f32 %v1891, %v1891
        %v2111 = vmul.f32 %v1893, %v1893
        %v2112 = vmul.f32 %v1895, %v1895
        %v2113 = vmul.f32 %v1899, %v1899
        %v2114 = vmul.f32 %v1901, %v1901
        %v2115 = vmul.f32 %v1903, %v1903
        %v2116 = vmul.f32 %v1905, %v1905
        %v2117 = vmul.f32 %v1909, %v1909
        %v2118 = vmul.f32 %v1911, %v1911
        %v2119 = vmul.f32 %v1913, %v1913
        %v2120 = vmul.f32 %v1915, %v1915
        %v2121 = vmul.f32 %v1919, %v1919
        %v2122 = vmul.f32 %v1921, %v1921
        %v2123 = vmul.f32 %v1923, %v1923
        %v2124 = vmul.f32 %v1925, %v1925
        %v2125 = vmul.f32 %v1929, %v1929
        %v2126 = vmul.f32 %v1931, %v1931
        %v2127 = vmul.f32 %v1933, %v1933
        %v2128 = vmul.f32 %v1935, %v1935
        %v2129 = vmul.f32 %v1939, %v1939
        %v2130 = vmul.f32 %v1941, %v1941
        %v2131 = vmul.f32 %v1943, %v1943
        %v2132 = vmul.f32 %v1945, %v1945
        %v2133 = vmul.f32 %v1949, %v1949
        %v2134 = vmul.f32 %v1951, %v1951
        %v2135 = vmul.f32 %v1953, %v1953
        %v2136 = vmul.f32 %v1955, %v1955
        %v2137 = vmul.f32 %v1959, %v1959
        %v2138 = vmul.f32 %v1961, %v1961
        %v2139 = vmul.f32 %v1963, %v1963
        %v2140 = vmul.f32 %v1965, %v1965
        %v2141 = vadd.f32 %v2077, %v2079
        %v2142 = vadd.f32 %v2141, %v2081
        %v2143 = vadd.f32 %v2142, %v2083
        %v2144 = vadd.f32 %v2143, %v2085
        %v2145 = vadd.f32 %v2144, %v2087
        %v2146 = vadd.f32 %v2145, %v2089
        %v2147 = vadd.f32 %v2146, %v2091
        %v2148 = vadd.f32 %v2147, %v2093
        %v2149 = vadd.f32 %v2148, %v2095
        %v2150 = vadd.f32 %v2149, %v2097
        %v2151 = vadd.f32 %v2150, %v2099
        %v2152 = vadd.f32 %v2151, %v2101
        %v2153 = vadd.f32 %v2152, %v2103
        %v2154 = vadd.f32 %v2153, %v2105
        %v2155 = vadd.f32 %v2154, %v2107
        %v2156 = vadd.f32 %v2155, %v2109
        %v2157 = vadd.f32 %v2156, %v2111
        %v2158 = vadd.f32 %v2157, %v2113
        %v2159 = vadd.f32 %v2158, %v2115
        %v2160 = vadd.f32 %v2159, %v2117
        %v2161 = vadd.f32 %v2160, %v2119
        %v2162 = vadd.f32 %v2161, %v2121
        %v2163 = vadd.f32 %v2162, %v2123
        %v2164 = vadd.f32 %v2163, %v2125
        %v2165 = vadd.f32 %v2164, %v2127
        %v2166 = vadd.f32 %v2165, %v2129
        %v2167 = vadd.f32 %v2166, %v2131
        %v2168 = vadd.f32 %v2167, %v2133
        %v2169 = vadd.f32 %v2168, %v2135
        %v2170 = vadd.f32 %v2169, %v2137
        %v2171 = vadd.f32 %v2170, %v2139
        %v2172 = vrot.slane %v2171, 4
        %v2173 = vadd.f32 %v2171, %v2172
        %v2174 = vrot.slane %v2173, 2
        %v2175 = vadd.f32 %v2173, %v2174
        %v2176 = vrot.slane %v2175, 1
        %v2177 = vadd.f32 %v2175, %v2176
        %v2178 = vsel %vm2004, %v2078, 0.0
        %v2179 = vsel %vm2004, %v2080, 0.0
        %v2180 = vadd.f32 %v2178, %v2179
        %v2181 = vsel %vm2004, %v2082, 0.0
        %v2182 = vadd.f32 %v2180, %v2181
        %v2183 = vsel %vm2004, %v2084, 0.0
        %v2184 = vadd.f32 %v2182, %v2183
        %v2185 = vsel %vm2004, %v2086, 0.0
        %v2186 = vadd.f32 %v2184, %v2185
        %v2187 = vsel %vm2004, %v2088, 0.0
        %v2188 = vadd.f32 %v2186, %v2187
        %v2189 = vsel %vm2004, %v2090, 0.0
        %v2190 = vadd.f32 %v2188, %v2189
        %v2191 = vsel %vm2004, %v2092, 0.0
        %v2192 = vadd.f32 %v2190, %v2191
        %v2193 = vsel %vm2004, %v2094, 0.0
        %v2194 = vadd.f32 %v2192, %v2193
        %v2195 = vsel %vm2004, %v2096, 0.0
        %v2196 = vadd.f32 %v2194, %v2195
        %v2197 = vsel %vm2004, %v2098, 0.0
        %v2198 = vadd.f32 %v2196, %v2197
        %v2199 = vsel %vm2004, %v2100, 0.0
        %v2200 = vadd.f32 %v2198, %v2199
        %v2201 = vsel %vm2004, %v2102, 0.0
        %v2202 = vadd.f32 %v2200, %v2201
        %v2203 = vsel %vm2004, %v2104, 0.0
        %v2204 = vadd.f32 %v2202, %v2203
        %v2205 = vsel %vm2004, %v2106, 0.0
        %v2206 = vadd.f32 %v2204, %v2205
        %v2207 = vsel %vm2004, %v2108, 0.0
        %v2208 = vadd.f32 %v2206, %v2207
        %v2209 = vsel %vm2004, %v2110, 0.0
        %v2210 = vadd.f32 %v2208, %v2209
        %v2211 = vsel %vm2004, %v2112, 0.0
        %v2212 = vadd.f32 %v2210, %v2211
        %v2213 = vsel %vm2004, %v2114, 0.0
        %v2214 = vadd.f32 %v2212, %v2213
        %v2215 = vsel %vm2004, %v2116, 0.0
        %v2216 = vadd.f32 %v2214, %v2215
        %v2217 = vsel %vm2004, %v2118, 0.0
        %v2218 = vadd.f32 %v2216, %v2217
        %v2219 = vsel %vm2004, %v2120, 0.0
        %v2220 = vadd.f32 %v2218, %v2219
        %v2221 = vsel %vm2004, %v2122, 0.0
        %v2222 = vadd.f32 %v2220, %v2221
        %v2223 = vsel %vm2004, %v2124, 0.0
        %v2224 = vadd.f32 %v2222, %v2223
        %v2225 = vsel %vm2004, %v2126, 0.0
        %v2226 = vadd.f32 %v2224, %v2225
        %v2227 = vsel %vm2004, %v2128, 0.0
        %v2228 = vadd.f32 %v2226, %v2227
        %v2229 = vsel %vm2004, %v2130, 0.0
        %v2230 = vadd.f32 %v2228, %v2229
        %v2231 = vsel %vm2004, %v2132, 0.0
        %v2232 = vadd.f32 %v2230, %v2231
        %v2233 = vsel %vm2004, %v2134, 0.0
        %v2234 = vadd.f32 %v2232, %v2233
        %v2235 = vsel %vm2004, %v2136, 0.0
        %v2236 = vadd.f32 %v2234, %v2235
        %v2237 = vsel %vm2004, %v2138, 0.0
        %v2238 = vadd.f32 %v2236, %v2237
        %v2239 = vsel %vm2004, %v2140, 0.0
        %v2240 = vadd.f32 %v2238, %v2239
        %v2241 = vrot.slane %v2240, 4
        %v2242 = vadd.f32 %v2240, %v2241
        %v2243 = vrot.slane %v2242, 2
        %v2244 = vadd.f32 %v2242, %v2243
        %v2245 = vrot.slane %v2244, 1
        %v2246 = vadd.f32 %v2244, %v2245
        %v2247 = vmul.f32 %v2177, %v2074
        %v2248 = vmul.f32 %v2246, %v2074
        %v2249 = vmul.f32 %v2075, %v2075
        %v2250 = vmul.f32 %v2076, %v2076
        %v2251 = vsub.f32 %v2247, %v2249
        %v2252 = vsub.f32 %v2248, %v2250
        %v2253 = vadd.f32 %v2251, 1e-05
        %v2254 = vadd.f32 %v2252, 1e-05
        %v2255 = vrsqrt.pop %v2253
        %v2256 = vrsqrt.pop %v2254
        %v2257 = vsub.f32 %v1809, %v2075
        %v2258 = vsub.f32 %v1811, %v2076
        %v2259 = vsub.f32 %v1813, %v2075
        %v2260 = vsub.f32 %v1815, %v2076
        %v2261 = vsub.f32 %v1819, %v2075
        %v2262 = vsub.f32 %v1821, %v2076
        %v2263 = vsub.f32 %v1823, %v2075
        %v2264 = vsub.f32 %v1825, %v2076
        %v2265 = vsub.f32 %v1829, %v2075
        %v2266 = vsub.f32 %v1831, %v2076
        %v2267 = vsub.f32 %v1833, %v2075
        %v2268 = vsub.f32 %v1835, %v2076
        %v2269 = vsub.f32 %v1839, %v2075
        %v2270 = vsub.f32 %v1841, %v2076
        %v2271 = vsub.f32 %v1843, %v2075
        %v2272 = vsub.f32 %v1845, %v2076
        %v2273 = vsub.f32 %v1849, %v2075
        %v2274 = vsub.f32 %v1851, %v2076
        %v2275 = vsub.f32 %v1853, %v2075
        %v2276 = vsub.f32 %v1855, %v2076
        %v2277 = vsub.f32 %v1859, %v2075
        %v2278 = vsub.f32 %v1861, %v2076
        %v2279 = vsub.f32 %v1863, %v2075
        %v2280 = vsub.f32 %v1865, %v2076
        %v2281 = vsub.f32 %v1869, %v2075
        %v2282 = vsub.f32 %v1871, %v2076
        %v2283 = vsub.f32 %v1873, %v2075
        %v2284 = vsub.f32 %v1875, %v2076
        %v2285 = vsub.f32 %v1879, %v2075
        %v2286 = vsub.f32 %v1881, %v2076
        %v2287 = vsub.f32 %v1883, %v2075
        %v2288 = vsub.f32 %v1885, %v2076
        %v2289 = vsub.f32 %v1889, %v2075
        %v2290 = vsub.f32 %v1891, %v2076
        %v2291 = vsub.f32 %v1893, %v2075
        %v2292 = vsub.f32 %v1895, %v2076
        %v2293 = vsub.f32 %v1899, %v2075
        %v2294 = vsub.f32 %v1901, %v2076
        %v2295 = vsub.f32 %v1903, %v2075
        %v2296 = vsub.f32 %v1905, %v2076
        %v2297 = vsub.f32 %v1909, %v2075
        %v2298 = vsub.f32 %v1911, %v2076
        %v2299 = vsub.f32 %v1913, %v2075
        %v2300 = vsub.f32 %v1915, %v2076
        %v2301 = vsub.f32 %v1919, %v2075
        %v2302 = vsub.f32 %v1921, %v2076
        %v2303 = vsub.f32 %v1923, %v2075
        %v2304 = vsub.f32 %v1925, %v2076
        %v2305 = vsub.f32 %v1929, %v2075
        %v2306 = vsub.f32 %v1931, %v2076
        %v2307 = vsub.f32 %v1933, %v2075
        %v2308 = vsub.f32 %v1935, %v2076
        %v2309 = vsub.f32 %v1939, %v2075
        %v2310 = vsub.f32 %v1941, %v2076
        %v2311 = vsub.f32 %v1943, %v2075
        %v2312 = vsub.f32 %v1945, %v2076
        %v2313 = vsub.f32 %v1949, %v2075
        %v2314 = vsub.f32 %v1951, %v2076
        %v2315 = vsub.f32 %v1953, %v2075
        %v2316 = vsub.f32 %v1955, %v2076
        %v2317 = vsub.f32 %v1959, %v2075
        %v2318 = vsub.f32 %v1961, %v2076
        %v2319 = vsub.f32 %v1963, %v2075
        %v2320 = vsub.f32 %v1965, %v2076
        %v2321 = vmul.f32 %v2257, %v2255
        %v2322 = vmul.f32 %v2258, %v2256
        %v2323 = vmul.f32 %v2259, %v2255
        %v2324 = vmul.f32 %v2260, %v2256
        %v2325 = vmul.f32 %v2261, %v2255
        %v2326 = vmul.f32 %v2262, %v2256
        %v2327 = vmul.f32 %v2263, %v2255
        %v2328 = vmul.f32 %v2264, %v2256
        %v2329 = vmul.f32 %v2265, %v2255
        %v2330 = vmul.f32 %v2266, %v2256
        %v2331 = vmul.f32 %v2267, %v2255
        %v2332 = vmul.f32 %v2268, %v2256
        %v2333 = vmul.f32 %v2269, %v2255
        %v2334 = vmul.f32 %v2270, %v2256
        %v2335 = vmul.f32 %v2271, %v2255
        %v2336 = vmul.f32 %v2272, %v2256
        %v2337 = vmul.f32 %v2273, %v2255
        %v2338 = vmul.f32 %v2274, %v2256
        %v2339 = vmul.f32 %v2275, %v2255
        %v2340 = vmul.f32 %v2276, %v2256
        %v2341 = vmul.f32 %v2277, %v2255
        %v2342 = vmul.f32 %v2278, %v2256
        %v2343 = vmul.f32 %v2279, %v2255
        %v2344 = vmul.f32 %v2280, %v2256
        %v2345 = vmul.f32 %v2281, %v2255
        %v2346 = vmul.f32 %v2282, %v2256
        %v2347 = vmul.f32 %v2283, %v2255
        %v2348 = vmul.f32 %v2284, %v2256
        %v2349 = vmul.f32 %v2285, %v2255
        %v2350 = vmul.f32 %v2286, %v2256
        %v2351 = vmul.f32 %v2287, %v2255
        %v2352 = vmul.f32 %v2288, %v2256
        %v2353 = vmul.f32 %v2289, %v2255
        %v2354 = vmul.f32 %v2290, %v2256
        %v2355 = vmul.f32 %v2291, %v2255
        %v2356 = vmul.f32 %v2292, %v2256
        %v2357 = vmul.f32 %v2293, %v2255
        %v2358 = vmul.f32 %v2294, %v2256
        %v2359 = vmul.f32 %v2295, %v2255
        %v2360 = vmul.f32 %v2296, %v2256
        %v2361 = vmul.f32 %v2297, %v2255
        %v2362 = vmul.f32 %v2298, %v2256
        %v2363 = vmul.f32 %v2299, %v2255
        %v2364 = vmul.f32 %v2300, %v2256
        %v2365 = vmul.f32 %v2301, %v2255
        %v2366 = vmul.f32 %v2302, %v2256
        %v2367 = vmul.f32 %v2303, %v2255
        %v2368 = vmul.f32 %v2304, %v2256
        %v2369 = vmul.f32 %v2305, %v2255
        %v2370 = vmul.f32 %v2306, %v2256
        %v2371 = vmul.f32 %v2307, %v2255
        %v2372 = vmul.f32 %v2308, %v2256
        %v2373 = vmul.f32 %v2309, %v2255
        %v2374 = vmul.f32 %v2310, %v2256
        %v2375 = vmul.f32 %v2311, %v2255
        %v2376 = vmul.f32 %v2312, %v2256
        %v2377 = vmul.f32 %v2313, %v2255
        %v2378 = vmul.f32 %v2314, %v2256
        %v2379 = vmul.f32 %v2315, %v2255
        %v2380 = vmul.f32 %v2316, %v2256
        %v2381 = vmul.f32 %v2317, %v2255
        %v2382 = vmul.f32 %v2318, %v2256
        %v2383 = vmul.f32 %v2319, %v2255
        %v2384 = vmul.f32 %v2320, %v2256
        %v2385 = vld [vmem:[%s220] sm:$0x3]
        %v2387 = vlaneseq
        %v2388 = vshrl.u32 %v2387, 7
        %v2389 = vsub.s32 0, %v2388
        %v2390 = vrot.slane %v2385, %v2389
        %v2391 = vlaneseq
        %v2392 = vshrl.u32 %v2391, 7
        %v2393 = vsub.s32 1, %v2392
        %v2394 = vrot.slane %v2385, %v2393
        %v2397 = vmul.f32 %v2321, %v2390
        %v2398 = vmul.f32 %v2322, %v2394
        %v2399 = vmul.f32 %v2323, %v2390
        %v2400 = vmul.f32 %v2324, %v2394
        %v2401 = vmul.f32 %v2325, %v2390
        %v2402 = vmul.f32 %v2326, %v2394
        %v2403 = vmul.f32 %v2327, %v2390
        %v2404 = vmul.f32 %v2328, %v2394
        %v2405 = vmul.f32 %v2329, %v2390
        %v2406 = vmul.f32 %v2330, %v2394
        %v2407 = vmul.f32 %v2331, %v2390
        %v2408 = vmul.f32 %v2332, %v2394
        %v2409 = vmul.f32 %v2333, %v2390
        %v2410 = vmul.f32 %v2334, %v2394
        %v2411 = vmul.f32 %v2335, %v2390
        %v2412 = vmul.f32 %v2336, %v2394
        %v2413 = vmul.f32 %v2337, %v2390
        %v2414 = vmul.f32 %v2338, %v2394
        %v2415 = vmul.f32 %v2339, %v2390
        %v2416 = vmul.f32 %v2340, %v2394
        %v2417 = vmul.f32 %v2341, %v2390
        %v2418 = vmul.f32 %v2342, %v2394
        %v2419 = vmul.f32 %v2343, %v2390
        %v2420 = vmul.f32 %v2344, %v2394
        %v2421 = vmul.f32 %v2345, %v2390
        %v2422 = vmul.f32 %v2346, %v2394
        %v2423 = vmul.f32 %v2347, %v2390
        %v2424 = vmul.f32 %v2348, %v2394
        %v2425 = vmul.f32 %v2349, %v2390
        %v2426 = vmul.f32 %v2350, %v2394
        %v2427 = vmul.f32 %v2351, %v2390
        %v2428 = vmul.f32 %v2352, %v2394
        %v2429 = vmul.f32 %v2353, %v2390
        %v2430 = vmul.f32 %v2354, %v2394
        %v2431 = vmul.f32 %v2355, %v2390
        %v2432 = vmul.f32 %v2356, %v2394
        %v2433 = vmul.f32 %v2357, %v2390
        %v2434 = vmul.f32 %v2358, %v2394
        %v2435 = vmul.f32 %v2359, %v2390
        %v2436 = vmul.f32 %v2360, %v2394
        %v2437 = vmul.f32 %v2361, %v2390
        %v2438 = vmul.f32 %v2362, %v2394
        %v2439 = vmul.f32 %v2363, %v2390
        %v2440 = vmul.f32 %v2364, %v2394
        %v2441 = vmul.f32 %v2365, %v2390
        %v2442 = vmul.f32 %v2366, %v2394
        %v2443 = vmul.f32 %v2367, %v2390
        %v2444 = vmul.f32 %v2368, %v2394
        %v2445 = vmul.f32 %v2369, %v2390
        %v2446 = vmul.f32 %v2370, %v2394
        %v2447 = vmul.f32 %v2371, %v2390
        %v2448 = vmul.f32 %v2372, %v2394
        %v2449 = vmul.f32 %v2373, %v2390
        %v2450 = vmul.f32 %v2374, %v2394
        %v2451 = vmul.f32 %v2375, %v2390
        %v2452 = vmul.f32 %v2376, %v2394
        %v2453 = vmul.f32 %v2377, %v2390
        %v2454 = vmul.f32 %v2378, %v2394
        %v2455 = vmul.f32 %v2379, %v2390
        %v2456 = vmul.f32 %v2380, %v2394
        %v2457 = vmul.f32 %v2381, %v2390
        %v2458 = vmul.f32 %v2382, %v2394
        %v2459 = vmul.f32 %v2383, %v2390
        %v2460 = vmul.f32 %v2384, %v2394
        %v2461 = vld [vmem:[%s229] sm:$0x3]
        %v2463 = vlaneseq
        %v2464 = vshrl.u32 %v2463, 7
        %v2465 = vsub.s32 0, %v2464
        %v2466 = vrot.slane %v2461, %v2465
        %v2467 = vlaneseq
        %v2468 = vshrl.u32 %v2467, 7
        %v2469 = vsub.s32 1, %v2468
        %v2470 = vrot.slane %v2461, %v2469
        %v2473 = vadd.f32 %v2397, %v2466
        %v2474 = vadd.f32 %v2398, %v2470
        %v2475 = vadd.f32 %v2399, %v2466
        %v2476 = vadd.f32 %v2400, %v2470
        %v2477 = vadd.f32 %v2401, %v2466
        %v2478 = vadd.f32 %v2402, %v2470
        %v2479 = vadd.f32 %v2403, %v2466
        %v2480 = vadd.f32 %v2404, %v2470
        %v2481 = vadd.f32 %v2405, %v2466
        %v2482 = vadd.f32 %v2406, %v2470
        %v2483 = vadd.f32 %v2407, %v2466
        %v2484 = vadd.f32 %v2408, %v2470
        %v2485 = vadd.f32 %v2409, %v2466
        %v2486 = vadd.f32 %v2410, %v2470
        %v2487 = vadd.f32 %v2411, %v2466
        %v2488 = vadd.f32 %v2412, %v2470
        %v2489 = vadd.f32 %v2413, %v2466
        %v2490 = vadd.f32 %v2414, %v2470
        %v2491 = vadd.f32 %v2415, %v2466
        %v2492 = vadd.f32 %v2416, %v2470
        %v2493 = vadd.f32 %v2417, %v2466
        %v2494 = vadd.f32 %v2418, %v2470
        %v2495 = vadd.f32 %v2419, %v2466
        %v2496 = vadd.f32 %v2420, %v2470
        %v2497 = vadd.f32 %v2421, %v2466
        %v2498 = vadd.f32 %v2422, %v2470
        %v2499 = vadd.f32 %v2423, %v2466
        %v2500 = vadd.f32 %v2424, %v2470
        %v2501 = vadd.f32 %v2425, %v2466
        %v2502 = vadd.f32 %v2426, %v2470
        %v2503 = vadd.f32 %v2427, %v2466
        %v2504 = vadd.f32 %v2428, %v2470
        %v2505 = vadd.f32 %v2429, %v2466
        %v2506 = vadd.f32 %v2430, %v2470
        %v2507 = vadd.f32 %v2431, %v2466
        %v2508 = vadd.f32 %v2432, %v2470
        %v2509 = vadd.f32 %v2433, %v2466
        %v2510 = vadd.f32 %v2434, %v2470
        %v2511 = vadd.f32 %v2435, %v2466
        %v2512 = vadd.f32 %v2436, %v2470
        %v2513 = vadd.f32 %v2437, %v2466
        %v2514 = vadd.f32 %v2438, %v2470
        %v2515 = vadd.f32 %v2439, %v2466
        %v2516 = vadd.f32 %v2440, %v2470
        %v2517 = vadd.f32 %v2441, %v2466
        %v2518 = vadd.f32 %v2442, %v2470
        %v2519 = vadd.f32 %v2443, %v2466
        %v2520 = vadd.f32 %v2444, %v2470
        %v2521 = vadd.f32 %v2445, %v2466
        %v2522 = vadd.f32 %v2446, %v2470
        %v2523 = vadd.f32 %v2447, %v2466
        %v2524 = vadd.f32 %v2448, %v2470
        %v2525 = vadd.f32 %v2449, %v2466
        %v2526 = vadd.f32 %v2450, %v2470
        %v2527 = vadd.f32 %v2451, %v2466
        %v2528 = vadd.f32 %v2452, %v2470
        %v2529 = vadd.f32 %v2453, %v2466
        %v2530 = vadd.f32 %v2454, %v2470
        %v2531 = vadd.f32 %v2455, %v2466
        %v2532 = vadd.f32 %v2456, %v2470
        %v2533 = vadd.f32 %v2457, %v2466
        %v2534 = vadd.f32 %v2458, %v2470
        %v2535 = vadd.f32 %v2459, %v2466
        %v2536 = vadd.f32 %v2460, %v2470
        %v2537 = vmax.f32 %v2473, 0.0
        %v2538 = vmax.f32 %v2474, 0.0
        %v2539 = vmax.f32 %v2475, 0.0
        %v2540 = vmax.f32 %v2476, 0.0
        %v2541 = vmax.f32 %v2477, 0.0
        %v2542 = vmax.f32 %v2478, 0.0
        %v2543 = vmax.f32 %v2479, 0.0
        %v2544 = vmax.f32 %v2480, 0.0
        %v2545 = vmax.f32 %v2481, 0.0
        %v2546 = vmax.f32 %v2482, 0.0
        %v2547 = vmax.f32 %v2483, 0.0
        %v2548 = vmax.f32 %v2484, 0.0
        %v2549 = vmax.f32 %v2485, 0.0
        %v2550 = vmax.f32 %v2486, 0.0
        %v2551 = vmax.f32 %v2487, 0.0
        %v2552 = vmax.f32 %v2488, 0.0
        %v2553 = vmax.f32 %v2489, 0.0
        %v2554 = vmax.f32 %v2490, 0.0
        %v2555 = vmax.f32 %v2491, 0.0
        %v2556 = vmax.f32 %v2492, 0.0
        %v2557 = vmax.f32 %v2493, 0.0
        %v2558 = vmax.f32 %v2494, 0.0
        %v2559 = vmax.f32 %v2495, 0.0
        %v2560 = vmax.f32 %v2496, 0.0
        %v2561 = vmax.f32 %v2497, 0.0
        %v2562 = vmax.f32 %v2498, 0.0
        %v2563 = vmax.f32 %v2499, 0.0
        %v2564 = vmax.f32 %v2500, 0.0
        %v2565 = vmax.f32 %v2501, 0.0
        %v2566 = vmax.f32 %v2502, 0.0
        %v2567 = vmax.f32 %v2503, 0.0
        %v2568 = vmax.f32 %v2504, 0.0
        %v2569 = vmax.f32 %v2505, 0.0
        %v2570 = vmax.f32 %v2506, 0.0
        %v2571 = vmax.f32 %v2507, 0.0
        %v2572 = vmax.f32 %v2508, 0.0
        %v2573 = vmax.f32 %v2509, 0.0
        %v2574 = vmax.f32 %v2510, 0.0
        %v2575 = vmax.f32 %v2511, 0.0
        %v2576 = vmax.f32 %v2512, 0.0
        %v2577 = vmax.f32 %v2513, 0.0
        %v2578 = vmax.f32 %v2514, 0.0
        %v2579 = vmax.f32 %v2515, 0.0
        %v2580 = vmax.f32 %v2516, 0.0
        %v2581 = vmax.f32 %v2517, 0.0
        %v2582 = vmax.f32 %v2518, 0.0
        %v2583 = vmax.f32 %v2519, 0.0
        %v2584 = vmax.f32 %v2520, 0.0
        %v2585 = vmax.f32 %v2521, 0.0
        %v2586 = vmax.f32 %v2522, 0.0
        %v2587 = vmax.f32 %v2523, 0.0
        %v2588 = vmax.f32 %v2524, 0.0
        %v2589 = vmax.f32 %v2525, 0.0
        %v2590 = vmax.f32 %v2526, 0.0
        %v2591 = vmax.f32 %v2527, 0.0
        %v2592 = vmax.f32 %v2528, 0.0
        %v2593 = vmax.f32 %v2529, 0.0
        %v2594 = vmax.f32 %v2530, 0.0
        %v2595 = vmax.f32 %v2531, 0.0
        %v2596 = vmax.f32 %v2532, 0.0
        %v2597 = vmax.f32 %v2533, 0.0
        %v2598 = vmax.f32 %v2534, 0.0
        %v2599 = vmax.f32 %v2535, 0.0
        %v2600 = vmax.f32 %v2536, 0.0
        %v2601 = vpack.c.bf16 %v2539, %v2537
        %v2602 = vpack.c.bf16 %v2540, %v2538
        %v2603 = vpack.c.bf16 %v2543, %v2541
        %v2604 = vpack.c.bf16 %v2544, %v2542
        %v2605 = vpack.c.bf16 %v2547, %v2545
        %v2606 = vpack.c.bf16 %v2548, %v2546
        %v2607 = vpack.c.bf16 %v2551, %v2549
        %v2608 = vpack.c.bf16 %v2552, %v2550
        %v2609 = vpack.c.bf16 %v2555, %v2553
        %v2610 = vpack.c.bf16 %v2556, %v2554
        %v2611 = vpack.c.bf16 %v2559, %v2557
        %v2612 = vpack.c.bf16 %v2560, %v2558
        %v2613 = vpack.c.bf16 %v2563, %v2561
        %v2614 = vpack.c.bf16 %v2564, %v2562
        %v2615 = vpack.c.bf16 %v2567, %v2565
        %v2616 = vpack.c.bf16 %v2568, %v2566
        %v2617 = vpack.c.bf16 %v2571, %v2569
        %v2618 = vpack.c.bf16 %v2572, %v2570
        %v2619 = vpack.c.bf16 %v2575, %v2573
        %v2620 = vpack.c.bf16 %v2576, %v2574
        %v2621 = vpack.c.bf16 %v2579, %v2577
        %v2622 = vpack.c.bf16 %v2580, %v2578
        %v2623 = vpack.c.bf16 %v2583, %v2581
        %v2624 = vpack.c.bf16 %v2584, %v2582
        %v2625 = vpack.c.bf16 %v2587, %v2585
        %v2626 = vpack.c.bf16 %v2588, %v2586
        %v2627 = vpack.c.bf16 %v2591, %v2589
        %v2628 = vpack.c.bf16 %v2592, %v2590
        %v2629 = vpack.c.bf16 %v2595, %v2593
        %v2630 = vpack.c.bf16 %v2596, %v2594
        %v2631 = vpack.c.bf16 %v2599, %v2597
        %v2632 = vpack.c.bf16 %v2600, %v2598
        %v2665 = vunpack.c.l.b16 %v2601
        %v2666 = vunpack.c.l.b16 %v2602
        %v2667 = vunpack.c.h.b16 %v2601
        %v2668 = vunpack.c.h.b16 %v2602
        %v2669 = vunpack.c.l.b16 %v2603
        %v2670 = vunpack.c.l.b16 %v2604
        %v2671 = vunpack.c.h.b16 %v2603
        %v2672 = vunpack.c.h.b16 %v2604
        %v2673 = vunpack.c.l.b16 %v2605
        %v2674 = vunpack.c.l.b16 %v2606
        %v2675 = vunpack.c.h.b16 %v2605
        %v2676 = vunpack.c.h.b16 %v2606
        %v2677 = vunpack.c.l.b16 %v2607
        %v2678 = vunpack.c.l.b16 %v2608
        %v2679 = vunpack.c.h.b16 %v2607
        %v2680 = vunpack.c.h.b16 %v2608
        %v2681 = vunpack.c.l.b16 %v2609
        %v2682 = vunpack.c.l.b16 %v2610
        %v2683 = vunpack.c.h.b16 %v2609
        %v2684 = vunpack.c.h.b16 %v2610
        %v2685 = vunpack.c.l.b16 %v2611
        %v2686 = vunpack.c.l.b16 %v2612
        %v2687 = vunpack.c.h.b16 %v2611
        %v2688 = vunpack.c.h.b16 %v2612
        %v2689 = vunpack.c.l.b16 %v2613
        %v2690 = vunpack.c.l.b16 %v2614
        %v2691 = vunpack.c.h.b16 %v2613
        %v2692 = vunpack.c.h.b16 %v2614
        %v2693 = vunpack.c.l.b16 %v2615
        %v2694 = vunpack.c.l.b16 %v2616
        %v2695 = vunpack.c.h.b16 %v2615
        %v2696 = vunpack.c.h.b16 %v2616
        %v2697 = vunpack.c.l.b16 %v2617
        %v2698 = vunpack.c.l.b16 %v2618
        %v2699 = vunpack.c.h.b16 %v2617
        %v2700 = vunpack.c.h.b16 %v2618
        %v2701 = vunpack.c.l.b16 %v2619
        %v2702 = vunpack.c.l.b16 %v2620
        %v2703 = vunpack.c.h.b16 %v2619
        %v2704 = vunpack.c.h.b16 %v2620
        %v2705 = vunpack.c.l.b16 %v2621
        %v2706 = vunpack.c.l.b16 %v2622
        %v2707 = vunpack.c.h.b16 %v2621
        %v2708 = vunpack.c.h.b16 %v2622
        %v2709 = vunpack.c.l.b16 %v2623
        %v2710 = vunpack.c.l.b16 %v2624
        %v2711 = vunpack.c.h.b16 %v2623
        %v2712 = vunpack.c.h.b16 %v2624
        %v2713 = vunpack.c.l.b16 %v2625
        %v2714 = vunpack.c.l.b16 %v2626
        %v2715 = vunpack.c.h.b16 %v2625
        %v2716 = vunpack.c.h.b16 %v2626
        %v2717 = vunpack.c.l.b16 %v2627
        %v2718 = vunpack.c.l.b16 %v2628
        %v2719 = vunpack.c.h.b16 %v2627
        %v2720 = vunpack.c.h.b16 %v2628
        %v2721 = vunpack.c.l.b16 %v2629
        %v2722 = vunpack.c.l.b16 %v2630
        %v2723 = vunpack.c.h.b16 %v2629
        %v2724 = vunpack.c.h.b16 %v2630
        %v2725 = vunpack.c.l.b16 %v2631
        %v2726 = vunpack.c.l.b16 %v2632
        %v2727 = vunpack.c.h.b16 %v2631
        %v2728 = vunpack.c.h.b16 %v2632
        %v2729 = vpack.c.b16 %v2666, %v2665
        %v2730 = vpack.c.b16 %v2668, %v2667
        %v2731 = vpack.c.b16 %v2670, %v2669
        %v2732 = vpack.c.b16 %v2672, %v2671
        %v2733 = vpack.c.b16 %v2674, %v2673
        %v2734 = vpack.c.b16 %v2676, %v2675
        %v2735 = vpack.c.b16 %v2678, %v2677
        %v2736 = vpack.c.b16 %v2680, %v2679
        %v2737 = vpack.c.b16 %v2682, %v2681
        %v2738 = vpack.c.b16 %v2684, %v2683
        %v2739 = vpack.c.b16 %v2686, %v2685
        %v2740 = vpack.c.b16 %v2688, %v2687
        %v2741 = vpack.c.b16 %v2690, %v2689
        %v2742 = vpack.c.b16 %v2692, %v2691
        %v2743 = vpack.c.b16 %v2694, %v2693
        %v2744 = vpack.c.b16 %v2696, %v2695
        %v2745 = vpack.c.b16 %v2698, %v2697
        %v2746 = vpack.c.b16 %v2700, %v2699
        %v2747 = vpack.c.b16 %v2702, %v2701
        %v2748 = vpack.c.b16 %v2704, %v2703
        %v2749 = vpack.c.b16 %v2706, %v2705
        %v2750 = vpack.c.b16 %v2708, %v2707
        %v2751 = vpack.c.b16 %v2710, %v2709
        %v2752 = vpack.c.b16 %v2712, %v2711
        %v2753 = vpack.c.b16 %v2714, %v2713
        %v2754 = vpack.c.b16 %v2716, %v2715
        %v2755 = vpack.c.b16 %v2718, %v2717
        %v2756 = vpack.c.b16 %v2720, %v2719
        %v2757 = vpack.c.b16 %v2722, %v2721
        %v2758 = vpack.c.b16 %v2724, %v2723
        %v2759 = vpack.c.b16 %v2726, %v2725
        %v2760 = vpack.c.b16 %v2728, %v2727
        %vm2793 = vcmask 1043456
        %vm2794 = vcmask 326660
        %vm2795 = vmor %vm2794, %vm2793
        %2796 = vst.msk [vmem:[%s273] sm:$0xff] %vm2795, %v2729
        %2797 = vst.msk [vmem:[%s273 + $0x8] sm:$0xff] %vm2795, %v2730
        %2798 = vst.msk [vmem:[%s273 + $0x10] sm:$0xff] %vm2795, %v2731
        %2799 = vst.msk [vmem:[%s273 + $0x18] sm:$0xff] %vm2795, %v2732
        %2800 = vst.msk [vmem:[%s273 + $0x20] sm:$0xff] %vm2795, %v2733
        %2801 = vst.msk [vmem:[%s273 + $0x28] sm:$0xff] %vm2795, %v2734
        %2802 = vst.msk [vmem:[%s273 + $0x30] sm:$0xff] %vm2795, %v2735
        %2803 = vst.msk [vmem:[%s273 + $0x38] sm:$0xff] %vm2795, %v2736
        %2804 = vst.msk [vmem:[%s273 + $0x40] sm:$0xff] %vm2795, %v2737
        %2805 = vst.msk [vmem:[%s273 + $0x48] sm:$0xff] %vm2795, %v2738
        %2806 = vst.msk [vmem:[%s273 + $0x50] sm:$0xff] %vm2795, %v2739
        %2807 = vst.msk [vmem:[%s273 + $0x58] sm:$0xff] %vm2795, %v2740
        %2808 = vst.msk [vmem:[%s273 + $0x60] sm:$0xff] %vm2795, %v2741
        %2809 = vst.msk [vmem:[%s273 + $0x68] sm:$0xff] %vm2795, %v2742
        %2810 = vst.msk [vmem:[%s273 + $0x70] sm:$0xff] %vm2795, %v2743
        %2811 = vst.msk [vmem:[%s273 + $0x78] sm:$0xff] %vm2795, %v2744
        %2812 = vst.msk [vmem:[%s273 + $0x80] sm:$0xff] %vm2795, %v2745
        %2813 = vst.msk [vmem:[%s273 + $0x88] sm:$0xff] %vm2795, %v2746
        %2814 = vst.msk [vmem:[%s273 + $0x90] sm:$0xff] %vm2795, %v2747
        %2815 = vst.msk [vmem:[%s273 + $0x98] sm:$0xff] %vm2795, %v2748
        %2816 = vst.msk [vmem:[%s273 + $0xa0] sm:$0xff] %vm2795, %v2749
        %2817 = vst.msk [vmem:[%s273 + $0xa8] sm:$0xff] %vm2795, %v2750
        %2818 = vst.msk [vmem:[%s273 + $0xb0] sm:$0xff] %vm2795, %v2751
        %2819 = vst.msk [vmem:[%s273 + $0xb8] sm:$0xff] %vm2795, %v2752
        %2820 = vst.msk [vmem:[%s273 + $0xc0] sm:$0xff] %vm2795, %v2753
        %2821 = vst.msk [vmem:[%s273 + $0xc8] sm:$0xff] %vm2795, %v2754
        %2822 = vst.msk [vmem:[%s273 + $0xd0] sm:$0xff] %vm2795, %v2755
        %2823 = vst.msk [vmem:[%s273 + $0xd8] sm:$0xff] %vm2795, %v2756
        %2824 = vst.msk [vmem:[%s273 + $0xe0] sm:$0xff] %vm2795, %v2757
        %2825 = vst.msk [vmem:[%s273 + $0xe8] sm:$0xff] %vm2795, %v2758
        %2826 = vst.msk [vmem:[%s273 + $0xf0] sm:$0xff] %vm2795, %v2759
        %2827 = vst.msk [vmem:[%s273 + $0xf8] sm:$0xff] %vm2795, %v2760
        %p2828 = scmp.lt.s32.totalorder %s21, 7
        %s2829 = scalar_select %p2828, %s21, 7
        %s2830 = smul.addr %s2829, 64
        %s2831 = smul.addr %s2830, 4
        %s2832 = scalar_lea.vmem %s4, %s2831
        // Predicated region
        $region45: #{forward.2} parent=35 // pred_check
          %p2833 = pneg %p138
        $region46: #{forward.2} parent=35 // pred_check_branch
          %2835 = sbr.rel (%p2833) target = $region48
        $region47: #{forward.2} parent=35 // pred_region
          _
        $region48: #{forward.2} parent=35 // pred_fallthru
          _
      $region36: #{forward.2} parent=5 // pred_fallthru
        _
      %p2836 = scmp.le.s32.totalorder 2, %s16
      // Predicated region
      $region49: #{forward.2} parent=5 // pred_check
        %p2837 = pneg %p2836
      $region50: #{forward.2} parent=5 // pred_check_branch
        %2839 = sbr.rel (%p2837) target = $region52
      $region51: #{forward.2} parent=5 // pred_region
        %s2840 = ssub.s32 %s16, 2
        // Predicated region
        $region53: #{forward.2} parent=51 // pred_check
          %p2841 = pneg %p144
        $region54: #{forward.2} parent=51 // pred_check_branch
          %2843 = sbr.rel (%p2841) target = $region56
        $region55: #{forward.2} parent=51 // pred_region
          %p2844 = scmp.lt.s32.totalorder %s22, 7
          %s2845 = scalar_select %p2844, %s22, 7
          %s2846 = smul.addr %s2845, 64
          %s2847 = smul.addr %s2846, 4
          %s2848 = scalar_lea.vmem %s4, %s2847
        $region56: #{forward.2} parent=51 // pred_fallthru
          _
      $region52: #{forward.2} parent=5 // pred_fallthru
        _
    $region6: #{forward.2} parent=1 // loop_footer
      %s20 = sadd.s32 1, %s16
    $region7: #{forward.2} parent=1 // loop_footer_branch
      %15 = sbr.rel target = $region3
    $region8: #{forward.2} parent=1 // loop_exit
      _
    %2849 = vsyncpa [#allocation3], 1
    %s2850 = scalar_lea.sflag [#allocation3], 1
    %2851 = vsyncpa %s2850, 1
    %2852 = vsyncpa [#allocation5], 1
    %s2853 = scalar_lea.sflag [#allocation5], 1
    %2854 = vsyncpa %s2853, 1

// kernel: forward.3
$region0: #{forward.3}
  #allocation0 [shape = 'u32[]', space=smem, size = 0x4, offset = 0x4, fixed_abs, tag = 'smem constant byte address 0x4 - core index']
  #allocation1 [shape = 'u32[144,128]{1,0:T(1,128)}', space=vmem, size = 0x12000, scoped, tag = 'internal scratch']
  %s0 = inlined_call_operand.vmem [shape: bf16[8,8,2,8,336], index: 0, kind: input, shape index: {}]
  %s1 = inlined_call_operand.vmem [shape: bf16[8,6,336,168], index: 1, kind: input, shape index: {}]
  %s2 = inlined_call_operand.vmem [shape: f32[8,1,168], index: 2, kind: input, shape index: {}]
  %s3 = inlined_call_operand.vmem [shape: f32[8,1,168], index: 3, kind: input, shape index: {}]
  %s4 = inlined_call_operand.vmem [shape: f32[8,64,168], index: 4, kind: output, shape index: {}]
  %s5 = sld [smem:[#allocation0]]
  $region49: #{forward.3} parent=0
    _
  %s7 = ssub.s32 1, %s5
  %s8 = scalar_select 0, %s7, %s5
  loop: start=0, step=1, limit=10
  $region2: #{forward.3} parent=0 // loop_pre_header
    _
  $region3: #{forward.3} parent=0 // loop_header
    %s10 = sphi 0, %s14
    %p11 = scmp.ge.s32.totalorder %s10, 10
    %s20 = sphi 0, %s22
    %s23 = sphi 0, %s20
    %s24 = sphi 0, %s23
    %s40 = sphi 0, %s24
    %s46 = sphi 0, %s48
    %s49 = sphi 0, %s46
    %s50 = sphi 0, %s49
    %s66 = sphi 0, %s50
    %s72 = sphi 0, %s74
    %s75 = sphi 0, %s72
    %s76 = sphi 0, %s75
    %s92 = sphi 0, %s76
    %s98 = sphi 0, %s100
    %s101 = sphi 0, %s98
    %s102 = sphi 0, %s101
    %s118 = sphi 0, %s102
    %s124 = sphi 0, %s126
    %s127 = sphi 0, %s124
    %s128 = sphi 0, %s127
    %s144 = sphi 0, %s128
  $region4: #{forward.3} parent=0 // loop_header_branch
    %13 = sbr.rel (%p11) target = $region8
  $region5: #{forward.3} parent=0 // loop_body
    %s15 = ssub.s32 %s10, 1
    %s16 = ssub.s32 %s10, 2
    %s17 = sadd.s32 %s10, 1
    %s18 = ssub.s32 %s10, %s17
    %p19 = scmp.eq.s32.totalorder %s18, 0
    %s21 = sadd.s32 %s20, 1
    %s22 = scalar_select %p19, %s20, %s21
    %p25 = pneg %p19
    %p26 = scmp.eq.s32.totalorder %s10, 7
    %p27 = por %p25, %p26
    %p28 = scmp.ne.s32.totalorder %s20, %s23
    %p29 = scmp.eq.s32.totalorder %s10, 0
    %p30 = por %p28, %p29
    %p31 = scmp.ne.s32.totalorder %s20, %s23
    %p32 = scmp.eq.s32.totalorder %s15, 7
    %p33 = por %p31, %p32
    %p34 = scmp.ne.s32.totalorder %s23, %s24
    %p35 = scmp.eq.s32.totalorder %s15, 0
    %p36 = por %p34, %p35
    %p37 = scmp.ne.s32.totalorder %s23, %s24
    %p38 = scmp.eq.s32.totalorder %s16, 7
    %p39 = por %p37, %p38
    %p41 = scmp.ne.s32.totalorder %s24, %s40
    %p42 = scmp.eq.s32.totalorder %s16, 0
    %p43 = por %p41, %p42
    %s44 = ssub.s32 %s10, %s17
    %p45 = scmp.eq.s32.totalorder %s44, 0
    %s47 = sadd.s32 %s46, 1
    %s48 = scalar_select %p45, %s46, %s47
    %p51 = pneg %p45
    %p52 = scmp.eq.s32.totalorder %s10, 7
    %p53 = por %p51, %p52
    %p54 = scmp.ne.s32.totalorder %s46, %s49
    %p55 = scmp.eq.s32.totalorder %s10, 0
    %p56 = por %p54, %p55
    %p57 = scmp.ne.s32.totalorder %s46, %s49
    %p58 = scmp.eq.s32.totalorder %s15, 7
    %p59 = por %p57, %p58
    %p60 = scmp.ne.s32.totalorder %s49, %s50
    %p61 = scmp.eq.s32.totalorder %s15, 0
    %p62 = por %p60, %p61
    %p63 = scmp.ne.s32.totalorder %s49, %s50
    %p64 = scmp.eq.s32.totalorder %s16, 7
    %p65 = por %p63, %p64
    %p67 = scmp.ne.s32.totalorder %s50, %s66
    %p68 = scmp.eq.s32.totalorder %s16, 0
    %p69 = por %p67, %p68
    %s70 = ssub.s32 %s10, %s17
    %p71 = scmp.eq.s32.totalorder %s70, 0
    %s73 = sadd.s32 %s72, 1
    %s74 = scalar_select %p71, %s72, %s73
    %p77 = pneg %p71
    %p78 = scmp.eq.s32.totalorder %s10, 7
    %p79 = por %p77, %p78
    %p80 = scmp.ne.s32.totalorder %s72, %s75
    %p81 = scmp.eq.s32.totalorder %s10, 0
    %p82 = por %p80, %p81
    %p83 = scmp.ne.s32.totalorder %s72, %s75
    %p84 = scmp.eq.s32.totalorder %s15, 7
    %p85 = por %p83, %p84
    %p86 = scmp.ne.s32.totalorder %s75, %s76
    %p87 = scmp.eq.s32.totalorder %s15, 0
    %p88 = por %p86, %p87
    %p89 = scmp.ne.s32.totalorder %s75, %s76
    %p90 = scmp.eq.s32.totalorder %s16, 7
    %p91 = por %p89, %p90
    %p93 = scmp.ne.s32.totalorder %s76, %s92
    %p94 = scmp.eq.s32.totalorder %s16, 0
    %p95 = por %p93, %p94
    %s96 = ssub.s32 %s10, %s17
    %p97 = scmp.eq.s32.totalorder %s96, 0
    %s99 = sadd.s32 %s98, 1
    %s100 = scalar_select %p97, %s98, %s99
    %p103 = pneg %p97
    %p104 = scmp.eq.s32.totalorder %s10, 7
    %p105 = por %p103, %p104
    %p106 = scmp.ne.s32.totalorder %s98, %s101
    %p107 = scmp.eq.s32.totalorder %s10, 0
    %p108 = por %p106, %p107
    %p109 = scmp.ne.s32.totalorder %s98, %s101
    %p110 = scmp.eq.s32.totalorder %s15, 7
    %p111 = por %p109, %p110
    %p112 = scmp.ne.s32.totalorder %s101, %s102
    %p113 = scmp.eq.s32.totalorder %s15, 0
    %p114 = por %p112, %p113
    %p115 = scmp.ne.s32.totalorder %s101, %s102
    %p116 = scmp.eq.s32.totalorder %s16, 7
    %p117 = por %p115, %p116
    %p119 = scmp.ne.s32.totalorder %s102, %s118
    %p120 = scmp.eq.s32.totalorder %s16, 0
    %p121 = por %p119, %p120
    %s122 = ssub.s32 %s10, %s17
    %p123 = scmp.eq.s32.totalorder %s122, 0
    %s125 = sadd.s32 %s124, 1
    %s126 = scalar_select %p123, %s124, %s125
    %p129 = pneg %p123
    %p130 = scmp.eq.s32.totalorder %s10, 7
    %p131 = por %p129, %p130
    %p132 = scmp.ne.s32.totalorder %s124, %s127
    %p133 = scmp.eq.s32.totalorder %s10, 0
    %p134 = por %p132, %p133
    %p135 = scmp.ne.s32.totalorder %s124, %s127
    %p136 = scmp.eq.s32.totalorder %s15, 7
    %p137 = por %p135, %p136
    %p138 = scmp.ne.s32.totalorder %s127, %s128
    %p139 = scmp.eq.s32.totalorder %s15, 0
    %p140 = por %p138, %p139
    %p141 = scmp.ne.s32.totalorder %s127, %s128
    %p142 = scmp.eq.s32.totalorder %s16, 7
    %p143 = por %p141, %p142
    %p145 = scmp.ne.s32.totalorder %s128, %s144
    %p146 = scmp.eq.s32.totalorder %s16, 0
    %p147 = por %p145, %p146
    %p148 = scmp.le.s32.totalorder 1, %s10
    %p149 = scmp.lt.s32.totalorder %s10, 9
    %p150 = pnand %p148, %p149
    %p151 = pneg %p150
    // Predicated region
    $region9: #{forward.3} parent=5 // pred_check
      _
    $region10: #{forward.3} parent=5 // pred_check_branch
      %153 = sbr.rel (%p150) target = $region12
    $region11: #{forward.3} parent=5 // pred_region
      %s154 = ssub.s32 %s10, 1
    $region12: #{forward.3} parent=5 // pred_fallthru
      _
    %p155 = scmp.lt.s32.totalorder %s10, 8
    // Predicated region
    $region13: #{forward.3} parent=5 // pred_check
      %p156 = pneg %p155
    $region14: #{forward.3} parent=5 // pred_check_branch
      %158 = sbr.rel (%p156) target = $region16
    $region15: #{forward.3} parent=5 // pred_region
      // Predicated region
      $region17: #{forward.3} parent=15 // pred_check
        %p159 = pneg %p30
      $region18: #{forward.3} parent=15 // pred_check_branch
        %161 = sbr.rel (%p159) target = $region20
      $region19: #{forward.3} parent=15 // pred_region
        %p162 = scmp.lt.s32.totalorder %s10, 7
        %s163 = scalar_select %p162, %s10, 7
        %s164 = smul.addr %s163, 48
        %s165 = smul.addr %s164, 4
        %s166 = scalar_lea.vmem %s0, %s165
      $region20: #{forward.3} parent=15 // pred_fallthru
        _
      // Predicated region
      $region21: #{forward.3} parent=15 // pred_check
        %p167 = pneg %p56
      $region22: #{forward.3} parent=15 // pred_check_branch
        %169 = sbr.rel (%p167) target = $region24
      $region23: #{forward.3} parent=15 // pred_region
        %p170 = scmp.lt.s32.totalorder %s10, 7
        %s171 = scalar_select %p170, %s10, 7
        %s172 = smul.addr %s171, 504
        %s173 = smul.addr %s172, 4
        %s174 = scalar_lea.vmem %s1, %s173
      $region24: #{forward.3} parent=15 // pred_fallthru
        _
      // Predicated region
      $region25: #{forward.3} parent=15 // pred_check
        %p175 = pneg %p82
      $region26: #{forward.3} parent=15 // pred_check_branch
        %177 = sbr.rel (%p175) target = $region28
      $region27: #{forward.3} parent=15 // pred_region
        %p178 = scmp.lt.s32.totalorder %s10, 7
        %s179 = scalar_select %p178, %s10, 7
        %s180 = smul.addr %s179, 2
        %s181 = scalar_lea.vmem %s2, %s180
      $region28: #{forward.3} parent=15 // pred_fallthru
        _
      // Predicated region
      $region29: #{forward.3} parent=15 // pred_check
        %p182 = pneg %p108
      $region30: #{forward.3} parent=15 // pred_check_branch
        %184 = sbr.rel (%p182) target = $region32
      $region31: #{forward.3} parent=15 // pred_region
        %p185 = scmp.lt.s32.totalorder %s10, 7
        %s186 = scalar_select %p185, %s10, 7
        %s187 = smul.addr %s186, 2
        %s188 = scalar_lea.vmem %s3, %s187
      $region32: #{forward.3} parent=15 // pred_fallthru
        _
    $region16: #{forward.3} parent=5 // pred_fallthru
      _
    %p189 = scmp.le.s32.totalorder 1, %s10
    %p190 = scmp.lt.s32.totalorder %s10, 9
    %p191 = pnand %p189, %p190
    %p192 = pneg %p191
    // Predicated region
    $region33: #{forward.3} parent=5 // pred_check
      _
    $region34: #{forward.3} parent=5 // pred_check_branch
      %194 = sbr.rel (%p191) target = $region36
    $region35: #{forward.3} parent=5 // pred_region
      %s195 = ssub.s32 %s10, 1
      %p196 = scmp.lt.s32.totalorder %s15, 7
      %s197 = scalar_select %p196, %s15, 7
      %s198 = smul.addr %s197, 48
      %s199 = smul.addr %s198, 4
      %s200 = scalar_lea.vmem %s0, %s199
      %p201 = pneg %p36
      %p202 = pneg %p33
      %p203 = scmp.lt.s32.totalorder %s15, 7
      %s204 = scalar_select %p203, %s15, 7
      %s205 = smul.addr %s204, 504
      %s206 = smul.addr %s205, 4
      %s207 = scalar_lea.vmem %s1, %s206
      %p208 = pneg %p62
      %p209 = pneg %p59
      %p210 = scmp.lt.s32.totalorder %s15, 7
      %s211 = scalar_select %p210, %s15, 7
      %s212 = smul.addr %s211, 2
      %s213 = scalar_lea.vmem %s2, %s212
      %p214 = pneg %p88
      %p215 = pneg %p85
      %p216 = scmp.lt.s32.totalorder %s15, 7
      %s217 = scalar_select %p216, %s15, 7
      %s218 = smul.addr %s217, 2
      %s219 = scalar_lea.vmem %s3, %s218
      %p220 = pneg %p114
      %p221 = pneg %p111
      %p222 = pneg %p140
      %p223 = pneg %p137
      %p224 = scmp.lt.s32.totalorder %s15, 7
      %s225 = scalar_select %p224, %s15, 7
      %s226 = smul.addr %s225, 16
      %s227 = smul.addr %s226, 8
      %s228 = scalar_lea.vmem %s4, %s227
      %p229 = scmp.lt.s32.totalorder %s15, 7
      %s230 = scalar_select %p229, %s15, 7
      %s231 = smul.addr %s230, 48
      %s232 = smul.addr %s231, 4
      %s233 = scalar_lea.vmem %s0, %s232
      %p234 = scmp.lt.s32.totalorder %s15, 7
      %s235 = scalar_select %p234, %s15, 7
      %s236 = smul.addr %s235, 504
      %s237 = smul.addr %s236, 4
      %s238 = scalar_lea.vmem %s1, %s237
      %p239 = scmp.lt.s32.totalorder %s15, 7
      %s240 = scalar_select %p239, %s15, 7
      %s241 = smul.addr %s240, 2
      %s242 = scalar_lea.vmem %s2, %s241
      %p243 = scmp.lt.s32.totalorder %s15, 7
      %s244 = scalar_select %p243, %s15, 7
      %s245 = smul.addr %s244, 2
      %s246 = scalar_lea.vmem %s3, %s245
      %p247 = scmp.lt.s32.totalorder %s15, 7
      %s248 = scalar_select %p247, %s15, 7
      %s249 = smul.addr %s248, 16
      %s250 = smul.addr %s249, 8
      %s251 = scalar_lea.vmem %s4, %s250
      %v253 = vld [vmem:[%s233] sm:$0xff]
      %v254 = vld [vmem:[%s233 + $0x8] sm:$0xf]
      %v255 = vld [vmem:[%s233 + $0x18] sm:$0xff]
      %v256 = vld [vmem:[%s233 + $0x20] sm:$0xf]
      %v257 = vld [vmem:[%s233 + $0x30] sm:$0xff]
      %v258 = vld [vmem:[%s233 + $0x38] sm:$0xf]
      %v259 = vld [vmem:[%s233 + $0x48] sm:$0xff]
      %v260 = vld [vmem:[%s233 + $0x50] sm:$0xf]
      %v261 = vld [vmem:[%s233 + $0x60] sm:$0xff]
      %v262 = vld [vmem:[%s233 + $0x68] sm:$0xf]
      %v263 = vld [vmem:[%s233 + $0x78] sm:$0xff]
      %v264 = vld [vmem:[%s233 + $0x80] sm:$0xf]
      %v265 = vld [vmem:[%s233 + $0x90] sm:$0xff]
      %v266 = vld [vmem:[%s233 + $0x98] sm:$0xf]
      %v267 = vld [vmem:[%s233 + $0xa8] sm:$0xff]
      %v268 = vld [vmem:[%s233 + $0xb0] sm:$0xf]
      %s269 = scalar_lea.vmem %s233, 12
      %v270 = vld [vmem:[%s269] sm:$0xff]
      %v271 = vld [vmem:[%s269 + $0x8] sm:$0xf]
      %v272 = vld [vmem:[%s269 + $0x18] sm:$0xff]
      %v273 = vld [vmem:[%s269 + $0x20] sm:$0xf]
      %v274 = vld [vmem:[%s269 + $0x30] sm:$0xff]
      %v275 = vld [vmem:[%s269 + $0x38] sm:$0xf]
      %v276 = vld [vmem:[%s269 + $0x48] sm:$0xff]
      %v277 = vld [vmem:[%s269 + $0x50] sm:$0xf]
      %v278 = vld [vmem:[%s269 + $0x60] sm:$0xff]
      %v279 = vld [vmem:[%s269 + $0x68] sm:$0xf]
      %v280 = vld [vmem:[%s269 + $0x78] sm:$0xff]
      %v281 = vld [vmem:[%s269 + $0x80] sm:$0xf]
      %v282 = vld [vmem:[%s269 + $0x90] sm:$0xff]
      %v283 = vld [vmem:[%s269 + $0x98] sm:$0xf]
      %v284 = vld [vmem:[%s269 + $0xa8] sm:$0xff]
      %v285 = vld [vmem:[%s269 + $0xb0] sm:$0xf]
      %v300 = vunpack.c.l.b16 %v270
      %v301 = vunpack.c.h.b16 %v270
      %v302 = vunpack.c.l.b16 %v271
      %v303 = vunpack.c.l.b16 %v272
      %v304 = vunpack.c.h.b16 %v272
      %v305 = vunpack.c.l.b16 %v273
      %v306 = vunpack.c.l.b16 %v274
      %v307 = vunpack.c.h.b16 %v274
      %v308 = vunpack.c.l.b16 %v275
      %v309 = vunpack.c.l.b16 %v276
      %v310 = vunpack.c.h.b16 %v276
      %v311 = vunpack.c.l.b16 %v277
      %v312 = vunpack.c.l.b16 %v278
      %v313 = vunpack.c.h.b16 %v278
      %v314 = vunpack.c.l.b16 %v279
      %v315 = vunpack.c.l.b16 %v280
      %v316 = vunpack.c.h.b16 %v280
      %v317 = vunpack.c.l.b16 %v281
      %v318 = vunpack.c.l.b16 %v282
      %v319 = vunpack.c.h.b16 %v282
      %v320 = vunpack.c.l.b16 %v283
      %v321 = vpack.c.b16 %v300, %v300
      %v322 = vpack.c.b16 %v301, %v301
      %v323 = vpack.c.b16 %v302, %v302
      %v324 = vpack.c.b16 %v306, %v303
      %v325 = vpack.c.b16 %v307, %v304
      %v326 = vpack.c.b16 %v308, %v305
      %v327 = vpack.c.b16 %v312, %v309
      %v328 = vpack.c.b16 %v313, %v310
      %v329 = vpack.c.b16 %v314, %v311
      %v330 = vpack.c.b16 %v318, %v315
      %v331 = vpack.c.b16 %v319, %v316
      %v332 = vpack.c.b16 %v320, %v317
      %vm339 = vcmask 1043456
      %v342 = vsel %vm339, 0, %v321
      %v345 = vsel %vm339, 0, %v322
      %v348 = vsel %vm339, 0, %v323
      %v349 = vld [vmem:[%s238] sm:$0xff]
      %v350 = vld [vmem:[%s238 + $0x8] sm:$0xff]
      %v351 = vld [vmem:[%s238 + $0x10] sm:$0xff]
      %v352 = vld [vmem:[%s238 + $0x18] sm:$0xff]
      %v353 = vld [vmem:[%s238 + $0x20] sm:$0xff]
      %v354 = vld [vmem:[%s238 + $0x28] sm:$0xff]
      %v355 = vld [vmem:[%s238 + $0x30] sm:$0xff]
      %v356 = vld [vmem:[%s238 + $0x38] sm:$0xff]
      %v357 = vld [vmem:[%s238 + $0x40] sm:$0xff]
      %v358 = vld [vmem:[%s238 + $0x48] sm:$0xff]
      %v359 = vld [vmem:[%s238 + $0x50] sm:$0xff]
      %v360 = vld [vmem:[%s238 + $0x58] sm:$0xff]
      %v361 = vld [vmem:[%s238 + $0x60] sm:$0xff]
      %v362 = vld [vmem:[%s238 + $0x68] sm:$0xff]
      %v363 = vld [vmem:[%s238 + $0x70] sm:$0xff]
      %v364 = vld [vmem:[%s238 + $0x78] sm:$0xff]
      %v365 = vld [vmem:[%s238 + $0x80] sm:$0xff]
      %v366 = vld [vmem:[%s238 + $0x88] sm:$0xff]
      %v367 = vld [vmem:[%s238 + $0x90] sm:$0xff]
      %v368 = vld [vmem:[%s238 + $0x98] sm:$0xff]
      %v369 = vld [vmem:[%s238 + $0xa0] sm:$0xff]
      %v370 = vld [vmem:[%s238 + $0xa8] sm:$0xff]
      %v371 = vld [vmem:[%s238 + $0xb0] sm:$0xff]
      %v372 = vld [vmem:[%s238 + $0xb8] sm:$0xff]
      %v373 = vld [vmem:[%s238 + $0xc0] sm:$0xff]
      %v374 = vld [vmem:[%s238 + $0xc8] sm:$0xff]
      %v375 = vld [vmem:[%s238 + $0xd0] sm:$0xff]
      %v376 = vld [vmem:[%s238 + $0xd8] sm:$0xff]
      %v377 = vld [vmem:[%s238 + $0xe0] sm:$0xff]
      %v378 = vld [vmem:[%s238 + $0xe8] sm:$0xff]
      %v379 = vld [vmem:[%s238 + $0xf0] sm:$0xff]
      %v380 = vld [vmem:[%s238 + $0xf8] sm:$0xff]
      %v381 = vld [vmem:[%s238 + $0x100] sm:$0xff]
      %v382 = vld [vmem:[%s238 + $0x108] sm:$0xff]
      %v383 = vld [vmem:[%s238 + $0x110] sm:$0xff]
      %v384 = vld [vmem:[%s238 + $0x118] sm:$0xff]
      %v385 = vld [vmem:[%s238 + $0x120] sm:$0xff]
      %v386 = vld [vmem:[%s238 + $0x128] sm:$0xff]
      %v387 = vld [vmem:[%s238 + $0x130] sm:$0xff]
      %v388 = vld [vmem:[%s238 + $0x138] sm:$0xff]
      %v389 = vld [vmem:[%s238 + $0x140] sm:$0xff]
      %v390 = vld [vmem:[%s238 + $0x148] sm:$0xff]
      %s391 = scalar_lea.vmem %s238, 336
      %v392 = vld [vmem:[%s391] sm:$0xff]
      %v393 = vld [vmem:[%s391 + $0x8] sm:$0xff]
      %v394 = vld [vmem:[%s391 + $0x10] sm:$0xff]
      %v395 = vld [vmem:[%s391 + $0x18] sm:$0xff]
      %v396 = vld [vmem:[%s391 + $0x20] sm:$0xff]
      %v397 = vld [vmem:[%s391 + $0x28] sm:$0xff]
      %v398 = vld [vmem:[%s391 + $0x30] sm:$0xff]
      %v399 = vld [vmem:[%s391 + $0x38] sm:$0xff]
      %v400 = vld [vmem:[%s391 + $0x40] sm:$0xff]
      %v401 = vld [vmem:[%s391 + $0x48] sm:$0xff]
      %v402 = vld [vmem:[%s391 + $0x50] sm:$0xff]
      %v403 = vld [vmem:[%s391 + $0x58] sm:$0xff]
      %v404 = vld [vmem:[%s391 + $0x60] sm:$0xff]
      %v405 = vld [vmem:[%s391 + $0x68] sm:$0xff]
      %v406 = vld [vmem:[%s391 + $0x70] sm:$0xff]
      %v407 = vld [vmem:[%s391 + $0x78] sm:$0xff]
      %v408 = vld [vmem:[%s391 + $0x80] sm:$0xff]
      %v409 = vld [vmem:[%s391 + $0x88] sm:$0xff]
      %v410 = vld [vmem:[%s391 + $0x90] sm:$0xff]
      %v411 = vld [vmem:[%s391 + $0x98] sm:$0xff]
      %v412 = vld [vmem:[%s391 + $0xa0] sm:$0xff]
      %v413 = vld [vmem:[%s391 + $0xa8] sm:$0xff]
      %v414 = vld [vmem:[%s391 + $0xb0] sm:$0xff]
      %v415 = vld [vmem:[%s391 + $0xb8] sm:$0xff]
      %v416 = vld [vmem:[%s391 + $0xc0] sm:$0xff]
      %v417 = vld [vmem:[%s391 + $0xc8] sm:$0xff]
      %v418 = vld [vmem:[%s391 + $0xd0] sm:$0xff]
      %v419 = vld [vmem:[%s391 + $0xd8] sm:$0xff]
      %v420 = vld [vmem:[%s391 + $0xe0] sm:$0xff]
      %v421 = vld [vmem:[%s391 + $0xe8] sm:$0xff]
      %v422 = vld [vmem:[%s391 + $0xf0] sm:$0xff]
      %v423 = vld [vmem:[%s391 + $0xf8] sm:$0xff]
      %v424 = vld [vmem:[%s391 + $0x100] sm:$0xff]
      %v425 = vld [vmem:[%s391 + $0x108] sm:$0xff]
      %v426 = vld [vmem:[%s391 + $0x110] sm:$0xff]
      %v427 = vld [vmem:[%s391 + $0x118] sm:$0xff]
      %v428 = vld [vmem:[%s391 + $0x120] sm:$0xff]
      %v429 = vld [vmem:[%s391 + $0x128] sm:$0xff]
      %v430 = vld [vmem:[%s391 + $0x130] sm:$0xff]
      %v431 = vld [vmem:[%s391 + $0x138] sm:$0xff]
      %v432 = vld [vmem:[%s391 + $0x140] sm:$0xff]
      %v433 = vld [vmem:[%s391 + $0x148] sm:$0xff]
      %v436 = vunpack.c.l.b16 %v284
      %v437 = vunpack.c.h.b16 %v284
      %v438 = vunpack.c.l.b16 %v285
      %v439 = vpack.c.b16 %v303, %v300
      %v440 = vpack.c.b16 %v304, %v301
      %v441 = vpack.c.b16 %v305, %v302
      %v442 = vpack.c.b16 %v309, %v306
      %v443 = vpack.c.b16 %v310, %v307
      %v444 = vpack.c.b16 %v311, %v308
      %v445 = vpack.c.b16 %v315, %v312
      %v446 = vpack.c.b16 %v316, %v313
      %v447 = vpack.c.b16 %v317, %v314
      %v448 = vpack.c.b16 %v436, %v318
      %v449 = vpack.c.b16 %v437, %v319
      %v450 = vpack.c.b16 %v438, %v320
      %v501 = vunpack.c.l.b16 %v392
      %v502 = vunpack.c.h.b16 %v392
      %v503 = vunpack.c.l.b16 %v393
      %v504 = vunpack.c.h.b16 %v393
      %v505 = vunpack.c.l.b16 %v394
      %v506 = vunpack.c.h.b16 %v394
      %v507 = vunpack.c.l.b16 %v395
      %v508 = vunpack.c.h.b16 %v395
      %v509 = vunpack.c.l.b16 %v396
      %v510 = vunpack.c.h.b16 %v396
      %v511 = vunpack.c.l.b16 %v397
      %v512 = vunpack.c.h.b16 %v397
      %v513 = vunpack.c.l.b16 %v398
      %v514 = vunpack.c.h.b16 %v398
      %v515 = vunpack.c.l.b16 %v399
      %v516 = vunpack.c.h.b16 %v399
      %v517 = vunpack.c.l.b16 %v400
      %v518 = vunpack.c.h.b16 %v400
      %v519 = vunpack.c.l.b16 %v401
      %v520 = vunpack.c.h.b16 %v401
      %v521 = vunpack.c.l.b16 %v402
      %v522 = vunpack.c.h.b16 %v402
      %v523 = vunpack.c.l.b16 %v403
      %v524 = vunpack.c.h.b16 %v403
      %v525 = vunpack.c.l.b16 %v404
      %v526 = vunpack.c.h.b16 %v404
      %v527 = vunpack.c.l.b16 %v405
      %v528 = vunpack.c.h.b16 %v405
      %v529 = vunpack.c.l.b16 %v406
      %v530 = vunpack.c.h.b16 %v406
      %v531 = vunpack.c.l.b16 %v407
      %v532 = vunpack.c.h.b16 %v407
      %v533 = vunpack.c.l.b16 %v408
      %v534 = vunpack.c.h.b16 %v408
      %v535 = vunpack.c.l.b16 %v409
      %v536 = vunpack.c.h.b16 %v409
      %v537 = vunpack.c.l.b16 %v410
      %v538 = vunpack.c.h.b16 %v410
      %v539 = vunpack.c.l.b16 %v411
      %v540 = vunpack.c.h.b16 %v411
      %v541 = vunpack.c.l.b16 %v412
      %v542 = vunpack.c.h.b16 %v412
      %v543 = vunpack.c.l.b16 %v413
      %v544 = vunpack.c.h.b16 %v413
      %v545 = vunpack.c.l.b16 %v414
      %v546 = vunpack.c.h.b16 %v414
      %v547 = vunpack.c.l.b16 %v415
      %v548 = vunpack.c.h.b16 %v415
      %v549 = vunpack.c.l.b16 %v416
      %v550 = vunpack.c.h.b16 %v416
      %v551 = vunpack.c.l.b16 %v417
      %v552 = vunpack.c.h.b16 %v417
      %v553 = vunpack.c.l.b16 %v418
      %v554 = vunpack.c.h.b16 %v418
      %v555 = vunpack.c.l.b16 %v419
      %v556 = vunpack.c.h.b16 %v419
      %v557 = vunpack.c.l.b16 %v420
      %v558 = vunpack.c.h.b16 %v420
      %v559 = vunpack.c.l.b16 %v421
      %v560 = vunpack.c.h.b16 %v421
      %v561 = vunpack.c.l.b16 %v422
      %v562 = vunpack.c.h.b16 %v422
      %v563 = vunpack.c.l.b16 %v423
      %v564 = vunpack.c.h.b16 %v423
      %v565 = vunpack.c.l.b16 %v424
      %v566 = vunpack.c.h.b16 %v424
      %v567 = vunpack.c.l.b16 %v425
      %v568 = vunpack.c.h.b16 %v425
      %v569 = vunpack.c.l.b16 %v426
      %v570 = vunpack.c.h.b16 %v426
      %v571 = vunpack.c.l.b16 %v427
      %v572 = vunpack.c.h.b16 %v427
      %v573 = vunpack.c.l.b16 %v428
      %v574 = vunpack.c.h.b16 %v428
      %v575 = vunpack.c.l.b16 %v429
      %v576 = vunpack.c.h.b16 %v429
      %v577 = vunpack.c.l.b16 %v430
      %v578 = vunpack.c.h.b16 %v430
      %v579 = vunpack.c.l.b16 %v431
      %v580 = vunpack.c.h.b16 %v431
      %v581 = vunpack.c.l.b16 %v432
      %v582 = vunpack.c.h.b16 %v432
      %v583 = vunpack.c.l.b16 %v433
      %v584 = vunpack.c.h.b16 %v433
      %v585 = vpack.c.b16 %v503, %v501
      %v586 = vpack.c.b16 %v504, %v502
      %v587 = vpack.c.b16 %v507, %v505
      %v588 = vpack.c.b16 %v508, %v506
      %v589 = vpack.c.b16 %v511, %v509
      %v590 = vpack.c.b16 %v512, %v510
      %v591 = vpack.c.b16 %v515, %v513
      %v592 = vpack.c.b16 %v516, %v514
      %v593 = vpack.c.b16 %v519, %v517
      %v594 = vpack.c.b16 %v520, %v518
      %v595 = vpack.c.b16 %v523, %v521
      %v596 = vpack.c.b16 %v524, %v522
      %v597 = vpack.c.b16 %v527, %v525
      %v598 = vpack.c.b16 %v528, %v526
      %v599 = vpack.c.b16 %v531, %v529
      %v600 = vpack.c.b16 %v532, %v530
      %v601 = vpack.c.b16 %v535, %v533
      %v602 = vpack.c.b16 %v536, %v534
      %v603 = vpack.c.b16 %v539, %v537
      %v604 = vpack.c.b16 %v540, %v538
      %v605 = vpack.c.b16 %v543, %v541
      %v606 = vpack.c.b16 %v544, %v542
      %v607 = vpack.c.b16 %v547, %v545
      %v608 = vpack.c.b16 %v548, %v546
      %v609 = vpack.c.b16 %v551, %v549
      %v610 = vpack.c.b16 %v552, %v550
      %v611 = vpack.c.b16 %v555, %v553
      %v612 = vpack.c.b16 %v556, %v554
      %v613 = vpack.c.b16 %v559, %v557
      %v614 = vpack.c.b16 %v560, %v558
      %v615 = vpack.c.b16 %v563, %v561
      %v616 = vpack.c.b16 %v564, %v562
      %v617 = vpack.c.b16 %v567, %v565
      %v618 = vpack.c.b16 %v568, %v566
      %v619 = vpack.c.b16 %v571, %v569
      %v620 = vpack.c.b16 %v572, %v570
      %v621 = vpack.c.b16 %v575, %v573
      %v622 = vpack.c.b16 %v576, %v574
      %v623 = vpack.c.b16 %v579, %v577
      %v624 = vpack.c.b16 %v580, %v578
      %v625 = vpack.c.b16 %v583, %v581
      %v626 = vpack.c.b16 %v584, %v582
      %vm669 = vcmask 654336
      %v671 = vsel %vm669, %v441, 0
      %v674 = vsel %vm669, %v444, 0
      %v677 = vsel %vm669, %v447, 0
      %v680 = vsel %vm669, %v450, 0
      %682 = vmatprep.subr.bf16.mxu0 %v586
      %683 = vmatpush1.bf16.msra.mxu0 %v585
      %684 = vmatprep.subr.bf16.mxu0 %v588
      %685 = vmatpush1.bf16.msra.mxu0 %v587
      %686 = vmatprep.subr.bf16.mxu0 %v590
      %687 = vmatpush1.bf16.msra.mxu0 %v589
      %688 = vmatprep.subr.bf16.mxu0 %v592
      %689 = vmatpush1.bf16.msra.mxu0 %v591
      %690 = vmatprep.subr.bf16.mxu0 %v594
      %691 = vmatpush1.bf16.msra.mxu0 %v593
      %692 = vmatprep.subr.bf16.mxu0 %v596
      %693 = vmatpush1.bf16.msra.mxu0 %v595
      %694 = vmatprep.subr.bf16.mxu0 %v598
      %695 = vmatpush1.bf16.msra.mxu0 %v597
      %696 = vmatprep.subr.bf16.mxu0 %v600
      %697 = vmatpush1.bf16.msra.mxu0 %v599
      %698 = vmatprep.subr.bf16.mxu0 %v602
      %699 = vmatpush1.bf16.msra.mxu0 %v601
      %700 = vmatprep.subr.bf16.mxu0 %v604
      %701 = vmatpush1.bf16.msra.mxu0 %v603
      %702 = vmatprep.subr.bf16.mxu0 %v606
      %703 = vmatpush1.bf16.msra.mxu0 %v605
      %704 = vmatprep.subr.bf16.mxu0 %v608
      %705 = vmatpush1.bf16.msra.mxu0 %v607
      %706 = vmatprep.subr.bf16.mxu0 %v610
      %707 = vmatpush1.bf16.msra.mxu0 %v609
      %708 = vmatprep.subr.bf16.mxu0 %v612
      %709 = vmatpush1.bf16.msra.mxu0 %v611
      %710 = vmatprep.subr.bf16.mxu0 %v614
      %711 = vmatpush1.bf16.msra.mxu0 %v613
      %712 = vmatprep.subr.bf16.mxu0 %v616
      %713 = vmatpush1.bf16.msra.mxu0 %v615
      %714 = vmatprep.mubr.bf16.mxu0 %v440
      %715 = vmatmul.mubr.bf16.gmra.mrb[0].mxu0 %v439
      %v716 = vpop.f32.mrb[0].mxu0
      %v717 = vadd.f32 0.0, %v716
      %v718 = vpop.f32.mrb[0].mxu0
      %v719 = vadd.f32 0.0, %v718
      %v720 = vpop.f32.mrb[0].mxu0
      %v721 = vadd.f32 0.0, %v720
      %v722 = vpop.f32.mrb[0].mxu0
      %v723 = vadd.f32 0.0, %v722
      %724 = vmatprep.mubr.bf16.mxu0 %v443
      %725 = vmatmul.mubr.bf16.gmra.mrb[0].mxu0 %v442
      %v726 = vpop.f32.mrb[0].mxu0
      %v727 = vadd.f32 0.0, %v726
      %v728 = vpop.f32.mrb[0].mxu0
      %v729 = vadd.f32 0.0, %v728
      %v730 = vpop.f32.mrb[0].mxu0
      %v731 = vadd.f32 0.0, %v730
      %v732 = vpop.f32.mrb[0].mxu0
      %v733 = vadd.f32 0.0, %v732
      %734 = vmatprep.mubr.bf16.mxu0 %v446
      %735 = vmatmul.mubr.bf16.gmra.mrb[0].mxu0 %v445
      %v736 = vpop.f32.mrb[0].mxu0
      %v737 = vadd.f32 0.0, %v736
      %v738 = vpop.f32.mrb[0].mxu0
      %v739 = vadd.f32 0.0, %v738
      %v740 = vpop.f32.mrb[0].mxu0
      %v741 = vadd.f32 0.0, %v740
      %v742 = vpop.f32.mrb[0].mxu0
      %v743 = vadd.f32 0.0, %v742
      %744 = vmatprep.mubr.bf16.mxu0 %v449
      %745 = vmatmul.mubr.bf16.gmra.mrb[0].mxu0 %v448
      %v746 = vpop.f32.mrb[0].mxu0
      %v747 = vadd.f32 0.0, %v746
      %v748 = vpop.f32.mrb[0].mxu0
      %v749 = vadd.f32 0.0, %v748
      %v750 = vpop.f32.mrb[0].mxu0
      %v751 = vadd.f32 0.0, %v750
      %v752 = vpop.f32.mrb[0].mxu0
      %v753 = vadd.f32 0.0, %v752
      %754 = vdwg.mxu0
      %755 = vmatprep.subr.bf16.mxu0 %v618
      %756 = vmatpush1.bf16.msra.mxu0 %v617
      %757 = vmatprep.subr.bf16.mxu0 %v620
      %758 = vmatpush1.bf16.msra.mxu0 %v619
      %759 = vmatprep.subr.bf16.mxu0 %v622
      %760 = vmatpush1.bf16.msra.mxu0 %v621
      %761 = vmatprep.subr.bf16.mxu0 %v624
      %762 = vmatpush1.bf16.msra.mxu0 %v623
      %763 = vmatprep.subr.bf16.mxu0 %v626
      %764 = vmatpush1.bf16.msra.mxu0 %v625
      %765 = vmatprep.subr.bf16.mxu0 0
      %766 = vmatpush1.bf16.msra.mxu0 0
      %767 = vmatprep.subr.bf16.mxu0 0
      %768 = vmatpush1.bf16.msra.mxu0 0
      %769 = vmatprep.subr.bf16.mxu0 0
      %770 = vmatpush1.bf16.msra.mxu0 0
      %771 = vmatprep.subr.bf16.mxu0 0
      %772 = vmatpush1.bf16.msra.mxu0 0
      %773 = vmatprep.subr.bf16.mxu0 0
      %774 = vmatpush1.bf16.msra.mxu0 0
      %775 = vmatprep.subr.bf16.mxu0 0
      %776 = vmatpush1.bf16.msra.mxu0 0
      %777 = vmatprep.subr.bf16.mxu0 0
      %778 = vmatpush1.bf16.msra.mxu0 0
      %779 = vmatprep.subr.bf16.mxu0 0
      %780 = vmatpush1.bf16.msra.mxu0 0
      %781 = vmatprep.subr.bf16.mxu0 0
      %782 = vmatpush1.bf16.msra.mxu0 0
      %783 = vmatprep.subr.bf16.mxu0 0
      %784 = vmatpush1.bf16.msra.mxu0 0
      %785 = vmatprep.subr.bf16.mxu0 0
      %786 = vmatpush1.bf16.msra.mxu0 0
      %787 = vmatprep.mubr.bf16.mxu0 0
      %788 = vmatmul.mubr.bf16.gmra.mrb[0].mxu0 %v671
      %v789 = vpop.f32.mrb[0].mxu0
      %v790 = vadd.f32 %v717, %v789
      %v791 = vpop.f32.mrb[0].mxu0
      %v792 = vadd.f32 %v719, %v791
      %v793 = vpop.f32.mrb[0].mxu0
      %v794 = vadd.f32 %v721, %v793
      %v795 = vpop.f32.mrb[0].mxu0
      %v796 = vadd.f32 %v723, %v795
      %797 = vmatprep.mubr.bf16.mxu0 0
      %798 = vmatmul.mubr.bf16.gmra.mrb[0].mxu0 %v674
      %v799 = vpop.f32.mrb[0].mxu0
      %v800 = vadd.f32 %v727, %v799
      %v801 = vpop.f32.mrb[0].mxu0
      %v802 = vadd.f32 %v729, %v801
      %v803 = vpop.f32.mrb[0].mxu0
      %v804 = vadd.f32 %v731, %v803
      %v805 = vpop.f32.mrb[0].mxu0
      %v806 = vadd.f32 %v733, %v805
      %807 = vmatprep.mubr.bf16.mxu0 0
      %808 = vmatmul.mubr.bf16.gmra.mrb[0].mxu0 %v677
      %v809 = vpop.f32.mrb[0].mxu0
      %v810 = vadd.f32 %v737, %v809
      %v811 = vpop.f32.mrb[0].mxu0
      %v812 = vadd.f32 %v739, %v811
      %v813 = vpop.f32.mrb[0].mxu0
      %v814 = vadd.f32 %v741, %v813
      %v815 = vpop.f32.mrb[0].mxu0
      %v816 = vadd.f32 %v743, %v815
      %817 = vmatprep.mubr.bf16.mxu0 0
      %818 = vmatmul.mubr.bf16.gmra.mrb[0].mxu0 %v680
      %v819 = vpop.f32.mrb[0].mxu0
      %v820 = vadd.f32 %v747, %v819
      %v821 = vpop.f32.mrb[0].mxu0
      %v822 = vadd.f32 %v749, %v821
      %v823 = vpop.f32.mrb[0].mxu0
      %v824 = vadd.f32 %v751, %v823
      %v825 = vpop.f32.mrb[0].mxu0
      %v826 = vadd.f32 %v753, %v825
      %827 = vdwg.mxu0
      %v844 = vunpack.c.l.b16 %v253
      %v845 = vunpack.c.h.b16 %v253
      %v846 = vunpack.c.l.b16 %v254
      %v847 = vunpack.c.l.b16 %v255
      %v848 = vunpack.c.h.b16 %v255
      %v849 = vunpack.c.l.b16 %v256
      %v850 = vunpack.c.l.b16 %v257
      %v851 = vunpack.c.h.b16 %v257
      %v852 = vunpack.c.l.b16 %v258
      %v853 = vunpack.c.l.b16 %v259
      %v854 = vunpack.c.h.b16 %v259
      %v855 = vunpack.c.l.b16 %v260
      %v856 = vunpack.c.l.b16 %v261
      %v857 = vunpack.c.h.b16 %v261
      %v858 = vunpack.c.l.b16 %v262
      %v859 = vunpack.c.l.b16 %v263
      %v860 = vunpack.c.h.b16 %v263
      %v861 = vunpack.c.l.b16 %v264
      %v862 = vunpack.c.l.b16 %v265
      %v863 = vunpack.c.h.b16 %v265
      %v864 = vunpack.c.l.b16 %v266
      %v865 = vunpack.c.l.b16 %v267
      %v866 = vunpack.c.h.b16 %v267
      %v867 = vunpack.c.l.b16 %v268
      %v868 = vpack.c.b16 %v847, %v844
      %v869 = vpack.c.b16 %v848, %v845
      %v870 = vpack.c.b16 %v849, %v846
      %v871 = vpack.c.b16 %v853, %v850
      %v872 = vpack.c.b16 %v854, %v851
      %v873 = vpack.c.b16 %v855, %v852
      %v874 = vpack.c.b16 %v859, %v856
      %v875 = vpack.c.b16 %v860, %v857
      %v876 = vpack.c.b16 %v861, %v858
      %v877 = vpack.c.b16 %v865, %v862
      %v878 = vpack.c.b16 %v866, %v863
      %v879 = vpack.c.b16 %v867, %v864
      %v930 = vunpack.c.l.b16 %v349
      %v931 = vunpack.c.h.b16 %v349
      %v932 = vunpack.c.l.b16 %v350
      %v933 = vunpack.c.h.b16 %v350
      %v934 = vunpack.c.l.b16 %v351
      %v935 = vunpack.c.h.b16 %v351
      %v936 = vunpack.c.l.b16 %v352
      %v937 = vunpack.c.h.b16 %v352
      %v938 = vunpack.c.l.b16 %v353
      %v939 = vunpack.c.h.b16 %v353
      %v940 = vunpack.c.l.b16 %v354
      %v941 = vunpack.c.h.b16 %v354
      %v942 = vunpack.c.l.b16 %v355
      %v943 = vunpack.c.h.b16 %v355
      %v944 = vunpack.c.l.b16 %v356
      %v945 = vunpack.c.h.b16 %v356
      %v946 = vunpack.c.l.b16 %v357
      %v947 = vunpack.c.h.b16 %v357
      %v948 = vunpack.c.l.b16 %v358
      %v949 = vunpack.c.h.b16 %v358
      %v950 = vunpack.c.l.b16 %v359
      %v951 = vunpack.c.h.b16 %v359
      %v952 = vunpack.c.l.b16 %v360
      %v953 = vunpack.c.h.b16 %v360
      %v954 = vunpack.c.l.b16 %v361
      %v955 = vunpack.c.h.b16 %v361
      %v956 = vunpack.c.l.b16 %v362
      %v957 = vunpack.c.h.b16 %v362
      %v958 = vunpack.c.l.b16 %v363
      %v959 = vunpack.c.h.b16 %v363
      %v960 = vunpack.c.l.b16 %v364
      %v961 = vunpack.c.h.b16 %v364
      %v962 = vunpack.c.l.b16 %v365
      %v963 = vunpack.c.h.b16 %v365
      %v964 = vunpack.c.l.b16 %v366
      %v965 = vunpack.c.h.b16 %v366
      %v966 = vunpack.c.l.b16 %v367
      %v967 = vunpack.c.h.b16 %v367
      %v968 = vunpack.c.l.b16 %v368
      %v969 = vunpack.c.h.b16 %v368
      %v970 = vunpack.c.l.b16 %v369
      %v971 = vunpack.c.h.b16 %v369
      %v972 = vunpack.c.l.b16 %v370
      %v973 = vunpack.c.h.b16 %v370
      %v974 = vunpack.c.l.b16 %v371
      %v975 = vunpack.c.h.b16 %v371
      %v976 = vunpack.c.l.b16 %v372
      %v977 = vunpack.c.h.b16 %v372
      %v978 = vunpack.c.l.b16 %v373
      %v979 = vunpack.c.h.b16 %v373
      %v980 = vunpack.c.l.b16 %v374
      %v981 = vunpack.c.h.b16 %v374
      %v982 = vunpack.c.l.b16 %v375
      %v983 = vunpack.c.h.b16 %v375
      %v984 = vunpack.c.l.b16 %v376
      %v985 = vunpack.c.h.b16 %v376
      %v986 = vunpack.c.l.b16 %v377
      %v987 = vunpack.c.h.b16 %v377
      %v988 = vunpack.c.l.b16 %v378
      %v989 = vunpack.c.h.b16 %v378
      %v990 = vunpack.c.l.b16 %v379
      %v991 = vunpack.c.h.b16 %v379
      %v992 = vunpack.c.l.b16 %v380
      %v993 = vunpack.c.h.b16 %v380
      %v994 = vunpack.c.l.b16 %v381
      %v995 = vunpack.c.h.b16 %v381
      %v996 = vunpack.c.l.b16 %v382
      %v997 = vunpack.c.h.b16 %v382
      %v998 = vunpack.c.l.b16 %v383
      %v999 = vunpack.c.h.b16 %v383
      %v1000 = vunpack.c.l.b16 %v384
      %v1001 = vunpack.c.h.b16 %v384
      %v1002 = vunpack.c.l.b16 %v385
      %v1003 = vunpack.c.h.b16 %v385
      %v1004 = vunpack.c.l.b16 %v386
      %v1005 = vunpack.c.h.b16 %v386
      %v1006 = vunpack.c.l.b16 %v387
      %v1007 = vunpack.c.h.b16 %v387
      %v1008 = vunpack.c.l.b16 %v388
      %v1009 = vunpack.c.h.b16 %v388
      %v1010 = vunpack.c.l.b16 %v389
      %v1011 = vunpack.c.h.b16 %v389
      %v1012 = vunpack.c.l.b16 %v390
      %v1013 = vunpack.c.h.b16 %v390
      %v1014 = vpack.c.b16 %v932, %v930
      %v1015 = vpack.c.b16 %v933, %v931
      %v1016 = vpack.c.b16 %v936, %v934
      %v1017 = vpack.c.b16 %v937, %v935
      %v1018 = vpack.c.b16 %v940, %v938
      %v1019 = vpack.c.b16 %v941, %v939
      %v1020 = vpack.c.b16 %v944, %v942
      %v1021 = vpack.c.b16 %v945, %v943
      %v1022 = vpack.c.b16 %v948, %v946
      %v1023 = vpack.c.b16 %v949, %v947
      %v1024 = vpack.c.b16 %v952, %v950
      %v1025 = vpack.c.b16 %v953, %v951
      %v1026 = vpack.c.b16 %v956, %v954
      %v1027 = vpack.c.b16 %v957, %v955
      %v1028 = vpack.c.b16 %v960, %v958
      %v1029 = vpack.c.b16 %v961, %v959
      %v1030 = vpack.c.b16 %v964, %v962
      %v1031 = vpack.c.b16 %v965, %v963
      %v1032 = vpack.c.b16 %v968, %v966
      %v1033 = vpack.c.b16 %v969, %v967
      %v1034 = vpack.c.b16 %v972, %v970
      %v1035 = vpack.c.b16 %v973, %v971
      %v1036 = vpack.c.b16 %v976, %v974
      %v1037 = vpack.c.b16 %v977, %v975
      %v1038 = vpack.c.b16 %v980, %v978
      %v1039 = vpack.c.b16 %v981, %v979
      %v1040 = vpack.c.b16 %v984, %v982
      %v1041 = vpack.c.b16 %v985, %v983
      %v1042 = vpack.c.b16 %v988, %v986
      %v1043 = vpack.c.b16 %v989, %v987
      %v1044 = vpack.c.b16 %v992, %v990
      %v1045 = vpack.c.b16 %v993, %v991
      %v1046 = vpack.c.b16 %v996, %v994
      %v1047 = vpack.c.b16 %v997, %v995
      %v1048 = vpack.c.b16 %v1000, %v998
      %v1049 = vpack.c.b16 %v1001, %v999
      %v1050 = vpack.c.b16 %v1004, %v1002
      %v1051 = vpack.c.b16 %v1005, %v1003
      %v1052 = vpack.c.b16 %v1008, %v1006
      %v1053 = vpack.c.b16 %v1009, %v1007
      %v1054 = vpack.c.b16 %v1012, %v1010
      %v1055 = vpack.c.b16 %v1013, %v1011
      %v1099 = vsel %vm669, %v870, 0
      %v1102 = vsel %vm669, %v873, 0
      %v1105 = vsel %vm669, %v876, 0
      %v1108 = vsel %vm669, %v879, 0
      %1110 = vmatprep.subr.bf16.mxu0 %v1015
      %1111 = vmatpush1.bf16.msra.mxu0 %v1014
      %1112 = vmatprep.subr.bf16.mxu0 %v1017
      %1113 = vmatpush1.bf16.msra.mxu0 %v1016
      %1114 = vmatprep.subr.bf16.mxu0 %v1019
      %1115 = vmatpush1.bf16.msra.mxu0 %v1018
      %1116 = vmatprep.subr.bf16.mxu0 %v1021
      %1117 = vmatpush1.bf16.msra.mxu0 %v1020
      %1118 = vmatprep.subr.bf16.mxu0 %v1023
      %1119 = vmatpush1.bf16.msra.mxu0 %v1022
      %1120 = vmatprep.subr.bf16.mxu0 %v1025
      %1121 = vmatpush1.bf16.msra.mxu0 %v1024
      %1122 = vmatprep.subr.bf16.mxu0 %v1027
      %1123 = vmatpush1.bf16.msra.mxu0 %v1026
      %1124 = vmatprep.subr.bf16.mxu0 %v1029
      %1125 = vmatpush1.bf16.msra.mxu0 %v1028
      %1126 = vmatprep.subr.bf16.mxu0 %v1031
      %1127 = vmatpush1.bf16.msra.mxu0 %v1030
      %1128 = vmatprep.subr.bf16.mxu0 %v1033
      %1129 = vmatpush1.bf16.msra.mxu0 %v1032
      %1130 = vmatprep.subr.bf16.mxu0 %v1035
      %1131 = vmatpush1.bf16.msra.mxu0 %v1034
      %1132 = vmatprep.subr.bf16.mxu0 %v1037
      %1133 = vmatpush1.bf16.msra.mxu0 %v1036
      %1134 = vmatprep.subr.bf16.mxu0 %v1039
      %1135 = vmatpush1.bf16.msra.mxu0 %v1038
      %1136 = vmatprep.subr.bf16.mxu0 %v1041
      %1137 = vmatpush1.bf16.msra.mxu0 %v1040
      %1138 = vmatprep.subr.bf16.mxu0 %v1043
      %1139 = vmatpush1.bf16.msra.mxu0 %v1042
      %1140 = vmatprep.subr.bf16.mxu0 %v1045
      %1141 = vmatpush1.bf16.msra.mxu0 %v1044
      %1142 = vmatprep.mubr.bf16.mxu0 %v869
      %1143 = vmatmul.mubr.bf16.gmra.mrb[0].mxu0 %v868
      %v1144 = vpop.f32.mrb[0].mxu0
      %v1145 = vadd.f32 %v790, %v1144
      %v1146 = vpop.f32.mrb[0].mxu0
      %v1147 = vadd.f32 %v792, %v1146
      %v1148 = vpop.f32.mrb[0].mxu0
      %v1149 = vadd.f32 %v794, %v1148
      %v1150 = vpop.f32.mrb[0].mxu0
      %v1151 = vadd.f32 %v796, %v1150
      %1152 = vmatprep.mubr.bf16.mxu0 %v872
      %1153 = vmatmul.mubr.bf16.gmra.mrb[0].mxu0 %v871
      %v1154 = vpop.f32.mrb[0].mxu0
      %v1155 = vadd.f32 %v800, %v1154
      %v1156 = vpop.f32.mrb[0].mxu0
      %v1157 = vadd.f32 %v802, %v1156
      %v1158 = vpop.f32.mrb[0].mxu0
      %v1159 = vadd.f32 %v804, %v1158
      %v1160 = vpop.f32.mrb[0].mxu0
      %v1161 = vadd.f32 %v806, %v1160
      %1162 = vmatprep.mubr.bf16.mxu0 %v875
      %1163 = vmatmul.mubr.bf16.gmra.mrb[0].mxu0 %v874
      %v1164 = vpop.f32.mrb[0].mxu0
      %v1165 = vadd.f32 %v810, %v1164
      %v1166 = vpop.f32.mrb[0].mxu0
      %v1167 = vadd.f32 %v812, %v1166
      %v1168 = vpop.f32.mrb[0].mxu0
      %v1169 = vadd.f32 %v814, %v1168
      %v1170 = vpop.f32.mrb[0].mxu0
      %v1171 = vadd.f32 %v816, %v1170
      %1172 = vmatprep.mubr.bf16.mxu0 %v878
      %1173 = vmatmul.mubr.bf16.gmra.mrb[0].mxu0 %v877
      %v1174 = vpop.f32.mrb[0].mxu0
      %v1175 = vadd.f32 %v820, %v1174
      %v1176 = vpop.f32.mrb[0].mxu0
      %v1177 = vadd.f32 %v822, %v1176
      %v1178 = vpop.f32.mrb[0].mxu0
      %v1179 = vadd.f32 %v824, %v1178
      %v1180 = vpop.f32.mrb[0].mxu0
      %v1181 = vadd.f32 %v826, %v1180
      %1182 = vdwg.mxu0
      %1183 = vmatprep.subr.bf16.mxu0 %v1047
      %1184 = vmatpush1.bf16.msra.mxu0 %v1046
      %1185 = vmatprep.subr.bf16.mxu0 %v1049
      %1186 = vmatpush1.bf16.msra.mxu0 %v1048
      %1187 = vmatprep.subr.bf16.mxu0 %v1051
      %1188 = vmatpush1.bf16.msra.mxu0 %v1050
      %1189 = vmatprep.subr.bf16.mxu0 %v1053
      %1190 = vmatpush1.bf16.msra.mxu0 %v1052
      %1191 = vmatprep.subr.bf16.mxu0 %v1055
      %1192 = vmatpush1.bf16.msra.mxu0 %v1054
      %1193 = vmatprep.subr.bf16.mxu0 0
      %1194 = vmatpush1.bf16.msra.mxu0 0
      %1195 = vmatprep.subr.bf16.mxu0 0
      %1196 = vmatpush1.bf16.msra.mxu0 0
      %1197 = vmatprep.subr.bf16.mxu0 0
      %1198 = vmatpush1.bf16.msra.mxu0 0
      %1199 = vmatprep.subr.bf16.mxu0 0
      %1200 = vmatpush1.bf16.msra.mxu0 0
      %1201 = vmatprep.subr.bf16.mxu0 0
      %1202 = vmatpush1.bf16.msra.mxu0 0
      %1203 = vmatprep.subr.bf16.mxu0 0
      %1204 = vmatpush1.bf16.msra.mxu0 0
      %1205 = vmatprep.subr.bf16.mxu0 0
      %1206 = vmatpush1.bf16.msra.mxu0 0
      %1207 = vmatprep.subr.bf16.mxu0 0
      %1208 = vmatpush1.bf16.msra.mxu0 0
      %1209 = vmatprep.subr.bf16.mxu0 0
      %1210 = vmatpush1.bf16.msra.mxu0 0
      %1211 = vmatprep.subr.bf16.mxu0 0
      %1212 = vmatpush1.bf16.msra.mxu0 0
      %1213 = vmatprep.subr.bf16.mxu0 0
      %1214 = vmatpush1.bf16.msra.mxu0 0
      %1215 = vmatprep.mubr.bf16.mxu0 0
      %1216 = vmatmul.mubr.bf16.gmra.mrb[0].mxu0 %v1099
      %v1217 = vpop.f32.mrb[0].mxu0
      %v1218 = vadd.f32 %v1145, %v1217
      %v1219 = vpop.f32.mrb[0].mxu0
      %v1220 = vadd.f32 %v1147, %v1219
      %v1221 = vpop.f32.mrb[0].mxu0
      %v1222 = vadd.f32 %v1149, %v1221
      %v1223 = vpop.f32.mrb[0].mxu0
      %v1224 = vadd.f32 %v1151, %v1223
      %1225 = vmatprep.mubr.bf16.mxu0 0
      %1226 = vmatmul.mubr.bf16.gmra.mrb[0].mxu0 %v1102
      %v1227 = vpop.f32.mrb[0].mxu0
      %v1228 = vadd.f32 %v1155, %v1227
      %v1229 = vpop.f32.mrb[0].mxu0
      %v1230 = vadd.f32 %v1157, %v1229
      %v1231 = vpop.f32.mrb[0].mxu0
      %v1232 = vadd.f32 %v1159, %v1231
      %v1233 = vpop.f32.mrb[0].mxu0
      %v1234 = vadd.f32 %v1161, %v1233
      %1235 = vmatprep.mubr.bf16.mxu0 0
      %1236 = vmatmul.mubr.bf16.gmra.mrb[0].mxu0 %v1105
      %v1237 = vpop.f32.mrb[0].mxu0
      %v1238 = vadd.f32 %v1165, %v1237
      %v1239 = vpop.f32.mrb[0].mxu0
      %v1240 = vadd.f32 %v1167, %v1239
      %v1241 = vpop.f32.mrb[0].mxu0
      %v1242 = vadd.f32 %v1169, %v1241
      %v1243 = vpop.f32.mrb[0].mxu0
      %v1244 = vadd.f32 %v1171, %v1243
      %1245 = vmatprep.mubr.bf16.mxu0 0
      %1246 = vmatmul.mubr.bf16.gmra.mrb[0].mxu0 %v1108
      %v1247 = vpop.f32.mrb[0].mxu0
      %v1248 = vadd.f32 %v1175, %v1247
      %v1249 = vpop.f32.mrb[0].mxu0
      %v1250 = vadd.f32 %v1177, %v1249
      %v1251 = vpop.f32.mrb[0].mxu0
      %v1252 = vadd.f32 %v1179, %v1251
      %v1253 = vpop.f32.mrb[0].mxu0
      %v1254 = vadd.f32 %v1181, %v1253
      %1255 = vdwg.mxu0
      %s1256 = scalar_lea.vmem %s238, 672
      %v1257 = vld [vmem:[%s1256] sm:$0xff]
      %v1258 = vld [vmem:[%s1256 + $0x8] sm:$0xff]
      %v1259 = vld [vmem:[%s1256 + $0x10] sm:$0xff]
      %v1260 = vld [vmem:[%s1256 + $0x18] sm:$0xff]
      %v1261 = vld [vmem:[%s1256 + $0x20] sm:$0xff]
      %v1262 = vld [vmem:[%s1256 + $0x28] sm:$0xff]
      %v1263 = vld [vmem:[%s1256 + $0x30] sm:$0xff]
      %v1264 = vld [vmem:[%s1256 + $0x38] sm:$0xff]
      %v1265 = vld [vmem:[%s1256 + $0x40] sm:$0xff]
      %v1266 = vld [vmem:[%s1256 + $0x48] sm:$0xff]
      %v1267 = vld [vmem:[%s1256 + $0x50] sm:$0xff]
      %v1268 = vld [vmem:[%s1256 + $0x58] sm:$0xff]
      %v1269 = vld [vmem:[%s1256 + $0x60] sm:$0xff]
      %v1270 = vld [vmem:[%s1256 + $0x68] sm:$0xff]
      %v1271 = vld [vmem:[%s1256 + $0x70] sm:$0xff]
      %v1272 = vld [vmem:[%s1256 + $0x78] sm:$0xff]
      %v1273 = vld [vmem:[%s1256 + $0x80] sm:$0xff]
      %v1274 = vld [vmem:[%s1256 + $0x88] sm:$0xff]
      %v1275 = vld [vmem:[%s1256 + $0x90] sm:$0xff]
      %v1276 = vld [vmem:[%s1256 + $0x98] sm:$0xff]
      %v1277 = vld [vmem:[%s1256 + $0xa0] sm:$0xff]
      %v1278 = vld [vmem:[%s1256 + $0xa8] sm:$0xff]
      %v1279 = vld [vmem:[%s1256 + $0xb0] sm:$0xff]
      %v1280 = vld [vmem:[%s1256 + $0xb8] sm:$0xff]
      %v1281 = vld [vmem:[%s1256 + $0xc0] sm:$0xff]
      %v1282 = vld [vmem:[%s1256 + $0xc8] sm:$0xff]
      %v1283 = vld [vmem:[%s1256 + $0xd0] sm:$0xff]
      %v1284 = vld [vmem:[%s1256 + $0xd8] sm:$0xff]
      %v1285 = vld [vmem:[%s1256 + $0xe0] sm:$0xff]
      %v1286 = vld [vmem:[%s1256 + $0xe8] sm:$0xff]
      %v1287 = vld [vmem:[%s1256 + $0xf0] sm:$0xff]
      %v1288 = vld [vmem:[%s1256 + $0xf8] sm:$0xff]
      %v1289 = vld [vmem:[%s1256 + $0x100] sm:$0xff]
      %v1290 = vld [vmem:[%s1256 + $0x108] sm:$0xff]
      %v1291 = vld [vmem:[%s1256 + $0x110] sm:$0xff]
      %v1292 = vld [vmem:[%s1256 + $0x118] sm:$0xff]
      %v1293 = vld [vmem:[%s1256 + $0x120] sm:$0xff]
      %v1294 = vld [vmem:[%s1256 + $0x128] sm:$0xff]
      %v1295 = vld [vmem:[%s1256 + $0x130] sm:$0xff]
      %v1296 = vld [vmem:[%s1256 + $0x138] sm:$0xff]
      %v1297 = vld [vmem:[%s1256 + $0x140] sm:$0xff]
      %v1298 = vld [vmem:[%s1256 + $0x148] sm:$0xff]
      %v1341 = vunpack.c.l.b16 %v1257
      %v1342 = vunpack.c.h.b16 %v1257
      %v1343 = vunpack.c.l.b16 %v1258
      %v1344 = vunpack.c.h.b16 %v1258
      %v1345 = vunpack.c.l.b16 %v1259
      %v1346 = vunpack.c.h.b16 %v1259
      %v1347 = vunpack.c.l.b16 %v1260
      %v1348 = vunpack.c.h.b16 %v1260
      %v1349 = vunpack.c.l.b16 %v1261
      %v1350 = vunpack.c.h.b16 %v1261
      %v1351 = vunpack.c.l.b16 %v1262
      %v1352 = vunpack.c.h.b16 %v1262
      %v1353 = vunpack.c.l.b16 %v1263
      %v1354 = vunpack.c.h.b16 %v1263
      %v1355 = vunpack.c.l.b16 %v1264
      %v1356 = vunpack.c.h.b16 %v1264
      %v1357 = vunpack.c.l.b16 %v1265
      %v1358 = vunpack.c.h.b16 %v1265
      %v1359 = vunpack.c.l.b16 %v1266
      %v1360 = vunpack.c.h.b16 %v1266
      %v1361 = vunpack.c.l.b16 %v1267
      %v1362 = vunpack.c.h.b16 %v1267
      %v1363 = vunpack.c.l.b16 %v1268
      %v1364 = vunpack.c.h.b16 %v1268
      %v1365 = vunpack.c.l.b16 %v1269
      %v1366 = vunpack.c.h.b16 %v1269
      %v1367 = vunpack.c.l.b16 %v1270
      %v1368 = vunpack.c.h.b16 %v1270
      %v1369 = vunpack.c.l.b16 %v1271
      %v1370 = vunpack.c.h.b16 %v1271
      %v1371 = vunpack.c.l.b16 %v1272
      %v1372 = vunpack.c.h.b16 %v1272
      %v1373 = vunpack.c.l.b16 %v1273
      %v1374 = vunpack.c.h.b16 %v1273
      %v1375 = vunpack.c.l.b16 %v1274
      %v1376 = vunpack.c.h.b16 %v1274
      %v1377 = vunpack.c.l.b16 %v1275
      %v1378 = vunpack.c.h.b16 %v1275
      %v1379 = vunpack.c.l.b16 %v1276
      %v1380 = vunpack.c.h.b16 %v1276
      %v1381 = vunpack.c.l.b16 %v1277
      %v1382 = vunpack.c.h.b16 %v1277
      %v1383 = vunpack.c.l.b16 %v1278
      %v1384 = vunpack.c.h.b16 %v1278
      %v1385 = vunpack.c.l.b16 %v1279
      %v1386 = vunpack.c.h.b16 %v1279
      %v1387 = vunpack.c.l.b16 %v1280
      %v1388 = vunpack.c.h.b16 %v1280
      %v1389 = vunpack.c.l.b16 %v1281
      %v1390 = vunpack.c.h.b16 %v1281
      %v1391 = vunpack.c.l.b16 %v1282
      %v1392 = vunpack.c.h.b16 %v1282
      %v1393 = vunpack.c.l.b16 %v1283
      %v1394 = vunpack.c.h.b16 %v1283
      %v1395 = vunpack.c.l.b16 %v1284
      %v1396 = vunpack.c.h.b16 %v1284
      %v1397 = vunpack.c.l.b16 %v1285
      %v1398 = vunpack.c.h.b16 %v1285
      %v1399 = vunpack.c.l.b16 %v1286
      %v1400 = vunpack.c.h.b16 %v1286
      %v1401 = vunpack.c.l.b16 %v1287
      %v1402 = vunpack.c.h.b16 %v1287
      %v1403 = vunpack.c.l.b16 %v1288
      %v1404 = vunpack.c.h.b16 %v1288
      %v1405 = vunpack.c.l.b16 %v1289
      %v1406 = vunpack.c.h.b16 %v1289
      %v1407 = vunpack.c.l.b16 %v1290
      %v1408 = vunpack.c.h.b16 %v1290
      %v1409 = vunpack.c.l.b16 %v1291
      %v1410 = vunpack.c.h.b16 %v1291
      %v1411 = vunpack.c.l.b16 %v1292
      %v1412 = vunpack.c.h.b16 %v1292
      %v1413 = vunpack.c.l.b16 %v1293
      %v1414 = vunpack.c.h.b16 %v1293
      %v1415 = vunpack.c.l.b16 %v1294
      %v1416 = vunpack.c.h.b16 %v1294
      %v1417 = vunpack.c.l.b16 %v1295
      %v1418 = vunpack.c.h.b16 %v1295
      %v1419 = vunpack.c.l.b16 %v1296
      %v1420 = vunpack.c.h.b16 %v1296
      %v1421 = vunpack.c.l.b16 %v1297
      %v1422 = vunpack.c.h.b16 %v1297
      %v1423 = vunpack.c.l.b16 %v1298
      %v1424 = vunpack.c.h.b16 %v1298
      %v1425 = vpack.c.b16 %v1343, %v1341
      %v1426 = vpack.c.b16 %v1344, %v1342
      %v1427 = vpack.c.b16 %v1347, %v1345
      %v1428 = vpack.c.b16 %v1348, %v1346
      %v1429 = vpack.c.b16 %v1351, %v1349
      %v1430 = vpack.c.b16 %v1352, %v1350
      %v1431 = vpack.c.b16 %v1355, %v1353
      %v1432 = vpack.c.b16 %v1356, %v1354
      %v1433 = vpack.c.b16 %v1359, %v1357
      %v1434 = vpack.c.b16 %v1360, %v1358
      %v1435 = vpack.c.b16 %v1363, %v1361
      %v1436 = vpack.c.b16 %v1364, %v1362
      %v1437 = vpack.c.b16 %v1367, %v1365
      %v1438 = vpack.c.b16 %v1368, %v1366
      %v1439 = vpack.c.b16 %v1371, %v1369
      %v1440 = vpack.c.b16 %v1372, %v1370
      %v1441 = vpack.c.b16 %v1375, %v1373
      %v1442 = vpack.c.b16 %v1376, %v1374
      %v1443 = vpack.c.b16 %v1379, %v1377
      %v1444 = vpack.c.b16 %v1380, %v1378
      %v1445 = vpack.c.b16 %v1383, %v1381
      %v1446 = vpack.c.b16 %v1384, %v1382
      %v1447 = vpack.c.b16 %v1387, %v1385
      %v1448 = vpack.c.b16 %v1388, %v1386
      %v1449 = vpack.c.b16 %v1391, %v1389
      %v1450 = vpack.c.b16 %v1392, %v1390
      %v1451 = vpack.c.b16 %v1395, %v1393
      %v1452 = vpack.c.b16 %v1396, %v1394
      %v1453 = vpack.c.b16 %v1399, %v1397
      %v1454 = vpack.c.b16 %v1400, %v1398
      %v1455 = vpack.c.b16 %v1403, %v1401
      %v1456 = vpack.c.b16 %v1404, %v1402
      %v1457 = vpack.c.b16 %v1407, %v1405
      %v1458 = vpack.c.b16 %v1408, %v1406
      %v1459 = vpack.c.b16 %v1411, %v1409
      %v1460 = vpack.c.b16 %v1412, %v1410
      %v1461 = vpack.c.b16 %v1415, %v1413
      %v1462 = vpack.c.b16 %v1416, %v1414
      %v1463 = vpack.c.b16 %v1419, %v1417
      %v1464 = vpack.c.b16 %v1420, %v1418
      %v1465 = vpack.c.b16 %v1423, %v1421
      %v1466 = vpack.c.b16 %v1424, %v1422
      %v1509 = vsel %vm669, %v348, 0
      %v1512 = vsel %vm669, %v326, 0
      %v1515 = vsel %vm669, %v329, 0
      %v1518 = vsel %vm669, %v332, 0
      %1520 = vmatprep.subr.bf16.mxu0 %v1426
      %1521 = vmatpush1.bf16.msra.mxu0 %v1425
      %1522 = vmatprep.subr.bf16.mxu0 %v1428
      %1523 = vmatpush1.bf16.msra.mxu0 %v1427
      %1524 = vmatprep.subr.bf16.mxu0 %v1430
      %1525 = vmatpush1.bf16.msra.mxu0 %v1429
      %1526 = vmatprep.subr.bf16.mxu0 %v1432
      %1527 = vmatpush1.bf16.msra.mxu0 %v1431
      %1528 = vmatprep.subr.bf16.mxu0 %v1434
      %1529 = vmatpush1.bf16.msra.mxu0 %v1433
      %1530 = vmatprep.subr.bf16.mxu0 %v1436
      %1531 = vmatpush1.bf16.msra.mxu0 %v1435
      %1532 = vmatprep.subr.bf16.mxu0 %v1438
      %1533 = vmatpush1.bf16.msra.mxu0 %v1437
      %1534 = vmatprep.subr.bf16.mxu0 %v1440
      %1535 = vmatpush1.bf16.msra.mxu0 %v1439
      %1536 = vmatprep.subr.bf16.mxu0 %v1442
      %1537 = vmatpush1.bf16.msra.mxu0 %v1441
      %1538 = vmatprep.subr.bf16.mxu0 %v1444
      %1539 = vmatpush1.bf16.msra.mxu0 %v1443
      %1540 = vmatprep.subr.bf16.mxu0 %v1446
      %1541 = vmatpush1.bf16.msra.mxu0 %v1445
      %1542 = vmatprep.subr.bf16.mxu0 %v1448
      %1543 = vmatpush1.bf16.msra.mxu0 %v1447
      %1544 = vmatprep.subr.bf16.mxu0 %v1450
      %1545 = vmatpush1.bf16.msra.mxu0 %v1449
      %1546 = vmatprep.subr.bf16.mxu0 %v1452
      %1547 = vmatpush1.bf16.msra.mxu0 %v1451
      %1548 = vmatprep.subr.bf16.mxu0 %v1454
      %1549 = vmatpush1.bf16.msra.mxu0 %v1453
      %1550 = vmatprep.subr.bf16.mxu0 %v1456
      %1551 = vmatpush1.bf16.msra.mxu0 %v1455
      %1552 = vmatprep.mubr.bf16.mxu0 %v345
      %1553 = vmatmul.mubr.bf16.gmra.mrb[0].mxu0 %v342
      %v1554 = vpop.f32.mrb[0].mxu0
      %v1555 = vadd.f32 0.0, %v1554
      %v1556 = vpop.f32.mrb[0].mxu0
      %v1557 = vadd.f32 0.0, %v1556
      %v1558 = vpop.f32.mrb[0].mxu0
      %v1559 = vadd.f32 0.0, %v1558
      %v1560 = vpop.f32.mrb[0].mxu0
      %v1561 = vadd.f32 0.0, %v1560
      %1562 = vmatprep.mubr.bf16.mxu0 %v325
      %1563 = vmatmul.mubr.bf16.gmra.mrb[0].mxu0 %v324
      %v1564 = vpop.f32.mrb[0].mxu0
      %v1565 = vadd.f32 0.0, %v1564
      %v1566 = vpop.f32.mrb[0].mxu0
      %v1567 = vadd.f32 0.0, %v1566
      %v1568 = vpop.f32.mrb[0].mxu0
      %v1569 = vadd.f32 0.0, %v1568
      %v1570 = vpop.f32.mrb[0].mxu0
      %v1571 = vadd.f32 0.0, %v1570
      %1572 = vmatprep.mubr.bf16.mxu0 %v328
      %1573 = vmatmul.mubr.bf16.gmra.mrb[0].mxu0 %v327
      %v1574 = vpop.f32.mrb[0].mxu0
      %v1575 = vadd.f32 0.0, %v1574
      %v1576 = vpop.f32.mrb[0].mxu0
      %v1577 = vadd.f32 0.0, %v1576
      %v1578 = vpop.f32.mrb[0].mxu0
      %v1579 = vadd.f32 0.0, %v1578
      %v1580 = vpop.f32.mrb[0].mxu0
      %v1581 = vadd.f32 0.0, %v1580
      %1582 = vmatprep.mubr.bf16.mxu0 %v331
      %1583 = vmatmul.mubr.bf16.gmra.mrb[0].mxu0 %v330
      %v1584 = vpop.f32.mrb[0].mxu0
      %v1585 = vadd.f32 0.0, %v1584
      %v1586 = vpop.f32.mrb[0].mxu0
      %v1587 = vadd.f32 0.0, %v1586
      %v1588 = vpop.f32.mrb[0].mxu0
      %v1589 = vadd.f32 0.0, %v1588
      %v1590 = vpop.f32.mrb[0].mxu0
      %v1591 = vadd.f32 0.0, %v1590
      %1592 = vdwg.mxu0
      %1593 = vmatprep.subr.bf16.mxu0 %v1458
      %1594 = vmatpush1.bf16.msra.mxu0 %v1457
      %1595 = vmatprep.subr.bf16.mxu0 %v1460
      %1596 = vmatpush1.bf16.msra.mxu0 %v1459
      %1597 = vmatprep.subr.bf16.mxu0 %v1462
      %1598 = vmatpush1.bf16.msra.mxu0 %v1461
      %1599 = vmatprep.subr.bf16.mxu0 %v1464
      %1600 = vmatpush1.bf16.msra.mxu0 %v1463
      %1601 = vmatprep.subr.bf16.mxu0 %v1466
      %1602 = vmatpush1.bf16.msra.mxu0 %v1465
      %1603 = vmatprep.subr.bf16.mxu0 0
      %1604 = vmatpush1.bf16.msra.mxu0 0
      %1605 = vmatprep.subr.bf16.mxu0 0
      %1606 = vmatpush1.bf16.msra.mxu0 0
      %1607 = vmatprep.subr.bf16.mxu0 0
      %1608 = vmatpush1.bf16.msra.mxu0 0
      %1609 = vmatprep.subr.bf16.mxu0 0
      %1610 = vmatpush1.bf16.msra.mxu0 0
      %1611 = vmatprep.subr.bf16.mxu0 0
      %1612 = vmatpush1.bf16.msra.mxu0 0
      %1613 = vmatprep.subr.bf16.mxu0 0
      %1614 = vmatpush1.bf16.msra.mxu0 0
      %1615 = vmatprep.subr.bf16.mxu0 0
      %1616 = vmatpush1.bf16.msra.mxu0 0
      %1617 = vmatprep.subr.bf16.mxu0 0
      %1618 = vmatpush1.bf16.msra.mxu0 0
      %1619 = vmatprep.subr.bf16.mxu0 0
      %1620 = vmatpush1.bf16.msra.mxu0 0
      %1621 = vmatprep.subr.bf16.mxu0 0
      %1622 = vmatpush1.bf16.msra.mxu0 0
      %1623 = vmatprep.subr.bf16.mxu0 0
      %1624 = vmatpush1.bf16.msra.mxu0 0
      %1625 = vmatprep.mubr.bf16.mxu0 0
      %1626 = vmatmul.mubr.bf16.gmra.mrb[0].mxu0 %v1509
      %v1627 = vpop.f32.mrb[0].mxu0
      %v1628 = vadd.f32 %v1555, %v1627
      %v1629 = vpop.f32.mrb[0].mxu0
      %v1630 = vadd.f32 %v1557, %v1629
      %v1631 = vpop.f32.mrb[0].mxu0
      %v1632 = vadd.f32 %v1559, %v1631
      %v1633 = vpop.f32.mrb[0].mxu0
      %v1634 = vadd.f32 %v1561, %v1633
      %1635 = vmatprep.mubr.bf16.mxu0 0
      %1636 = vmatmul.mubr.bf16.gmra.mrb[0].mxu0 %v1512
      %v1637 = vpop.f32.mrb[0].mxu0
      %v1638 = vadd.f32 %v1565, %v1637
      %v1639 = vpop.f32.mrb[0].mxu0
      %v1640 = vadd.f32 %v1567, %v1639
      %v1641 = vpop.f32.mrb[0].mxu0
      %v1642 = vadd.f32 %v1569, %v1641
      %v1643 = vpop.f32.mrb[0].mxu0
      %v1644 = vadd.f32 %v1571, %v1643
      %1645 = vmatprep.mubr.bf16.mxu0 0
      %1646 = vmatmul.mubr.bf16.gmra.mrb[0].mxu0 %v1515
      %v1647 = vpop.f32.mrb[0].mxu0
      %v1648 = vadd.f32 %v1575, %v1647
      %v1649 = vpop.f32.mrb[0].mxu0
      %v1650 = vadd.f32 %v1577, %v1649
      %v1651 = vpop.f32.mrb[0].mxu0
      %v1652 = vadd.f32 %v1579, %v1651
      %v1653 = vpop.f32.mrb[0].mxu0
      %v1654 = vadd.f32 %v1581, %v1653
      %1655 = vmatprep.mubr.bf16.mxu0 0
      %1656 = vmatmul.mubr.bf16.gmra.mrb[0].mxu0 %v1518
      %v1657 = vpop.f32.mrb[0].mxu0
      %v1658 = vadd.f32 %v1585, %v1657
      %v1659 = vpop.f32.mrb[0].mxu0
      %v1660 = vadd.f32 %v1587, %v1659
      %v1661 = vpop.f32.mrb[0].mxu0
      %v1662 = vadd.f32 %v1589, %v1661
      %v1663 = vpop.f32.mrb[0].mxu0
      %v1664 = vadd.f32 %v1591, %v1663
      %1665 = vdwg.mxu0
      %v1666 = vadd.f32 %v1218, %v1628
      %v1667 = vadd.f32 %v1220, %v1630
      %v1668 = vadd.f32 %v1222, %v1632
      %v1669 = vadd.f32 %v1224, %v1634
      %v1670 = vadd.f32 %v1228, %v1638
      %v1671 = vadd.f32 %v1230, %v1640
      %v1672 = vadd.f32 %v1232, %v1642
      %v1673 = vadd.f32 %v1234, %v1644
      %v1674 = vadd.f32 %v1238, %v1648
      %v1675 = vadd.f32 %v1240, %v1650
      %v1676 = vadd.f32 %v1242, %v1652
      %v1677 = vadd.f32 %v1244, %v1654
      %v1678 = vadd.f32 %v1248, %v1658
      %v1679 = vadd.f32 %v1250, %v1660
      %v1680 = vadd.f32 %v1252, %v1662
      %v1681 = vadd.f32 %v1254, %v1664
      %s1682 = scalar_lea.vmem %s238, 1008
      %v1683 = vld [vmem:[%s1682] sm:$0xff]
      %v1684 = vld [vmem:[%s1682 + $0x8] sm:$0xff]
      %v1685 = vld [vmem:[%s1682 + $0x10] sm:$0xff]
      %v1686 = vld [vmem:[%s1682 + $0x18] sm:$0xff]
      %v1687 = vld [vmem:[%s1682 + $0x20] sm:$0xff]
      %v1688 = vld [vmem:[%s1682 + $0x28] sm:$0xff]
      %v1689 = vld [vmem:[%s1682 + $0x30] sm:$0xff]
      %v1690 = vld [vmem:[%s1682 + $0x38] sm:$0xff]
      %v1691 = vld [vmem:[%s1682 + $0x40] sm:$0xff]
      %v1692 = vld [vmem:[%s1682 + $0x48] sm:$0xff]
      %v1693 = vld [vmem:[%s1682 + $0x50] sm:$0xff]
      %v1694 = vld [vmem:[%s1682 + $0x58] sm:$0xff]
      %v1695 = vld [vmem:[%s1682 + $0x60] sm:$0xff]
      %v1696 = vld [vmem:[%s1682 + $0x68] sm:$0xff]
      %v1697 = vld [vmem:[%s1682 + $0x70] sm:$0xff]
      %v1698 = vld [vmem:[%s1682 + $0x78] sm:$0xff]
      %v1699 = vld [vmem:[%s1682 + $0x80] sm:$0xff]
      %v1700 = vld [vmem:[%s1682 + $0x88] sm:$0xff]
      %v1701 = vld [vmem:[%s1682 + $0x90] sm:$0xff]
      %v1702 = vld [vmem:[%s1682 + $0x98] sm:$0xff]
      %v1703 = vld [vmem:[%s1682 + $0xa0] sm:$0xff]
      %v1704 = vld [vmem:[%s1682 + $0xa8] sm:$0xff]
      %v1705 = vld [vmem:[%s1682 + $0xb0] sm:$0xff]
      %v1706 = vld [vmem:[%s1682 + $0xb8] sm:$0xff]
      %v1707 = vld [vmem:[%s1682 + $0xc0] sm:$0xff]
      %v1708 = vld [vmem:[%s1682 + $0xc8] sm:$0xff]
      %v1709 = vld [vmem:[%s1682 + $0xd0] sm:$0xff]
      %v1710 = vld [vmem:[%s1682 + $0xd8] sm:$0xff]
      %v1711 = vld [vmem:[%s1682 + $0xe0] sm:$0xff]
      %v1712 = vld [vmem:[%s1682 + $0xe8] sm:$0xff]
      %v1713 = vld [vmem:[%s1682 + $0xf0] sm:$0xff]
      %v1714 = vld [vmem:[%s1682 + $0xf8] sm:$0xff]
      %v1715 = vld [vmem:[%s1682 + $0x100] sm:$0xff]
      %v1716 = vld [vmem:[%s1682 + $0x108] sm:$0xff]
      %v1717 = vld [vmem:[%s1682 + $0x110] sm:$0xff]
      %v1718 = vld [vmem:[%s1682 + $0x118] sm:$0xff]
      %v1719 = vld [vmem:[%s1682 + $0x120] sm:$0xff]
      %v1720 = vld [vmem:[%s1682 + $0x128] sm:$0xff]
      %v1721 = vld [vmem:[%s1682 + $0x130] sm:$0xff]
      %v1722 = vld [vmem:[%s1682 + $0x138] sm:$0xff]
      %v1723 = vld [vmem:[%s1682 + $0x140] sm:$0xff]
      %v1724 = vld [vmem:[%s1682 + $0x148] sm:$0xff]
      %s1725 = scalar_lea.vmem %s238, 1344
      %v1726 = vld [vmem:[%s1725] sm:$0xff]
      %v1727 = vld [vmem:[%s1725 + $0x8] sm:$0xff]
      %v1728 = vld [vmem:[%s1725 + $0x10] sm:$0xff]
      %v1729 = vld [vmem:[%s1725 + $0x18] sm:$0xff]
      %v1730 = vld [vmem:[%s1725 + $0x20] sm:$0xff]
      %v1731 = vld [vmem:[%s1725 + $0x28] sm:$0xff]
      %v1732 = vld [vmem:[%s1725 + $0x30] sm:$0xff]
      %v1733 = vld [vmem:[%s1725 + $0x38] sm:$0xff]
      %v1734 = vld [vmem:[%s1725 + $0x40] sm:$0xff]
      %v1735 = vld [vmem:[%s1725 + $0x48] sm:$0xff]
      %v1736 = vld [vmem:[%s1725 + $0x50] sm:$0xff]
      %v1737 = vld [vmem:[%s1725 + $0x58] sm:$0xff]
      %v1738 = vld [vmem:[%s1725 + $0x60] sm:$0xff]
      %v1739 = vld [vmem:[%s1725 + $0x68] sm:$0xff]
      %v1740 = vld [vmem:[%s1725 + $0x70] sm:$0xff]
      %v1741 = vld [vmem:[%s1725 + $0x78] sm:$0xff]
      %v1742 = vld [vmem:[%s1725 + $0x80] sm:$0xff]
      %v1743 = vld [vmem:[%s1725 + $0x88] sm:$0xff]
      %v1744 = vld [vmem:[%s1725 + $0x90] sm:$0xff]
      %v1745 = vld [vmem:[%s1725 + $0x98] sm:$0xff]
      %v1746 = vld [vmem:[%s1725 + $0xa0] sm:$0xff]
      %v1747 = vld [vmem:[%s1725 + $0xa8] sm:$0xff]
      %v1748 = vld [vmem:[%s1725 + $0xb0] sm:$0xff]
      %v1749 = vld [vmem:[%s1725 + $0xb8] sm:$0xff]
      %v1750 = vld [vmem:[%s1725 + $0xc0] sm:$0xff]
      %v1751 = vld [vmem:[%s1725 + $0xc8] sm:$0xff]
      %v1752 = vld [vmem:[%s1725 + $0xd0] sm:$0xff]
      %v1753 = vld [vmem:[%s1725 + $0xd8] sm:$0xff]
      %v1754 = vld [vmem:[%s1725 + $0xe0] sm:$0xff]
      %v1755 = vld [vmem:[%s1725 + $0xe8] sm:$0xff]
      %v1756 = vld [vmem:[%s1725 + $0xf0] sm:$0xff]
      %v1757 = vld [vmem:[%s1725 + $0xf8] sm:$0xff]
      %v1758 = vld [vmem:[%s1725 + $0x100] sm:$0xff]
      %v1759 = vld [vmem:[%s1725 + $0x108] sm:$0xff]
      %v1760 = vld [vmem:[%s1725 + $0x110] sm:$0xff]
      %v1761 = vld [vmem:[%s1725 + $0x118] sm:$0xff]
      %v1762 = vld [vmem:[%s1725 + $0x120] sm:$0xff]
      %v1763 = vld [vmem:[%s1725 + $0x128] sm:$0xff]
      %v1764 = vld [vmem:[%s1725 + $0x130] sm:$0xff]
      %v1765 = vld [vmem:[%s1725 + $0x138] sm:$0xff]
      %v1766 = vld [vmem:[%s1725 + $0x140] sm:$0xff]
      %v1767 = vld [vmem:[%s1725 + $0x148] sm:$0xff]
      %v1810 = vunpack.c.l.b16 %v1726
      %v1811 = vunpack.c.h.b16 %v1726
      %v1812 = vunpack.c.l.b16 %v1727
      %v1813 = vunpack.c.h.b16 %v1727
      %v1814 = vunpack.c.l.b16 %v1728
      %v1815 = vunpack.c.h.b16 %v1728
      %v1816 = vunpack.c.l.b16 %v1729
      %v1817 = vunpack.c.h.b16 %v1729
      %v1818 = vunpack.c.l.b16 %v1730
      %v1819 = vunpack.c.h.b16 %v1730
      %v1820 = vunpack.c.l.b16 %v1731
      %v1821 = vunpack.c.h.b16 %v1731
      %v1822 = vunpack.c.l.b16 %v1732
      %v1823 = vunpack.c.h.b16 %v1732
      %v1824 = vunpack.c.l.b16 %v1733
      %v1825 = vunpack.c.h.b16 %v1733
      %v1826 = vunpack.c.l.b16 %v1734
      %v1827 = vunpack.c.h.b16 %v1734
      %v1828 = vunpack.c.l.b16 %v1735
      %v1829 = vunpack.c.h.b16 %v1735
      %v1830 = vunpack.c.l.b16 %v1736
      %v1831 = vunpack.c.h.b16 %v1736
      %v1832 = vunpack.c.l.b16 %v1737
      %v1833 = vunpack.c.h.b16 %v1737
      %v1834 = vunpack.c.l.b16 %v1738
      %v1835 = vunpack.c.h.b16 %v1738
      %v1836 = vunpack.c.l.b16 %v1739
      %v1837 = vunpack.c.h.b16 %v1739
      %v1838 = vunpack.c.l.b16 %v1740
      %v1839 = vunpack.c.h.b16 %v1740
      %v1840 = vunpack.c.l.b16 %v1741
      %v1841 = vunpack.c.h.b16 %v1741
      %v1842 = vunpack.c.l.b16 %v1742
      %v1843 = vunpack.c.h.b16 %v1742
      %v1844 = vunpack.c.l.b16 %v1743
      %v1845 = vunpack.c.h.b16 %v1743
      %v1846 = vunpack.c.l.b16 %v1744
      %v1847 = vunpack.c.h.b16 %v1744
      %v1848 = vunpack.c.l.b16 %v1745
      %v1849 = vunpack.c.h.b16 %v1745
      %v1850 = vunpack.c.l.b16 %v1746
      %v1851 = vunpack.c.h.b16 %v1746
      %v1852 = vunpack.c.l.b16 %v1747
      %v1853 = vunpack.c.h.b16 %v1747
      %v1854 = vunpack.c.l.b16 %v1748
      %v1855 = vunpack.c.h.b16 %v1748
      %v1856 = vunpack.c.l.b16 %v1749
      %v1857 = vunpack.c.h.b16 %v1749
      %v1858 = vunpack.c.l.b16 %v1750
      %v1859 = vunpack.c.h.b16 %v1750
      %v1860 = vunpack.c.l.b16 %v1751
      %v1861 = vunpack.c.h.b16 %v1751
      %v1862 = vunpack.c.l.b16 %v1752
      %v1863 = vunpack.c.h.b16 %v1752
      %v1864 = vunpack.c.l.b16 %v1753
      %v1865 = vunpack.c.h.b16 %v1753
      %v1866 = vunpack.c.l.b16 %v1754
      %v1867 = vunpack.c.h.b16 %v1754
      %v1868 = vunpack.c.l.b16 %v1755
      %v1869 = vunpack.c.h.b16 %v1755
      %v1870 = vunpack.c.l.b16 %v1756
      %v1871 = vunpack.c.h.b16 %v1756
      %v1872 = vunpack.c.l.b16 %v1757
      %v1873 = vunpack.c.h.b16 %v1757
      %v1874 = vunpack.c.l.b16 %v1758
      %v1875 = vunpack.c.h.b16 %v1758
      %v1876 = vunpack.c.l.b16 %v1759
      %v1877 = vunpack.c.h.b16 %v1759
      %v1878 = vunpack.c.l.b16 %v1760
      %v1879 = vunpack.c.h.b16 %v1760
      %v1880 = vunpack.c.l.b16 %v1761
      %v1881 = vunpack.c.h.b16 %v1761
      %v1882 = vunpack.c.l.b16 %v1762
      %v1883 = vunpack.c.h.b16 %v1762
      %v1884 = vunpack.c.l.b16 %v1763
      %v1885 = vunpack.c.h.b16 %v1763
      %v1886 = vunpack.c.l.b16 %v1764
      %v1887 = vunpack.c.h.b16 %v1764
      %v1888 = vunpack.c.l.b16 %v1765
      %v1889 = vunpack.c.h.b16 %v1765
      %v1890 = vunpack.c.l.b16 %v1766
      %v1891 = vunpack.c.h.b16 %v1766
      %v1892 = vunpack.c.l.b16 %v1767
      %v1893 = vunpack.c.h.b16 %v1767
      %v1894 = vpack.c.b16 %v1812, %v1810
      %v1895 = vpack.c.b16 %v1813, %v1811
      %v1896 = vpack.c.b16 %v1816, %v1814
      %v1897 = vpack.c.b16 %v1817, %v1815
      %v1898 = vpack.c.b16 %v1820, %v1818
      %v1899 = vpack.c.b16 %v1821, %v1819
      %v1900 = vpack.c.b16 %v1824, %v1822
      %v1901 = vpack.c.b16 %v1825, %v1823
      %v1902 = vpack.c.b16 %v1828, %v1826
      %v1903 = vpack.c.b16 %v1829, %v1827
      %v1904 = vpack.c.b16 %v1832, %v1830
      %v1905 = vpack.c.b16 %v1833, %v1831
      %v1906 = vpack.c.b16 %v1836, %v1834
      %v1907 = vpack.c.b16 %v1837, %v1835
      %v1908 = vpack.c.b16 %v1840, %v1838
      %v1909 = vpack.c.b16 %v1841, %v1839
      %v1910 = vpack.c.b16 %v1844, %v1842
      %v1911 = vpack.c.b16 %v1845, %v1843
      %v1912 = vpack.c.b16 %v1848, %v1846
      %v1913 = vpack.c.b16 %v1849, %v1847
      %v1914 = vpack.c.b16 %v1852, %v1850
      %v1915 = vpack.c.b16 %v1853, %v1851
      %v1916 = vpack.c.b16 %v1856, %v1854
      %v1917 = vpack.c.b16 %v1857, %v1855
      %v1918 = vpack.c.b16 %v1860, %v1858
      %v1919 = vpack.c.b16 %v1861, %v1859
      %v1920 = vpack.c.b16 %v1864, %v1862
      %v1921 = vpack.c.b16 %v1865, %v1863
      %v1922 = vpack.c.b16 %v1868, %v1866
      %v1923 = vpack.c.b16 %v1869, %v1867
      %v1924 = vpack.c.b16 %v1872, %v1870
      %v1925 = vpack.c.b16 %v1873, %v1871
      %v1926 = vpack.c.b16 %v1876, %v1874
      %v1927 = vpack.c.b16 %v1877, %v1875
      %v1928 = vpack.c.b16 %v1880, %v1878
      %v1929 = vpack.c.b16 %v1881, %v1879
      %v1930 = vpack.c.b16 %v1884, %v1882
      %v1931 = vpack.c.b16 %v1885, %v1883
      %v1932 = vpack.c.b16 %v1888, %v1886
      %v1933 = vpack.c.b16 %v1889, %v1887
      %v1934 = vpack.c.b16 %v1892, %v1890
      %v1935 = vpack.c.b16 %v1893, %v1891
      %1978 = vmatprep.subr.bf16.mxu0 %v1895
      %1979 = vmatpush1.bf16.msra.mxu0 %v1894
      %1980 = vmatprep.subr.bf16.mxu0 %v1897
      %1981 = vmatpush1.bf16.msra.mxu0 %v1896
      %1982 = vmatprep.subr.bf16.mxu0 %v1899
      %1983 = vmatpush1.bf16.msra.mxu0 %v1898
      %1984 = vmatprep.subr.bf16.mxu0 %v1901
      %1985 = vmatpush1.bf16.msra.mxu0 %v1900
      %1986 = vmatprep.subr.bf16.mxu0 %v1903
      %1987 = vmatpush1.bf16.msra.mxu0 %v1902
      %1988 = vmatprep.subr.bf16.mxu0 %v1905
      %1989 = vmatpush1.bf16.msra.mxu0 %v1904
      %1990 = vmatprep.subr.bf16.mxu0 %v1907
      %1991 = vmatpush1.bf16.msra.mxu0 %v1906
      %1992 = vmatprep.subr.bf16.mxu0 %v1909
      %1993 = vmatpush1.bf16.msra.mxu0 %v1908
      %1994 = vmatprep.subr.bf16.mxu0 %v1911
      %1995 = vmatpush1.bf16.msra.mxu0 %v1910
      %1996 = vmatprep.subr.bf16.mxu0 %v1913
      %1997 = vmatpush1.bf16.msra.mxu0 %v1912
      %1998 = vmatprep.subr.bf16.mxu0 %v1915
      %1999 = vmatpush1.bf16.msra.mxu0 %v1914
      %2000 = vmatprep.subr.bf16.mxu0 %v1917
      %2001 = vmatpush1.bf16.msra.mxu0 %v1916
      %2002 = vmatprep.subr.bf16.mxu0 %v1919
      %2003 = vmatpush1.bf16.msra.mxu0 %v1918
      %2004 = vmatprep.subr.bf16.mxu0 %v1921
      %2005 = vmatpush1.bf16.msra.mxu0 %v1920
      %2006 = vmatprep.subr.bf16.mxu0 %v1923
      %2007 = vmatpush1.bf16.msra.mxu0 %v1922
      %2008 = vmatprep.subr.bf16.mxu0 %v1925
      %2009 = vmatpush1.bf16.msra.mxu0 %v1924
      %2010 = vmatprep.mubr.bf16.mxu0 %v440
      %2011 = vmatmul.mubr.bf16.gmra.mrb[0].mxu0 %v439
      %v2012 = vpop.f32.mrb[0].mxu0
      %v2013 = vadd.f32 0.0, %v2012
      %v2014 = vpop.f32.mrb[0].mxu0
      %v2015 = vadd.f32 0.0, %v2014
      %v2016 = vpop.f32.mrb[0].mxu0
      %v2017 = vadd.f32 0.0, %v2016
      %v2018 = vpop.f32.mrb[0].mxu0
      %v2019 = vadd.f32 0.0, %v2018
      %2020 = vmatprep.mubr.bf16.mxu0 %v443
      %2021 = vmatmul.mubr.bf16.gmra.mrb[0].mxu0 %v442
      %v2022 = vpop.f32.mrb[0].mxu0
      %v2023 = vadd.f32 0.0, %v2022
      %v2024 = vpop.f32.mrb[0].mxu0
      %v2025 = vadd.f32 0.0, %v2024
      %v2026 = vpop.f32.mrb[0].mxu0
      %v2027 = vadd.f32 0.0, %v2026
      %v2028 = vpop.f32.mrb[0].mxu0
      %v2029 = vadd.f32 0.0, %v2028
      %2030 = vmatprep.mubr.bf16.mxu0 %v446
      %2031 = vmatmul.mubr.bf16.gmra.mrb[0].mxu0 %v445
      %v2032 = vpop.f32.mrb[0].mxu0
      %v2033 = vadd.f32 0.0, %v2032
      %v2034 = vpop.f32.mrb[0].mxu0
      %v2035 = vadd.f32 0.0, %v2034
      %v2036 = vpop.f32.mrb[0].mxu0
      %v2037 = vadd.f32 0.0, %v2036
      %v2038 = vpop.f32.mrb[0].mxu0
      %v2039 = vadd.f32 0.0, %v2038
      %2040 = vmatprep.mubr.bf16.mxu0 %v449
      %2041 = vmatmul.mubr.bf16.gmra.mrb[0].mxu0 %v448
      %v2042 = vpop.f32.mrb[0].mxu0
      %v2043 = vadd.f32 0.0, %v2042
      %v2044 = vpop.f32.mrb[0].mxu0
      %v2045 = vadd.f32 0.0, %v2044
      %v2046 = vpop.f32.mrb[0].mxu0
      %v2047 = vadd.f32 0.0, %v2046
      %v2048 = vpop.f32.mrb[0].mxu0
      %v2049 = vadd.f32 0.0, %v2048
      %2050 = vdwg.mxu0
      %2051 = vmatprep.subr.bf16.mxu0 %v1927
      %2052 = vmatpush1.bf16.msra.mxu0 %v1926
      %2053 = vmatprep.subr.bf16.mxu0 %v1929
      %2054 = vmatpush1.bf16.msra.mxu0 %v1928
      %2055 = vmatprep.subr.bf16.mxu0 %v1931
      %2056 = vmatpush1.bf16.msra.mxu0 %v1930
      %2057 = vmatprep.subr.bf16.mxu0 %v1933
      %2058 = vmatpush1.bf16.msra.mxu0 %v1932
      %2059 = vmatprep.subr.bf16.mxu0 %v1935
      %2060 = vmatpush1.bf16.msra.mxu0 %v1934
      %2061 = vmatprep.subr.bf16.mxu0 0
      %2062 = vmatpush1.bf16.msra.mxu0 0
      %2063 = vmatprep.subr.bf16.mxu0 0
      %2064 = vmatpush1.bf16.msra.mxu0 0
      %2065 = vmatprep.subr.bf16.mxu0 0
      %2066 = vmatpush1.bf16.msra.mxu0 0
      %2067 = vmatprep.subr.bf16.mxu0 0
      %2068 = vmatpush1.bf16.msra.mxu0 0
      %2069 = vmatprep.subr.bf16.mxu0 0
      %2070 = vmatpush1.bf16.msra.mxu0 0
      %2071 = vmatprep.subr.bf16.mxu0 0
      %2072 = vmatpush1.bf16.msra.mxu0 0
      %2073 = vmatprep.subr.bf16.mxu0 0
      %2074 = vmatpush1.bf16.msra.mxu0 0
      %2075 = vmatprep.subr.bf16.mxu0 0
      %2076 = vmatpush1.bf16.msra.mxu0 0
      %2077 = vmatprep.subr.bf16.mxu0 0
      %2078 = vmatpush1.bf16.msra.mxu0 0
      %2079 = vmatprep.subr.bf16.mxu0 0
      %2080 = vmatpush1.bf16.msra.mxu0 0
      %2081 = vmatprep.subr.bf16.mxu0 0
      %2082 = vmatpush1.bf16.msra.mxu0 0
      %2083 = vmatprep.mubr.bf16.mxu0 0
      %2084 = vmatmul.mubr.bf16.gmra.mrb[0].mxu0 %v671
      %v2085 = vpop.f32.mrb[0].mxu0
      %v2086 = vadd.f32 %v2013, %v2085
      %v2087 = vpop.f32.mrb[0].mxu0
      %v2088 = vadd.f32 %v2015, %v2087
      %v2089 = vpop.f32.mrb[0].mxu0
      %v2090 = vadd.f32 %v2017, %v2089
      %v2091 = vpop.f32.mrb[0].mxu0
      %v2092 = vadd.f32 %v2019, %v2091
      %2093 = vmatprep.mubr.bf16.mxu0 0
      %2094 = vmatmul.mubr.bf16.gmra.mrb[0].mxu0 %v674
      %v2095 = vpop.f32.mrb[0].mxu0
      %v2096 = vadd.f32 %v2023, %v2095
      %v2097 = vpop.f32.mrb[0].mxu0
      %v2098 = vadd.f32 %v2025, %v2097
      %v2099 = vpop.f32.mrb[0].mxu0
      %v2100 = vadd.f32 %v2027, %v2099
      %v2101 = vpop.f32.mrb[0].mxu0
      %v2102 = vadd.f32 %v2029, %v2101
      %2103 = vmatprep.mubr.bf16.mxu0 0
      %2104 = vmatmul.mubr.bf16.gmra.mrb[0].mxu0 %v677
      %v2105 = vpop.f32.mrb[0].mxu0
      %v2106 = vadd.f32 %v2033, %v2105
      %v2107 = vpop.f32.mrb[0].mxu0
      %v2108 = vadd.f32 %v2035, %v2107
      %v2109 = vpop.f32.mrb[0].mxu0
      %v2110 = vadd.f32 %v2037, %v2109
      %v2111 = vpop.f32.mrb[0].mxu0
      %v2112 = vadd.f32 %v2039, %v2111
      %2113 = vmatprep.mubr.bf16.mxu0 0
      %2114 = vmatmul.mubr.bf16.gmra.mrb[0].mxu0 %v680
      %v2115 = vpop.f32.mrb[0].mxu0
      %v2116 = vadd.f32 %v2043, %v2115
      %v2117 = vpop.f32.mrb[0].mxu0
      %v2118 = vadd.f32 %v2045, %v2117
      %v2119 = vpop.f32.mrb[0].mxu0
      %v2120 = vadd.f32 %v2047, %v2119
      %v2121 = vpop.f32.mrb[0].mxu0
      %v2122 = vadd.f32 %v2049, %v2121
      %2123 = vdwg.mxu0
      %v2166 = vunpack.c.l.b16 %v1683
      %v2167 = vunpack.c.h.b16 %v1683
      %v2168 = vunpack.c.l.b16 %v1684
      %v2169 = vunpack.c.h.b16 %v1684
      %v2170 = vunpack.c.l.b16 %v1685
      %v2171 = vunpack.c.h.b16 %v1685
      %v2172 = vunpack.c.l.b16 %v1686
      %v2173 = vunpack.c.h.b16 %v1686
      %v2174 = vunpack.c.l.b16 %v1687
      %v2175 = vunpack.c.h.b16 %v1687
      %v2176 = vunpack.c.l.b16 %v1688
      %v2177 = vunpack.c.h.b16 %v1688
      %v2178 = vunpack.c.l.b16 %v1689
      %v2179 = vunpack.c.h.b16 %v1689
      %v2180 = vunpack.c.l.b16 %v1690
      %v2181 = vunpack.c.h.b16 %v1690
      %v2182 = vunpack.c.l.b16 %v1691
      %v2183 = vunpack.c.h.b16 %v1691
      %v2184 = vunpack.c.l.b16 %v1692
      %v2185 = vunpack.c.h.b16 %v1692
      %v2186 = vunpack.c.l.b16 %v1693
      %v2187 = vunpack.c.h.b16 %v1693
      %v2188 = vunpack.c.l.b16 %v1694
      %v2189 = vunpack.c.h.b16 %v1694
      %v2190 = vunpack.c.l.b16 %v1695
      %v2191 = vunpack.c.h.b16 %v1695
      %v2192 = vunpack.c.l.b16 %v1696
      %v2193 = vunpack.c.h.b16 %v1696
      %v2194 = vunpack.c.l.b16 %v1697
      %v2195 = vunpack.c.h.b16 %v1697
      %v2196 = vunpack.c.l.b16 %v1698
      %v2197 = vunpack.c.h.b16 %v1698
      %v2198 = vunpack.c.l.b16 %v1699
      %v2199 = vunpack.c.h.b16 %v1699
      %v2200 = vunpack.c.l.b16 %v1700
      %v2201 = vunpack.c.h.b16 %v1700
      %v2202 = vunpack.c.l.b16 %v1701
      %v2203 = vunpack.c.h.b16 %v1701
      %v2204 = vunpack.c.l.b16 %v1702
      %v2205 = vunpack.c.h.b16 %v1702
      %v2206 = vunpack.c.l.b16 %v1703
      %v2207 = vunpack.c.h.b16 %v1703
      %v2208 = vunpack.c.l.b16 %v1704
      %v2209 = vunpack.c.h.b16 %v1704
      %v2210 = vunpack.c.l.b16 %v1705
      %v2211 = vunpack.c.h.b16 %v1705
      %v2212 = vunpack.c.l.b16 %v1706
      %v2213 = vunpack.c.h.b16 %v1706
      %v2214 = vunpack.c.l.b16 %v1707
      %v2215 = vunpack.c.h.b16 %v1707
      %v2216 = vunpack.c.l.b16 %v1708
      %v2217 = vunpack.c.h.b16 %v1708
      %v2218 = vunpack.c.l.b16 %v1709
      %v2219 = vunpack.c.h.b16 %v1709
      %v2220 = vunpack.c.l.b16 %v1710
      %v2221 = vunpack.c.h.b16 %v1710
      %v2222 = vunpack.c.l.b16 %v1711
      %v2223 = vunpack.c.h.b16 %v1711
      %v2224 = vunpack.c.l.b16 %v1712
      %v2225 = vunpack.c.h.b16 %v1712
      %v2226 = vunpack.c.l.b16 %v1713
      %v2227 = vunpack.c.h.b16 %v1713
      %v2228 = vunpack.c.l.b16 %v1714
      %v2229 = vunpack.c.h.b16 %v1714
      %v2230 = vunpack.c.l.b16 %v1715
      %v2231 = vunpack.c.h.b16 %v1715
      %v2232 = vunpack.c.l.b16 %v1716
      %v2233 = vunpack.c.h.b16 %v1716
      %v2234 = vunpack.c.l.b16 %v1717
      %v2235 = vunpack.c.h.b16 %v1717
      %v2236 = vunpack.c.l.b16 %v1718
      %v2237 = vunpack.c.h.b16 %v1718
      %v2238 = vunpack.c.l.b16 %v1719
      %v2239 = vunpack.c.h.b16 %v1719
      %v2240 = vunpack.c.l.b16 %v1720
      %v2241 = vunpack.c.h.b16 %v1720
      %v2242 = vunpack.c.l.b16 %v1721
      %v2243 = vunpack.c.h.b16 %v1721
      %v2244 = vunpack.c.l.b16 %v1722
      %v2245 = vunpack.c.h.b16 %v1722
      %v2246 = vunpack.c.l.b16 %v1723
      %v2247 = vunpack.c.h.b16 %v1723
      %v2248 = vunpack.c.l.b16 %v1724
      %v2249 = vunpack.c.h.b16 %v1724
      %v2250 = vpack.c.b16 %v2168, %v2166
      %v2251 = vpack.c.b16 %v2169, %v2167
      %v2252 = vpack.c.b16 %v2172, %v2170
      %v2253 = vpack.c.b16 %v2173, %v2171
      %v2254 = vpack.c.b16 %v2176, %v2174
      %v2255 = vpack.c.b16 %v2177, %v2175
      %v2256 = vpack.c.b16 %v2180, %v2178
      %v2257 = vpack.c.b16 %v2181, %v2179
      %v2258 = vpack.c.b16 %v2184, %v2182
      %v2259 = vpack.c.b16 %v2185, %v2183
      %v2260 = vpack.c.b16 %v2188, %v2186
      %v2261 = vpack.c.b16 %v2189, %v2187
      %v2262 = vpack.c.b16 %v2192, %v2190
      %v2263 = vpack.c.b16 %v2193, %v2191
      %v2264 = vpack.c.b16 %v2196, %v2194
      %v2265 = vpack.c.b16 %v2197, %v2195
      %v2266 = vpack.c.b16 %v2200, %v2198
      %v2267 = vpack.c.b16 %v2201, %v2199
      %v2268 = vpack.c.b16 %v2204, %v2202
      %v2269 = vpack.c.b16 %v2205, %v2203
      %v2270 = vpack.c.b16 %v2208, %v2206
      %v2271 = vpack.c.b16 %v2209, %v2207
      %v2272 = vpack.c.b16 %v2212, %v2210
      %v2273 = vpack.c.b16 %v2213, %v2211
      %v2274 = vpack.c.b16 %v2216, %v2214
      %v2275 = vpack.c.b16 %v2217, %v2215
      %v2276 = vpack.c.b16 %v2220, %v2218
      %v2277 = vpack.c.b16 %v2221, %v2219
      %v2278 = vpack.c.b16 %v2224, %v2222
      %v2279 = vpack.c.b16 %v2225, %v2223
      %v2280 = vpack.c.b16 %v2228, %v2226
      %v2281 = vpack.c.b16 %v2229, %v2227
      %v2282 = vpack.c.b16 %v2232, %v2230
      %v2283 = vpack.c.b16 %v2233, %v2231
      %v2284 = vpack.c.b16 %v2236, %v2234
      %v2285 = vpack.c.b16 %v2237, %v2235
      %v2286 = vpack.c.b16 %v2240, %v2238
      %v2287 = vpack.c.b16 %v2241, %v2239
      %v2288 = vpack.c.b16 %v2244, %v2242
      %v2289 = vpack.c.b16 %v2245, %v2243
      %v2290 = vpack.c.b16 %v2248, %v2246
      %v2291 = vpack.c.b16 %v2249, %v2247
      %2334 = vmatprep.subr.bf16.mxu0 %v2251
      %2335 = vmatpush1.bf16.msra.mxu0 %v2250
      %2336 = vmatprep.subr.bf16.mxu0 %v2253
      %2337 = vmatpush1.bf16.msra.mxu0 %v2252
      %2338 = vmatprep.subr.bf16.mxu0 %v2255
      %2339 = vmatpush1.bf16.msra.mxu0 %v2254
      %2340 = vmatprep.subr.bf16.mxu0 %v2257
      %2341 = vmatpush1.bf16.msra.mxu0 %v2256
      %2342 = vmatprep.subr.bf16.mxu0 %v2259
      %2343 = vmatpush1.bf16.msra.mxu0 %v2258
      %2344 = vmatprep.subr.bf16.mxu0 %v2261
      %2345 = vmatpush1.bf16.msra.mxu0 %v2260
      %2346 = vmatprep.subr.bf16.mxu0 %v2263
      %2347 = vmatpush1.bf16.msra.mxu0 %v2262
      %2348 = vmatprep.subr.bf16.mxu0 %v2265
      %2349 = vmatpush1.bf16.msra.mxu0 %v2264
      %2350 = vmatprep.subr.bf16.mxu0 %v2267
      %2351 = vmatpush1.bf16.msra.mxu0 %v2266
      %2352 = vmatprep.subr.bf16.mxu0 %v2269
      %2353 = vmatpush1.bf16.msra.mxu0 %v2268
      %2354 = vmatprep.subr.bf16.mxu0 %v2271
      %2355 = vmatpush1.bf16.msra.mxu0 %v2270
      %2356 = vmatprep.subr.bf16.mxu0 %v2273
      %2357 = vmatpush1.bf16.msra.mxu0 %v2272
      %2358 = vmatprep.subr.bf16.mxu0 %v2275
      %2359 = vmatpush1.bf16.msra.mxu0 %v2274
      %2360 = vmatprep.subr.bf16.mxu0 %v2277
      %2361 = vmatpush1.bf16.msra.mxu0 %v2276
      %2362 = vmatprep.subr.bf16.mxu0 %v2279
      %2363 = vmatpush1.bf16.msra.mxu0 %v2278
      %2364 = vmatprep.subr.bf16.mxu0 %v2281
      %2365 = vmatpush1.bf16.msra.mxu0 %v2280
      %2366 = vmatprep.mubr.bf16.mxu0 %v869
      %2367 = vmatmul.mubr.bf16.gmra.mrb[0].mxu0 %v868
      %v2368 = vpop.f32.mrb[0].mxu0
      %v2369 = vadd.f32 %v2086, %v2368
      %v2370 = vpop.f32.mrb[0].mxu0
      %v2371 = vadd.f32 %v2088, %v2370
      %v2372 = vpop.f32.mrb[0].mxu0
      %v2373 = vadd.f32 %v2090, %v2372
      %v2374 = vpop.f32.mrb[0].mxu0
      %v2375 = vadd.f32 %v2092, %v2374
      %2376 = vmatprep.mubr.bf16.mxu0 %v872
      %2377 = vmatmul.mubr.bf16.gmra.mrb[0].mxu0 %v871
      %v2378 = vpop.f32.mrb[0].mxu0
      %v2379 = vadd.f32 %v2096, %v2378
      %v2380 = vpop.f32.mrb[0].mxu0
      %v2381 = vadd.f32 %v2098, %v2380
      %v2382 = vpop.f32.mrb[0].mxu0
      %v2383 = vadd.f32 %v2100, %v2382
      %v2384 = vpop.f32.mrb[0].mxu0
      %v2385 = vadd.f32 %v2102, %v2384
      %2386 = vmatprep.mubr.bf16.mxu0 %v875
      %2387 = vmatmul.mubr.bf16.gmra.mrb[0].mxu0 %v874
      %v2388 = vpop.f32.mrb[0].mxu0
      %v2389 = vadd.f32 %v2106, %v2388
      %v2390 = vpop.f32.mrb[0].mxu0
      %v2391 = vadd.f32 %v2108, %v2390
      %v2392 = vpop.f32.mrb[0].mxu0
      %v2393 = vadd.f32 %v2110, %v2392
      %v2394 = vpop.f32.mrb[0].mxu0
      %v2395 = vadd.f32 %v2112, %v2394
      %2396 = vmatprep.mubr.bf16.mxu0 %v878
      %2397 = vmatmul.mubr.bf16.gmra.mrb[0].mxu0 %v877
      %v2398 = vpop.f32.mrb[0].mxu0
      %v2399 = vadd.f32 %v2116, %v2398
      %v2400 = vpop.f32.mrb[0].mxu0
      %v2401 = vadd.f32 %v2118, %v2400
      %v2402 = vpop.f32.mrb[0].mxu0
      %v2403 = vadd.f32 %v2120, %v2402
      %v2404 = vpop.f32.mrb[0].mxu0
      %v2405 = vadd.f32 %v2122, %v2404
      %2406 = vdwg.mxu0
      %2407 = vmatprep.subr.bf16.mxu0 %v2283
      %2408 = vmatpush1.bf16.msra.mxu0 %v2282
      %2409 = vmatprep.subr.bf16.mxu0 %v2285
      %2410 = vmatpush1.bf16.msra.mxu0 %v2284
      %2411 = vmatprep.subr.bf16.mxu0 %v2287
      %2412 = vmatpush1.bf16.msra.mxu0 %v2286
      %2413 = vmatprep.subr.bf16.mxu0 %v2289
      %2414 = vmatpush1.bf16.msra.mxu0 %v2288
      %2415 = vmatprep.subr.bf16.mxu0 %v2291
      %2416 = vmatpush1.bf16.msra.mxu0 %v2290
      %2417 = vmatprep.subr.bf16.mxu0 0
      %2418 = vmatpush1.bf16.msra.mxu0 0
      %2419 = vmatprep.subr.bf16.mxu0 0
      %2420 = vmatpush1.bf16.msra.mxu0 0
      %2421 = vmatprep.subr.bf16.mxu0 0
      %2422 = vmatpush1.bf16.msra.mxu0 0
      %2423 = vmatprep.subr.bf16.mxu0 0
      %2424 = vmatpush1.bf16.msra.mxu0 0
      %2425 = vmatprep.subr.bf16.mxu0 0
      %2426 = vmatpush1.bf16.msra.mxu0 0
      %2427 = vmatprep.subr.bf16.mxu0 0
      %2428 = vmatpush1.bf16.msra.mxu0 0
      %2429 = vmatprep.subr.bf16.mxu0 0
      %2430 = vmatpush1.bf16.msra.mxu0 0
      %2431 = vmatprep.subr.bf16.mxu0 0
      %2432 = vmatpush1.bf16.msra.mxu0 0
      %2433 = vmatprep.subr.bf16.mxu0 0
      %2434 = vmatpush1.bf16.msra.mxu0 0
      %2435 = vmatprep.subr.bf16.mxu0 0
      %2436 = vmatpush1.bf16.msra.mxu0 0
      %2437 = vmatprep.subr.bf16.mxu0 0
      %2438 = vmatpush1.bf16.msra.mxu0 0
      %2439 = vmatprep.mubr.bf16.mxu0 0
      %2440 = vmatmul.mubr.bf16.gmra.mrb[0].mxu0 %v1099
      %v2441 = vpop.f32.mrb[0].mxu0
      %v2442 = vadd.f32 %v2369, %v2441
      %v2443 = vpop.f32.mrb[0].mxu0
      %v2444 = vadd.f32 %v2371, %v2443
      %v2445 = vpop.f32.mrb[0].mxu0
      %v2446 = vadd.f32 %v2373, %v2445
      %v2447 = vpop.f32.mrb[0].mxu0
      %v2448 = vadd.f32 %v2375, %v2447
      %2449 = vmatprep.mubr.bf16.mxu0 0
      %2450 = vmatmul.mubr.bf16.gmra.mrb[0].mxu0 %v1102
      %v2451 = vpop.f32.mrb[0].mxu0
      %v2452 = vadd.f32 %v2379, %v2451
      %v2453 = vpop.f32.mrb[0].mxu0
      %v2454 = vadd.f32 %v2381, %v2453
      %v2455 = vpop.f32.mrb[0].mxu0
      %v2456 = vadd.f32 %v2383, %v2455
      %v2457 = vpop.f32.mrb[0].mxu0
      %v2458 = vadd.f32 %v2385, %v2457
      %2459 = vmatprep.mubr.bf16.mxu0 0
      %2460 = vmatmul.mubr.bf16.gmra.mrb[0].mxu0 %v1105
      %v2461 = vpop.f32.mrb[0].mxu0
      %v2462 = vadd.f32 %v2389, %v2461
      %v2463 = vpop.f32.mrb[0].mxu0
      %v2464 = vadd.f32 %v2391, %v2463
      %v2465 = vpop.f32.mrb[0].mxu0
      %v2466 = vadd.f32 %v2393, %v2465
      %v2467 = vpop.f32.mrb[0].mxu0
      %v2468 = vadd.f32 %v2395, %v2467
      %2469 = vmatprep.mubr.bf16.mxu0 0
      %2470 = vmatmul.mubr.bf16.gmra.mrb[0].mxu0 %v1108
      %v2471 = vpop.f32.mrb[0].mxu0
      %v2472 = vadd.f32 %v2399, %v2471
      %v2473 = vpop.f32.mrb[0].mxu0
      %v2474 = vadd.f32 %v2401, %v2473
      %v2475 = vpop.f32.mrb[0].mxu0
      %v2476 = vadd.f32 %v2403, %v2475
      %v2477 = vpop.f32.mrb[0].mxu0
      %v2478 = vadd.f32 %v2405, %v2477
      %2479 = vdwg.mxu0
      %s2480 = scalar_lea.vmem %s238, 1680
      %v2481 = vld [vmem:[%s2480] sm:$0xff]
      %v2482 = vld [vmem:[%s2480 + $0x8] sm:$0xff]
      %v2483 = vld [vmem:[%s2480 + $0x10] sm:$0xff]
      %v2484 = vld [vmem:[%s2480 + $0x18] sm:$0xff]
      %v2485 = vld [vmem:[%s2480 + $0x20] sm:$0xff]
      %v2486 = vld [vmem:[%s2480 + $0x28] sm:$0xff]
      %v2487 = vld [vmem:[%s2480 + $0x30] sm:$0xff]
      %v2488 = vld [vmem:[%s2480 + $0x38] sm:$0xff]
      %v2489 = vld [vmem:[%s2480 + $0x40] sm:$0xff]
      %v2490 = vld [vmem:[%s2480 + $0x48] sm:$0xff]
      %v2491 = vld [vmem:[%s2480 + $0x50] sm:$0xff]
      %v2492 = vld [vmem:[%s2480 + $0x58] sm:$0xff]
      %v2493 = vld [vmem:[%s2480 + $0x60] sm:$0xff]
      %v2494 = vld [vmem:[%s2480 + $0x68] sm:$0xff]
      %v2495 = vld [vmem:[%s2480 + $0x70] sm:$0xff]
      %v2496 = vld [vmem:[%s2480 + $0x78] sm:$0xff]
      %v2497 = vld [vmem:[%s2480 + $0x80] sm:$0xff]
      %v2498 = vld [vmem:[%s2480 + $0x88] sm:$0xff]
      %v2499 = vld [vmem:[%s2480 + $0x90] sm:$0xff]
      %v2500 = vld [vmem:[%s2480 + $0x98] sm:$0xff]
      %v2501 = vld [vmem:[%s2480 + $0xa0] sm:$0xff]
      %v2502 = vld [vmem:[%s2480 + $0xa8] sm:$0xff]
      %v2503 = vld [vmem:[%s2480 + $0xb0] sm:$0xff]
      %v2504 = vld [vmem:[%s2480 + $0xb8] sm:$0xff]
      %v2505 = vld [vmem:[%s2480 + $0xc0] sm:$0xff]
      %v2506 = vld [vmem:[%s2480 + $0xc8] sm:$0xff]
      %v2507 = vld [vmem:[%s2480 + $0xd0] sm:$0xff]
      %v2508 = vld [vmem:[%s2480 + $0xd8] sm:$0xff]
      %v2509 = vld [vmem:[%s2480 + $0xe0] sm:$0xff]
      %v2510 = vld [vmem:[%s2480 + $0xe8] sm:$0xff]
      %v2511 = vld [vmem:[%s2480 + $0xf0] sm:$0xff]
      %v2512 = vld [vmem:[%s2480 + $0xf8] sm:$0xff]
      %v2513 = vld [vmem:[%s2480 + $0x100] sm:$0xff]
      %v2514 = vld [vmem:[%s2480 + $0x108] sm:$0xff]
      %v2515 = vld [vmem:[%s2480 + $0x110] sm:$0xff]
      %v2516 = vld [vmem:[%s2480 + $0x118] sm:$0xff]
      %v2517 = vld [vmem:[%s2480 + $0x120] sm:$0xff]
      %v2518 = vld [vmem:[%s2480 + $0x128] sm:$0xff]
      %v2519 = vld [vmem:[%s2480 + $0x130] sm:$0xff]
      %v2520 = vld [vmem:[%s2480 + $0x138] sm:$0xff]
      %v2521 = vld [vmem:[%s2480 + $0x140] sm:$0xff]
      %v2522 = vld [vmem:[%s2480 + $0x148] sm:$0xff]
      %v2565 = vunpack.c.l.b16 %v2481
      %v2566 = vunpack.c.h.b16 %v2481
      %v2567 = vunpack.c.l.b16 %v2482
      %v2568 = vunpack.c.h.b16 %v2482
      %v2569 = vunpack.c.l.b16 %v2483
      %v2570 = vunpack.c.h.b16 %v2483
      %v2571 = vunpack.c.l.b16 %v2484
      %v2572 = vunpack.c.h.b16 %v2484
      %v2573 = vunpack.c.l.b16 %v2485
      %v2574 = vunpack.c.h.b16 %v2485
      %v2575 = vunpack.c.l.b16 %v2486
      %v2576 = vunpack.c.h.b16 %v2486
      %v2577 = vunpack.c.l.b16 %v2487
      %v2578 = vunpack.c.h.b16 %v2487
      %v2579 = vunpack.c.l.b16 %v2488
      %v2580 = vunpack.c.h.b16 %v2488
      %v2581 = vunpack.c.l.b16 %v2489
      %v2582 = vunpack.c.h.b16 %v2489
      %v2583 = vunpack.c.l.b16 %v2490
      %v2584 = vunpack.c.h.b16 %v2490
      %v2585 = vunpack.c.l.b16 %v2491
      %v2586 = vunpack.c.h.b16 %v2491
      %v2587 = vunpack.c.l.b16 %v2492
      %v2588 = vunpack.c.h.b16 %v2492
      %v2589 = vunpack.c.l.b16 %v2493
      %v2590 = vunpack.c.h.b16 %v2493
      %v2591 = vunpack.c.l.b16 %v2494
      %v2592 = vunpack.c.h.b16 %v2494
      %v2593 = vunpack.c.l.b16 %v2495
      %v2594 = vunpack.c.h.b16 %v2495
      %v2595 = vunpack.c.l.b16 %v2496
      %v2596 = vunpack.c.h.b16 %v2496
      %v2597 = vunpack.c.l.b16 %v2497
      %v2598 = vunpack.c.h.b16 %v2497
      %v2599 = vunpack.c.l.b16 %v2498
      %v2600 = vunpack.c.h.b16 %v2498
      %v2601 = vunpack.c.l.b16 %v2499
      %v2602 = vunpack.c.h.b16 %v2499
      %v2603 = vunpack.c.l.b16 %v2500
      %v2604 = vunpack.c.h.b16 %v2500
      %v2605 = vunpack.c.l.b16 %v2501
      %v2606 = vunpack.c.h.b16 %v2501
      %v2607 = vunpack.c.l.b16 %v2502
      %v2608 = vunpack.c.h.b16 %v2502
      %v2609 = vunpack.c.l.b16 %v2503
      %v2610 = vunpack.c.h.b16 %v2503
      %v2611 = vunpack.c.l.b16 %v2504
      %v2612 = vunpack.c.h.b16 %v2504
      %v2613 = vunpack.c.l.b16 %v2505
      %v2614 = vunpack.c.h.b16 %v2505
      %v2615 = vunpack.c.l.b16 %v2506
      %v2616 = vunpack.c.h.b16 %v2506
      %v2617 = vunpack.c.l.b16 %v2507
      %v2618 = vunpack.c.h.b16 %v2507
      %v2619 = vunpack.c.l.b16 %v2508
      %v2620 = vunpack.c.h.b16 %v2508
      %v2621 = vunpack.c.l.b16 %v2509
      %v2622 = vunpack.c.h.b16 %v2509
      %v2623 = vunpack.c.l.b16 %v2510
      %v2624 = vunpack.c.h.b16 %v2510
      %v2625 = vunpack.c.l.b16 %v2511
      %v2626 = vunpack.c.h.b16 %v2511
      %v2627 = vunpack.c.l.b16 %v2512
      %v2628 = vunpack.c.h.b16 %v2512
      %v2629 = vunpack.c.l.b16 %v2513
      %v2630 = vunpack.c.h.b16 %v2513
      %v2631 = vunpack.c.l.b16 %v2514
      %v2632 = vunpack.c.h.b16 %v2514
      %v2633 = vunpack.c.l.b16 %v2515
      %v2634 = vunpack.c.h.b16 %v2515
      %v2635 = vunpack.c.l.b16 %v2516
      %v2636 = vunpack.c.h.b16 %v2516
      %v2637 = vunpack.c.l.b16 %v2517
      %v2638 = vunpack.c.h.b16 %v2517
      %v2639 = vunpack.c.l.b16 %v2518
      %v2640 = vunpack.c.h.b16 %v2518
      %v2641 = vunpack.c.l.b16 %v2519
      %v2642 = vunpack.c.h.b16 %v2519
      %v2643 = vunpack.c.l.b16 %v2520
      %v2644 = vunpack.c.h.b16 %v2520
      %v2645 = vunpack.c.l.b16 %v2521
      %v2646 = vunpack.c.h.b16 %v2521
      %v2647 = vunpack.c.l.b16 %v2522
      %v2648 = vunpack.c.h.b16 %v2522
      %v2649 = vpack.c.b16 %v2567, %v2565
      %v2650 = vpack.c.b16 %v2568, %v2566
      %v2651 = vpack.c.b16 %v2571, %v2569
      %v2652 = vpack.c.b16 %v2572, %v2570
      %v2653 = vpack.c.b16 %v2575, %v2573
      %v2654 = vpack.c.b16 %v2576, %v2574
      %v2655 = vpack.c.b16 %v2579, %v2577
      %v2656 = vpack.c.b16 %v2580, %v2578
      %v2657 = vpack.c.b16 %v2583, %v2581
      %v2658 = vpack.c.b16 %v2584, %v2582
      %v2659 = vpack.c.b16 %v2587, %v2585
      %v2660 = vpack.c.b16 %v2588, %v2586
      %v2661 = vpack.c.b16 %v2591, %v2589
      %v2662 = vpack.c.b16 %v2592, %v2590
      %v2663 = vpack.c.b16 %v2595, %v2593
      %v2664 = vpack.c.b16 %v2596, %v2594
      %v2665 = vpack.c.b16 %v2599, %v2597
      %v2666 = vpack.c.b16 %v2600, %v2598
      %v2667 = vpack.c.b16 %v2603, %v2601
      %v2668 = vpack.c.b16 %v2604, %v2602
      %v2669 = vpack.c.b16 %v2607, %v2605
      %v2670 = vpack.c.b16 %v2608, %v2606
      %v2671 = vpack.c.b16 %v2611, %v2609
      %v2672 = vpack.c.b16 %v2612, %v2610
      %v2673 = vpack.c.b16 %v2615, %v2613
      %v2674 = vpack.c.b16 %v2616, %v2614
      %v2675 = vpack.c.b16 %v2619, %v2617
      %v2676 = vpack.c.b16 %v2620, %v2618
      %v2677 = vpack.c.b16 %v2623, %v2621
      %v2678 = vpack.c.b16 %v2624, %v2622
      %v2679 = vpack.c.b16 %v2627, %v2625
      %v2680 = vpack.c.b16 %v2628, %v2626
      %v2681 = vpack.c.b16 %v2631, %v2629
      %v2682 = vpack.c.b16 %v2632, %v2630
      %v2683 = vpack.c.b16 %v2635, %v2633
      %v2684 = vpack.c.b16 %v2636, %v2634
      %v2685 = vpack.c.b16 %v2639, %v2637
      %v2686 = vpack.c.b16 %v2640, %v2638
      %v2687 = vpack.c.b16 %v2643, %v2641
      %v2688 = vpack.c.b16 %v2644, %v2642
      %v2689 = vpack.c.b16 %v2647, %v2645
      %v2690 = vpack.c.b16 %v2648, %v2646
      %2733 = vmatprep.subr.bf16.mxu0 %v2650
      %2734 = vmatpush1.bf16.msra.mxu0 %v2649
      %2735 = vmatprep.subr.bf16.mxu0 %v2652
      %2736 = vmatpush1.bf16.msra.mxu0 %v2651
      %2737 = vmatprep.subr.bf16.mxu0 %v2654
      %2738 = vmatpush1.bf16.msra.mxu0 %v2653
      %2739 = vmatprep.subr.bf16.mxu0 %v2656
      %2740 = vmatpush1.bf16.msra.mxu0 %v2655
      %2741 = vmatprep.subr.bf16.mxu0 %v2658
      %2742 = vmatpush1.bf16.msra.mxu0 %v2657
      %2743 = vmatprep.subr.bf16.mxu0 %v2660
      %2744 = vmatpush1.bf16.msra.mxu0 %v2659
      %2745 = vmatprep.subr.bf16.mxu0 %v2662
      %2746 = vmatpush1.bf16.msra.mxu0 %v2661
      %2747 = vmatprep.subr.bf16.mxu0 %v2664
      %2748 = vmatpush1.bf16.msra.mxu0 %v2663
      %2749 = vmatprep.subr.bf16.mxu0 %v2666
      %2750 = vmatpush1.bf16.msra.mxu0 %v2665
      %2751 = vmatprep.subr.bf16.mxu0 %v2668
      %2752 = vmatpush1.bf16.msra.mxu0 %v2667
      %2753 = vmatprep.subr.bf16.mxu0 %v2670
      %2754 = vmatpush1.bf16.msra.mxu0 %v2669
      %2755 = vmatprep.subr.bf16.mxu0 %v2672
      %2756 = vmatpush1.bf16.msra.mxu0 %v2671
      %2757 = vmatprep.subr.bf16.mxu0 %v2674
      %2758 = vmatpush1.bf16.msra.mxu0 %v2673
      %2759 = vmatprep.subr.bf16.mxu0 %v2676
      %2760 = vmatpush1.bf16.msra.mxu0 %v2675
      %2761 = vmatprep.subr.bf16.mxu0 %v2678
      %2762 = vmatpush1.bf16.msra.mxu0 %v2677
      %2763 = vmatprep.subr.bf16.mxu0 %v2680
      %2764 = vmatpush1.bf16.msra.mxu0 %v2679
      %2765 = vmatprep.mubr.bf16.mxu0 %v345
      %2766 = vmatmul.mubr.bf16.gmra.mrb[0].mxu0 %v342
      %v2767 = vpop.f32.mrb[0].mxu0
      %v2768 = vadd.f32 0.0, %v2767
      %v2769 = vpop.f32.mrb[0].mxu0
      %v2770 = vadd.f32 0.0, %v2769
      %v2771 = vpop.f32.mrb[0].mxu0
      %v2772 = vadd.f32 0.0, %v2771
      %v2773 = vpop.f32.mrb[0].mxu0
      %v2774 = vadd.f32 0.0, %v2773
      %2775 = vmatprep.mubr.bf16.mxu0 %v325
      %2776 = vmatmul.mubr.bf16.gmra.mrb[0].mxu0 %v324
      %v2777 = vpop.f32.mrb[0].mxu0
      %v2778 = vadd.f32 0.0, %v2777
      %v2779 = vpop.f32.mrb[0].mxu0
      %v2780 = vadd.f32 0.0, %v2779
      %v2781 = vpop.f32.mrb[0].mxu0
      %v2782 = vadd.f32 0.0, %v2781
      %v2783 = vpop.f32.mrb[0].mxu0
      %v2784 = vadd.f32 0.0, %v2783
      %2785 = vmatprep.mubr.bf16.mxu0 %v328
      %2786 = vmatmul.mubr.bf16.gmra.mrb[0].mxu0 %v327
      %v2787 = vpop.f32.mrb[0].mxu0
      %v2788 = vadd.f32 0.0, %v2787
      %v2789 = vpop.f32.mrb[0].mxu0
      %v2790 = vadd.f32 0.0, %v2789
      %v2791 = vpop.f32.mrb[0].mxu0
      %v2792 = vadd.f32 0.0, %v2791
      %v2793 = vpop.f32.mrb[0].mxu0
      %v2794 = vadd.f32 0.0, %v2793
      %2795 = vmatprep.mubr.bf16.mxu0 %v331
      %2796 = vmatmul.mubr.bf16.gmra.mrb[0].mxu0 %v330
      %v2797 = vpop.f32.mrb[0].mxu0
      %v2798 = vadd.f32 0.0, %v2797
      %v2799 = vpop.f32.mrb[0].mxu0
      %v2800 = vadd.f32 0.0, %v2799
      %v2801 = vpop.f32.mrb[0].mxu0
      %v2802 = vadd.f32 0.0, %v2801
      %v2803 = vpop.f32.mrb[0].mxu0
      %v2804 = vadd.f32 0.0, %v2803
      %2805 = vdwg.mxu0
      %2806 = vmatprep.subr.bf16.mxu0 %v2682
      %2807 = vmatpush1.bf16.msra.mxu0 %v2681
      %2808 = vmatprep.subr.bf16.mxu0 %v2684
      %2809 = vmatpush1.bf16.msra.mxu0 %v2683
      %2810 = vmatprep.subr.bf16.mxu0 %v2686
      %2811 = vmatpush1.bf16.msra.mxu0 %v2685
      %2812 = vmatprep.subr.bf16.mxu0 %v2688
      %2813 = vmatpush1.bf16.msra.mxu0 %v2687
      %2814 = vmatprep.subr.bf16.mxu0 %v2690
      %2815 = vmatpush1.bf16.msra.mxu0 %v2689
      %2816 = vmatprep.subr.bf16.mxu0 0
      %2817 = vmatpush1.bf16.msra.mxu0 0
      %2818 = vmatprep.subr.bf16.mxu0 0
      %2819 = vmatpush1.bf16.msra.mxu0 0
      %2820 = vmatprep.subr.bf16.mxu0 0
      %2821 = vmatpush1.bf16.msra.mxu0 0
      %2822 = vmatprep.subr.bf16.mxu0 0
      %2823 = vmatpush1.bf16.msra.mxu0 0
      %2824 = vmatprep.subr.bf16.mxu0 0
      %2825 = vmatpush1.bf16.msra.mxu0 0
      %2826 = vmatprep.subr.bf16.mxu0 0
      %2827 = vmatpush1.bf16.msra.mxu0 0
      %2828 = vmatprep.subr.bf16.mxu0 0
      %2829 = vmatpush1.bf16.msra.mxu0 0
      %2830 = vmatprep.subr.bf16.mxu0 0
      %2831 = vmatpush1.bf16.msra.mxu0 0
      %2832 = vmatprep.subr.bf16.mxu0 0
      %2833 = vmatpush1.bf16.msra.mxu0 0
      %2834 = vmatprep.subr.bf16.mxu0 0
      %2835 = vmatpush1.bf16.msra.mxu0 0
      %2836 = vmatprep.subr.bf16.mxu0 0
      %2837 = vmatpush1.bf16.msra.mxu0 0
      %2838 = vmatprep.mubr.bf16.mxu0 0
      %2839 = vmatmul.mubr.bf16.gmra.mrb[0].mxu0 %v1509
      %v2840 = vpop.f32.mrb[0].mxu0
      %v2841 = vadd.f32 %v2768, %v2840
      %v2842 = vpop.f32.mrb[0].mxu0
      %v2843 = vadd.f32 %v2770, %v2842
      %v2844 = vpop.f32.mrb[0].mxu0
      %v2845 = vadd.f32 %v2772, %v2844
      %v2846 = vpop.f32.mrb[0].mxu0
      %v2847 = vadd.f32 %v2774, %v2846
      %2848 = vmatprep.mubr.bf16.mxu0 0
      %2849 = vmatmul.mubr.bf16.gmra.mrb[0].mxu0 %v1512
      %v2850 = vpop.f32.mrb[0].mxu0
      %v2851 = vadd.f32 %v2778, %v2850
      %v2852 = vpop.f32.mrb[0].mxu0
      %v2853 = vadd.f32 %v2780, %v2852
      %v2854 = vpop.f32.mrb[0].mxu0
      %v2855 = vadd.f32 %v2782, %v2854
      %v2856 = vpop.f32.mrb[0].mxu0
      %v2857 = vadd.f32 %v2784, %v2856
      %2858 = vmatprep.mubr.bf16.mxu0 0
      %2859 = vmatmul.mubr.bf16.gmra.mrb[0].mxu0 %v1515
      %v2860 = vpop.f32.mrb[0].mxu0
      %v2861 = vadd.f32 %v2788, %v2860
      %v2862 = vpop.f32.mrb[0].mxu0
      %v2863 = vadd.f32 %v2790, %v2862
      %v2864 = vpop.f32.mrb[0].mxu0
      %v2865 = vadd.f32 %v2792, %v2864
      %v2866 = vpop.f32.mrb[0].mxu0
      %v2867 = vadd.f32 %v2794, %v2866
      %2868 = vmatprep.mubr.bf16.mxu0 0
      %2869 = vmatmul.mubr.bf16.gmra.mrb[0].mxu0 %v1518
      %v2870 = vpop.f32.mrb[0].mxu0
      %v2871 = vadd.f32 %v2798, %v2870
      %v2872 = vpop.f32.mrb[0].mxu0
      %v2873 = vadd.f32 %v2800, %v2872
      %v2874 = vpop.f32.mrb[0].mxu0
      %v2875 = vadd.f32 %v2802, %v2874
      %v2876 = vpop.f32.mrb[0].mxu0
      %v2877 = vadd.f32 %v2804, %v2876
      %2878 = vdwg.mxu0
      %v2879 = vadd.f32 %v2442, %v2841
      %v2880 = vadd.f32 %v2444, %v2843
      %v2881 = vadd.f32 %v2446, %v2845
      %v2882 = vadd.f32 %v2448, %v2847
      %v2883 = vadd.f32 %v2452, %v2851
      %v2884 = vadd.f32 %v2454, %v2853
      %v2885 = vadd.f32 %v2456, %v2855
      %v2886 = vadd.f32 %v2458, %v2857
      %v2887 = vadd.f32 %v2462, %v2861
      %v2888 = vadd.f32 %v2464, %v2863
      %v2889 = vadd.f32 %v2466, %v2865
      %v2890 = vadd.f32 %v2468, %v2867
      %v2891 = vadd.f32 %v2472, %v2871
      %v2892 = vadd.f32 %v2474, %v2873
      %v2893 = vadd.f32 %v2476, %v2875
      %v2894 = vadd.f32 %v2478, %v2877
      %vm2911 = vcmask 1040384
      %v2912 = vrot.slane %v2879, 7
      %v2913 = vrot.slane %v2880, 7
      %v2914 = vrot.slane %v2881, 7
      %v2915 = vsel %vm2911, %v2912, %v2914
      %v2916 = vrot.slane %v2882, 7
      %v2917 = vsel %vm2911, %v2913, %v2916
      %v2918 = vrot.slane %v2883, 7
      %v2919 = vsel %vm2911, %v2914, %v2918
      %v2920 = vrot.slane %v2884, 7
      %v2921 = vsel %vm2911, %v2916, %v2920
      %v2922 = vrot.slane %v2885, 7
      %v2923 = vsel %vm2911, %v2918, %v2922
      %v2924 = vrot.slane %v2886, 7
      %v2925 = vsel %vm2911, %v2920, %v2924
      %v2926 = vrot.slane %v2887, 7
      %v2927 = vsel %vm2911, %v2922, %v2926
      %v2928 = vrot.slane %v2888, 7
      %v2929 = vsel %vm2911, %v2924, %v2928
      %v2930 = vrot.slane %v2889, 7
      %v2931 = vsel %vm2911, %v2926, %v2930
      %v2932 = vrot.slane %v2890, 7
      %v2933 = vsel %vm2911, %v2928, %v2932
      %v2934 = vrot.slane %v2891, 7
      %v2935 = vsel %vm2911, %v2930, %v2934
      %v2936 = vrot.slane %v2892, 7
      %v2937 = vsel %vm2911, %v2932, %v2936
      %v2938 = vrot.slane %v2893, 7
      %v2939 = vsel %vm2911, %v2934, %v2938
      %v2940 = vrot.slane %v2894, 7
      %v2941 = vsel %vm2911, %v2936, %v2940
      %v2958 = vsel %vm2911, 0.0, %v2912
      %v2959 = vsel %vm2911, 0.0, %v2913
      %v2960 = vlaneseq
      %v2961 = vshrl.u32 %v2960, 7
      %v2962 = vadd.s32 %v2961, 8
      %v2963 = vadd.s32 %v2961, 16
      %v2964 = vadd.s32 %v2961, 24
      %v2965 = vadd.s32 %v2961, 32
      %v2966 = vadd.s32 %v2961, 40
      %v2967 = vadd.s32 %v2961, 48
      %v2968 = vadd.s32 %v2961, 56
      %vm2969 = vcmp.lt.s32.totalorder %v2961, 0
      %v2970 = vsub.s32 0, %v2961
      %v2971 = vsel %vm2969, %v2970, %v2961
      %v2972 = vshrl.u32 %v2971, 3
      %v2973 = vand.u32 %v2971, 7
      %v2974 = vsub.s32 0, %v2973
      %v2975 = vsel %vm2969, %v2974, %v2973
      %vm2976 = vcmp.lt.s32.totalorder %v2962, 0
      %v2977 = vsub.s32 0, %v2962
      %v2978 = vsel %vm2976, %v2977, %v2962
      %v2979 = vshrl.u32 %v2978, 3
      %v2980 = vand.u32 %v2978, 7
      %v2981 = vsub.s32 0, %v2980
      %v2982 = vsel %vm2976, %v2981, %v2980
      %vm2983 = vcmp.lt.s32.totalorder %v2963, 0
      %v2984 = vsub.s32 0, %v2963
      %v2985 = vsel %vm2983, %v2984, %v2963
      %v2986 = vshrl.u32 %v2985, 3
      %v2987 = vand.u32 %v2985, 7
      %v2988 = vsub.s32 0, %v2987
      %v2989 = vsel %vm2983, %v2988, %v2987
      %vm2990 = vcmp.lt.s32.totalorder %v2964, 0
      %v2991 = vsub.s32 0, %v2964
      %v2992 = vsel %vm2990, %v2991, %v2964
      %v2993 = vshrl.u32 %v2992, 3
      %v2994 = vand.u32 %v2992, 7
      %v2995 = vsub.s32 0, %v2994
      %v2996 = vsel %vm2990, %v2995, %v2994
      %vm2997 = vcmp.lt.s32.totalorder %v2965, 0
      %v2998 = vsub.s32 0, %v2965
      %v2999 = vsel %vm2997, %v2998, %v2965
      %v3000 = vshrl.u32 %v2999, 3
      %v3001 = vand.u32 %v2999, 7
      %v3002 = vsub.s32 0, %v3001
      %v3003 = vsel %vm2997, %v3002, %v3001
      %vm3004 = vcmp.lt.s32.totalorder %v2966, 0
      %v3005 = vsub.s32 0, %v2966
      %v3006 = vsel %vm3004, %v3005, %v2966
      %v3007 = vshrl.u32 %v3006, 3
      %v3008 = vand.u32 %v3006, 7
      %v3009 = vsub.s32 0, %v3008
      %v3010 = vsel %vm3004, %v3009, %v3008
      %vm3011 = vcmp.lt.s32.totalorder %v2967, 0
      %v3012 = vsub.s32 0, %v2967
      %v3013 = vsel %vm3011, %v3012, %v2967
      %v3014 = vshrl.u32 %v3013, 3
      %v3015 = vand.u32 %v3013, 7
      %v3016 = vsub.s32 0, %v3015
      %v3017 = vsel %vm3011, %v3016, %v3015
      %vm3018 = vcmp.lt.s32.totalorder %v2968, 0
      %v3019 = vsub.s32 0, %v2968
      %v3020 = vsel %vm3018, %v3019, %v2968
      %v3021 = vshrl.u32 %v3020, 3
      %v3022 = vand.u32 %v3020, 7
      %v3023 = vsub.s32 0, %v3022
      %v3024 = vsel %vm3018, %v3023, %v3022
      %vm3025 = vcmp.ne.s32.totalorder %v2975, 0
      %vm3026 = vcmp.ne.s32.totalorder %v2982, 0
      %vm3027 = vcmp.ne.s32.totalorder %v2989, 0
      %vm3028 = vcmp.ne.s32.totalorder %v2996, 0
      %vm3029 = vcmp.ne.s32.totalorder %v3003, 0
      %vm3030 = vcmp.ne.s32.totalorder %v3010, 0
      %vm3031 = vcmp.ne.s32.totalorder %v3017, 0
      %vm3032 = vcmp.ne.s32.totalorder %v3024, 0
      %vm3033 = vcmp.lt.s32.totalorder %v2975, 0
      %vm3034 = vcmp.lt.s32.totalorder %v2982, 0
      %vm3035 = vcmp.lt.s32.totalorder %v2989, 0
      %vm3036 = vcmp.lt.s32.totalorder %v2996, 0
      %vm3037 = vcmp.lt.s32.totalorder %v3003, 0
      %vm3038 = vcmp.lt.s32.totalorder %v3010, 0
      %vm3039 = vcmp.lt.s32.totalorder %v3017, 0
      %vm3040 = vcmp.lt.s32.totalorder %v3024, 0
      %vm3041 = vmand %vm3033, %vm3025
      %vm3042 = vmand %vm3034, %vm3026
      %vm3043 = vmand %vm3035, %vm3027
      %vm3044 = vmand %vm3036, %vm3028
      %vm3045 = vmand %vm3037, %vm3029
      %vm3046 = vmand %vm3038, %vm3030
      %vm3047 = vmand %vm3039, %vm3031
      %vm3048 = vmand %vm3040, %vm3032
      %v3049 = vadd.s32 %v2975, 8
      %v3050 = vadd.s32 %v2982, 8
      %v3051 = vadd.s32 %v2989, 8
      %v3052 = vadd.s32 %v2996, 8
      %v3053 = vadd.s32 %v3003, 8
      %v3054 = vadd.s32 %v3010, 8
      %v3055 = vadd.s32 %v3017, 8
      %v3056 = vadd.s32 %v3024, 8
      %v3057 = vsel %vm3041, %v3049, %v2975
      %v3058 = vsel %vm3042, %v3050, %v2982
      %v3059 = vsel %vm3043, %v3051, %v2989
      %v3060 = vsel %vm3044, %v3052, %v2996
      %v3061 = vsel %vm3045, %v3053, %v3003
      %v3062 = vsel %vm3046, %v3054, %v3010
      %v3063 = vsel %vm3047, %v3055, %v3017
      %v3064 = vsel %vm3048, %v3056, %v3024
      %vm3065 = vcmp.eq.s32.totalorder %v3057, 0
      %vm3066 = vcmp.eq.s32.totalorder %v3058, 0
      %vm3067 = vcmp.eq.s32.totalorder %v3059, 0
      %vm3068 = vcmp.eq.s32.totalorder %v3060, 0
      %vm3069 = vcmp.eq.s32.totalorder %v3061, 0
      %vm3070 = vcmp.eq.s32.totalorder %v3062, 0
      %vm3071 = vcmp.eq.s32.totalorder %v3063, 0
      %vm3072 = vcmp.eq.s32.totalorder %v3064, 0
      %v3073 = vsel %vm3065, 0.0, %v2958
      %v3074 = vsel %vm3065, 0.0, %v2959
      %v3075 = vsel %vm3066, 0.0, %v2915
      %v3076 = vsel %vm3066, 0.0, %v2917
      %v3077 = vsel %vm3067, 0.0, %v2919
      %v3078 = vsel %vm3067, 0.0, %v2921
      %v3079 = vsel %vm3068, 0.0, %v2923
      %v3080 = vsel %vm3068, 0.0, %v2925
      %v3081 = vsel %vm3069, 0.0, %v2927
      %v3082 = vsel %vm3069, 0.0, %v2929
      %v3083 = vsel %vm3070, 0.0, %v2931
      %v3084 = vsel %vm3070, 0.0, %v2933
      %v3085 = vsel %vm3071, 0.0, %v2935
      %v3086 = vsel %vm3071, 0.0, %v2937
      %v3087 = vsel %vm3072, 0.0, %v2939
      %v3088 = vsel %vm3072, 0.0, %v2941
      %v3089 = vadd.f32 %v1666, %v3073
      %v3090 = vadd.f32 %v1667, %v3074
      %v3091 = vadd.f32 %v1668, %v3075
      %v3092 = vadd.f32 %v1669, %v3076
      %v3093 = vadd.f32 %v1670, %v3077
      %v3094 = vadd.f32 %v1671, %v3078
      %v3095 = vadd.f32 %v1672, %v3079
      %v3096 = vadd.f32 %v1673, %v3080
      %v3097 = vadd.f32 %v1674, %v3081
      %v3098 = vadd.f32 %v1675, %v3082
      %v3099 = vadd.f32 %v1676, %v3083
      %v3100 = vadd.f32 %v1677, %v3084
      %v3101 = vadd.f32 %v1678, %v3085
      %v3102 = vadd.f32 %v1679, %v3086
      %v3103 = vadd.f32 %v1680, %v3087
      %v3104 = vadd.f32 %v1681, %v3088
      %v3105 = vadd.f32 %v3089, %v3091
      %v3106 = vadd.f32 %v3105, %v3093
      %v3107 = vadd.f32 %v3106, %v3095
      %v3108 = vadd.f32 %v3107, %v3097
      %v3109 = vadd.f32 %v3108, %v3099
      %v3110 = vadd.f32 %v3109, %v3101
      %v3111 = vadd.f32 %v3110, %v3103
      %v3112 = vrot.slane %v3111, 4
      %v3113 = vadd.f32 %v3111, %v3112
      %v3114 = vrot.slane %v3113, 2
      %v3115 = vadd.f32 %v3113, %v3114
      %v3116 = vrot.slane %v3115, 1
      %v3117 = vadd.f32 %v3115, %v3116
      %vm3118 = vcmask 326656
      %v3119 = vsel %vm3118, %v3090, 0.0
      %v3120 = vsel %vm3118, %v3092, 0.0
      %v3121 = vadd.f32 %v3119, %v3120
      %v3122 = vsel %vm3118, %v3094, 0.0
      %v3123 = vadd.f32 %v3121, %v3122
      %v3124 = vsel %vm3118, %v3096, 0.0
      %v3125 = vadd.f32 %v3123, %v3124
      %v3126 = vsel %vm3118, %v3098, 0.0
      %v3127 = vadd.f32 %v3125, %v3126
      %v3128 = vsel %vm3118, %v3100, 0.0
      %v3129 = vadd.f32 %v3127, %v3128
      %v3130 = vsel %vm3118, %v3102, 0.0
      %v3131 = vadd.f32 %v3129, %v3130
      %v3132 = vsel %vm3118, %v3104, 0.0
      %v3133 = vadd.f32 %v3131, %v3132
      %v3134 = vrot.slane %v3133, 4
      %v3135 = vadd.f32 %v3133, %v3134
      %v3136 = vrot.slane %v3135, 2
      %v3137 = vadd.f32 %v3135, %v3136
      %v3138 = vrot.slane %v3137, 1
      %v3139 = vadd.f32 %v3137, %v3138
      %v3140 = vrcp.pop 64.0
      %v3141 = vmul.f32 %v3117, %v3140
      %v3142 = vmul.f32 %v3139, %v3140
      %v3143 = vmul.f32 %v3089, %v3089
      %v3144 = vmul.f32 %v3090, %v3090
      %v3145 = vmul.f32 %v3091, %v3091
      %v3146 = vmul.f32 %v3092, %v3092
      %v3147 = vmul.f32 %v3093, %v3093
      %v3148 = vmul.f32 %v3094, %v3094
      %v3149 = vmul.f32 %v3095, %v3095
      %v3150 = vmul.f32 %v3096, %v3096
      %v3151 = vmul.f32 %v3097, %v3097
      %v3152 = vmul.f32 %v3098, %v3098
      %v3153 = vmul.f32 %v3099, %v3099
      %v3154 = vmul.f32 %v3100, %v3100
      %v3155 = vmul.f32 %v3101, %v3101
      %v3156 = vmul.f32 %v3102, %v3102
      %v3157 = vmul.f32 %v3103, %v3103
      %v3158 = vmul.f32 %v3104, %v3104
      %v3159 = vadd.f32 %v3143, %v3145
      %v3160 = vadd.f32 %v3159, %v3147
      %v3161 = vadd.f32 %v3160, %v3149
      %v3162 = vadd.f32 %v3161, %v3151
      %v3163 = vadd.f32 %v3162, %v3153
      %v3164 = vadd.f32 %v3163, %v3155
      %v3165 = vadd.f32 %v3164, %v3157
      %v3166 = vrot.slane %v3165, 4
      %v3167 = vadd.f32 %v3165, %v3166
      %v3168 = vrot.slane %v3167, 2
      %v3169 = vadd.f32 %v3167, %v3168
      %v3170 = vrot.slane %v3169, 1
      %v3171 = vadd.f32 %v3169, %v3170
      %v3172 = vsel %vm3118, %v3144, 0.0
      %v3173 = vsel %vm3118, %v3146, 0.0
      %v3174 = vadd.f32 %v3172, %v3173
      %v3175 = vsel %vm3118, %v3148, 0.0
      %v3176 = vadd.f32 %v3174, %v3175
      %v3177 = vsel %vm3118, %v3150, 0.0
      %v3178 = vadd.f32 %v3176, %v3177
      %v3179 = vsel %vm3118, %v3152, 0.0
      %v3180 = vadd.f32 %v3178, %v3179
      %v3181 = vsel %vm3118, %v3154, 0.0
      %v3182 = vadd.f32 %v3180, %v3181
      %v3183 = vsel %vm3118, %v3156, 0.0
      %v3184 = vadd.f32 %v3182, %v3183
      %v3185 = vsel %vm3118, %v3158, 0.0
      %v3186 = vadd.f32 %v3184, %v3185
      %v3187 = vrot.slane %v3186, 4
      %v3188 = vadd.f32 %v3186, %v3187
      %v3189 = vrot.slane %v3188, 2
      %v3190 = vadd.f32 %v3188, %v3189
      %v3191 = vrot.slane %v3190, 1
      %v3192 = vadd.f32 %v3190, %v3191
      %v3193 = vmul.f32 %v3171, %v3140
      %v3194 = vmul.f32 %v3192, %v3140
      %v3195 = vmul.f32 %v3141, %v3141
      %v3196 = vmul.f32 %v3142, %v3142
      %v3197 = vsub.f32 %v3193, %v3195
      %v3198 = vsub.f32 %v3194, %v3196
      %v3199 = vadd.f32 %v3197, 1e-05
      %v3200 = vadd.f32 %v3198, 1e-05
      %v3201 = vrsqrt.pop %v3199
      %v3202 = vrsqrt.pop %v3200
      %v3203 = vsub.f32 %v3089, %v3141
      %v3204 = vsub.f32 %v3090, %v3142
      %v3205 = vsub.f32 %v3091, %v3141
      %v3206 = vsub.f32 %v3092, %v3142
      %v3207 = vsub.f32 %v3093, %v3141
      %v3208 = vsub.f32 %v3094, %v3142
      %v3209 = vsub.f32 %v3095, %v3141
      %v3210 = vsub.f32 %v3096, %v3142
      %v3211 = vsub.f32 %v3097, %v3141
      %v3212 = vsub.f32 %v3098, %v3142
      %v3213 = vsub.f32 %v3099, %v3141
      %v3214 = vsub.f32 %v3100, %v3142
      %v3215 = vsub.f32 %v3101, %v3141
      %v3216 = vsub.f32 %v3102, %v3142
      %v3217 = vsub.f32 %v3103, %v3141
      %v3218 = vsub.f32 %v3104, %v3142
      %v3219 = vmul.f32 %v3203, %v3201
      %v3220 = vmul.f32 %v3204, %v3202
      %v3221 = vmul.f32 %v3205, %v3201
      %v3222 = vmul.f32 %v3206, %v3202
      %v3223 = vmul.f32 %v3207, %v3201
      %v3224 = vmul.f32 %v3208, %v3202
      %v3225 = vmul.f32 %v3209, %v3201
      %v3226 = vmul.f32 %v3210, %v3202
      %v3227 = vmul.f32 %v3211, %v3201
      %v3228 = vmul.f32 %v3212, %v3202
      %v3229 = vmul.f32 %v3213, %v3201
      %v3230 = vmul.f32 %v3214, %v3202
      %v3231 = vmul.f32 %v3215, %v3201
      %v3232 = vmul.f32 %v3216, %v3202
      %v3233 = vmul.f32 %v3217, %v3201
      %v3234 = vmul.f32 %v3218, %v3202
      %v3235 = vld [vmem:[%s242] sm:$0x3]
      %v3237 = vlaneseq
      %v3238 = vshrl.u32 %v3237, 7
      %v3239 = vsub.s32 0, %v3238
      %v3240 = vrot.slane %v3235, %v3239
      %v3241 = vlaneseq
      %v3242 = vshrl.u32 %v3241, 7
      %v3243 = vsub.s32 1, %v3242
      %v3244 = vrot.slane %v3235, %v3243
      %v3247 = vmul.f32 %v3219, %v3240
      %v3248 = vmul.f32 %v3220, %v3244
      %v3249 = vmul.f32 %v3221, %v3240
      %v3250 = vmul.f32 %v3222, %v3244
      %v3251 = vmul.f32 %v3223, %v3240
      %v3252 = vmul.f32 %v3224, %v3244
      %v3253 = vmul.f32 %v3225, %v3240
      %v3254 = vmul.f32 %v3226, %v3244
      %v3255 = vmul.f32 %v3227, %v3240
      %v3256 = vmul.f32 %v3228, %v3244
      %v3257 = vmul.f32 %v3229, %v3240
      %v3258 = vmul.f32 %v3230, %v3244
      %v3259 = vmul.f32 %v3231, %v3240
      %v3260 = vmul.f32 %v3232, %v3244
      %v3261 = vmul.f32 %v3233, %v3240
      %v3262 = vmul.f32 %v3234, %v3244
      %v3263 = vld [vmem:[%s246] sm:$0x3]
      %v3265 = vlaneseq
      %v3266 = vshrl.u32 %v3265, 7
      %v3267 = vsub.s32 0, %v3266
      %v3268 = vrot.slane %v3263, %v3267
      %v3269 = vlaneseq
      %v3270 = vshrl.u32 %v3269, 7
      %v3271 = vsub.s32 1, %v3270
      %v3272 = vrot.slane %v3263, %v3271
      %v3275 = vadd.f32 %v3247, %v3268
      %v3276 = vadd.f32 %v3248, %v3272
      %v3277 = vadd.f32 %v3249, %v3268
      %v3278 = vadd.f32 %v3250, %v3272
      %v3279 = vadd.f32 %v3251, %v3268
      %v3280 = vadd.f32 %v3252, %v3272
      %v3281 = vadd.f32 %v3253, %v3268
      %v3282 = vadd.f32 %v3254, %v3272
      %v3283 = vadd.f32 %v3255, %v3268
      %v3284 = vadd.f32 %v3256, %v3272
      %v3285 = vadd.f32 %v3257, %v3268
      %v3286 = vadd.f32 %v3258, %v3272
      %v3287 = vadd.f32 %v3259, %v3268
      %v3288 = vadd.f32 %v3260, %v3272
      %v3289 = vadd.f32 %v3261, %v3268
      %v3290 = vadd.f32 %v3262, %v3272
      %v3291 = vmax.f32 %v3275, 0.0
      %v3292 = vmax.f32 %v3276, 0.0
      %v3293 = vmax.f32 %v3277, 0.0
      %v3294 = vmax.f32 %v3278, 0.0
      %v3295 = vmax.f32 %v3279, 0.0
      %v3296 = vmax.f32 %v3280, 0.0
      %v3297 = vmax.f32 %v3281, 0.0
      %v3298 = vmax.f32 %v3282, 0.0
      %v3299 = vmax.f32 %v3283, 0.0
      %v3300 = vmax.f32 %v3284, 0.0
      %v3301 = vmax.f32 %v3285, 0.0
      %v3302 = vmax.f32 %v3286, 0.0
      %v3303 = vmax.f32 %v3287, 0.0
      %v3304 = vmax.f32 %v3288, 0.0
      %v3305 = vmax.f32 %v3289, 0.0
      %v3306 = vmax.f32 %v3290, 0.0
      %3307 = vst [vmem:[%s251] sm:$0xff] %v3291
      %3308 = vst.msk [vmem:[%s251 + $0x8] sm:$0xff] %vm3118, %v3292
      %3309 = vst [vmem:[%s251 + $0x10] sm:$0xff] %v3293
      %3310 = vst.msk [vmem:[%s251 + $0x18] sm:$0xff] %vm3118, %v3294
      %3311 = vst [vmem:[%s251 + $0x20] sm:$0xff] %v3295
      %3312 = vst.msk [vmem:[%s251 + $0x28] sm:$0xff] %vm3118, %v3296
      %3313 = vst [vmem:[%s251 + $0x30] sm:$0xff] %v3297
      %3314 = vst.msk [vmem:[%s251 + $0x38] sm:$0xff] %vm3118, %v3298
      %3315 = vst [vmem:[%s251 + $0x40] sm:$0xff] %v3299
      %3316 = vst.msk [vmem:[%s251 + $0x48] sm:$0xff] %vm3118, %v3300
      %3317 = vst [vmem:[%s251 + $0x50] sm:$0xff] %v3301
      %3318 = vst.msk [vmem:[%s251 + $0x58] sm:$0xff] %vm3118, %v3302
      %3319 = vst [vmem:[%s251 + $0x60] sm:$0xff] %v3303
      %3320 = vst.msk [vmem:[%s251 + $0x68] sm:$0xff] %vm3118, %v3304
      %3321 = vst [vmem:[%s251 + $0x70] sm:$0xff] %v3305
      %3322 = vst.msk [vmem:[%s251 + $0x78] sm:$0xff] %vm3118, %v3306
      %p3323 = scmp.lt.s32.totalorder %s15, 7
      %s3324 = scalar_select %p3323, %s15, 7
      %s3325 = smul.addr %s3324, 16
      %s3326 = smul.addr %s3325, 8
      %s3327 = scalar_lea.vmem %s4, %s3326
      // Predicated region
      $region37: #{forward.3} parent=35 // pred_check
        %p3328 = pneg %p137
      $region38: #{forward.3} parent=35 // pred_check_branch
        %3330 = sbr.rel (%p3328) target = $region40
      $region39: #{forward.3} parent=35 // pred_region
        _
      $region40: #{forward.3} parent=35 // pred_fallthru
        _
    $region36: #{forward.3} parent=5 // pred_fallthru
      _
    %p3331 = scmp.le.s32.totalorder 2, %s10
    // Predicated region
    $region41: #{forward.3} parent=5 // pred_check
      %p3332 = pneg %p3331
    $region42: #{forward.3} parent=5 // pred_check_branch
      %3334 = sbr.rel (%p3332) target = $region44
    $region43: #{forward.3} parent=5 // pred_region
      %s3335 = ssub.s32 %s10, 2
      // Predicated region
      $region45: #{forward.3} parent=43 // pred_check
        %p3336 = pneg %p143
      $region46: #{forward.3} parent=43 // pred_check_branch
        %3338 = sbr.rel (%p3336) target = $region48
      $region47: #{forward.3} parent=43 // pred_region
        %p3339 = scmp.lt.s32.totalorder %s16, 7
        %s3340 = scalar_select %p3339, %s16, 7
        %s3341 = smul.addr %s3340, 16
        %s3342 = smul.addr %s3341, 8
        %s3343 = scalar_lea.vmem %s4, %s3342
      $region48: #{forward.3} parent=43 // pred_fallthru
        _
    $region44: #{forward.3} parent=5 // pred_fallthru
      _
  $region6: #{forward.3} parent=0 // loop_footer
    %s14 = sadd.s32 1, %s10
  $region7: #{forward.3} parent=0 // loop_footer_branch
    %9 = sbr.rel target = $region3
  $region8: #{forward.3} parent=0 // loop_exit
    _

</llo_original>
